<compile_context>
chip_gen: v6e
topology: v6e:2x2x1
jax: 0.10.0
libtpu: 0.0.40
codegen_flags: <defaults>
</compile_context>

<pallas_src>
import jax
import jax.numpy as jnp
from jax.experimental import pallas as pl
from jax.experimental.pallas import tpu as pltpu

C = 3          # in == out channels for every layer
K = 3          # conv kernel size
N_LAYERS = 3   # conv1 -> conv2 -> conv3

# Largest number of lanes (pixels across packed images) handled in one grid step.
_MAX_BLOCK_LANES = 1 << 17


def _make_fused_kernel(H, W, NB, PAD):
    """Fused conv1->conv2->conv3 kernel over NB images packed along the lane axis."""
    HW = H * W
    SPAN = NB * HW
    W_SHIFT = W.bit_length() - 1

    def kernel(w_ref, x_ref, o_ref, buf_a, buf_b):
        # w_ref  : VMEM (N_LAYERS, C, K*K*C) f32  -- weight columns, [l, co, (kh*K+kw)*C+ci]
        # x_ref  : VMEM (C, SPAN)                 -- NB images, lane-packed row-major
        # o_ref  : VMEM (C, SPAN)
        # buf_a/b: VMEM (C, PAD + SPAN + PAD) f32 -- ping-pong activations with zero halos

        # ---- hoisted boundary masks (keyed on the OUTPUT position), reused by all layers.
        # A flat lane shift of (kh-1)*W + (kw-1) wraps across row/image boundaries; these
        # masks zero exactly the taps that should read conv padding.
        lane = jax.lax.broadcasted_iota(jnp.int32, (1, SPAN), 1)
        col = lane & (W - 1)                       # column within a row   (W power of 2)
        row = (lane & (HW - 1)) >> W_SHIFT         # row within an image   (H*W power of 2)
        ml = (col != 0).astype(jnp.float32)        # kw == 0  (shift -1)
        mr = (col != W - 1).astype(jnp.float32)    # kw == 2  (shift +1)
        mt = (row != 0).astype(jnp.float32)        # kh == 0  (shift -W)
        mb = (row != H - 1).astype(jnp.float32)    # kh == 2  (shift +W)
        mask_h = (mt, None, mb)
        mask_w = (ml, None, mr)
        tap_mask = []
        for kh in range(K):
            row_masks = []
            for kw in range(K):
                mh, mw = mask_h[kh], mask_w[kw]
                if mh is None and mw is None:
                    m = None
                elif mh is None:
                    m = mw
                elif mw is None:
                    m = mh
                else:
                    m = mh * mw
                row_masks.append(m)
            tap_mask.append(row_masks)

        # Zero only the two lane halos of each ping-pong buffer; interiors are always
        # fully overwritten (input copy / per-layer accumulator store).
        halo = jnp.zeros((C, PAD), jnp.float32)
        buf_a[:, :PAD] = halo
        buf_a[:, PAD + SPAN:PAD + SPAN + PAD] = halo
        buf_b[:, :PAD] = halo
        buf_b[:, PAD + SPAN:PAD + SPAN + PAD] = halo
        buf_a[:, PAD:PAD + SPAN] = x_ref[...].astype(jnp.float32)

        bufs = (buf_a, buf_b)
        for layer in range(N_LAYERS):
            src = bufs[layer % 2]
            dst = bufs[(layer + 1) % 2]
            wl = w_ref[layer]                                  # (C, K*K*C), loaded once
            # per-kh partial accumulators at full (C, SPAN) width -> short add chains
            parts = [None] * K
            for kh in range(K):
                for kw in range(K):
                    start = PAD + (kh - 1) * W + (kw - 1)
                    xs = src[:, start:start + SPAN]            # (C, SPAN), one load per tap
                    m = tap_mask[kh][kw]
                    if m is not None:
                        xs = xs * m
                    base = (kh * K + kw) * C
                    for ci in range(C):
                        wcol = wl[:, base + ci:base + ci + 1]  # (C_out, 1) weight column
                        contrib = wcol * xs[ci:ci + 1, :]      # (C_out,1)*(1,SPAN) wide vmul
                        parts[kh] = contrib if parts[kh] is None else parts[kh] + contrib
            acc = parts[0] + parts[1] + parts[2]               # (C, SPAN), lane-dense
            if layer + 1 < N_LAYERS:
                dst[:, PAD:PAD + SPAN] = acc                   # stays resident in VMEM
            else:
                o_ref[...] = acc.astype(o_ref.dtype)           # single lane-dense store

    return kernel


def fused_net_forward(x, w1, w2, w3):
    """x: (N, C, H, W) float32; w*: (C, C, 3, 3).  Returns conv3(conv2(conv1(x)))."""
    N, Cin, H, W = x.shape
    assert Cin == C and w1.shape == w2.shape == w3.shape == (C, C, K, K)
    assert (W & (W - 1)) == 0 and (H & (H - 1)) == 0, \
        "H and W must be powers of two for the flat-lane boundary masks"
    HW = H * W

    # Pack as many whole images per grid step as fits the lane budget.
    NB = 1
    for d in range(N, 0, -1):
        if N % d == 0 and d * HW <= max(_MAX_BLOCK_LANES, HW):
            NB = d
            break
    nb = N // NB
    SPAN = NB * HW

    # Lane-aligned halo; must cover the largest flat tap shift (W + 1).
    PAD = max(128, ((W + 1 + 127) // 128) * 128)
    assert PAD >= W + 1

    # Raise scoped VMEM only when the working set actually needs it (v5e default is 16 MiB).
    scratch_bytes = 2 * C * (SPAN + 2 * PAD) * 4
    block_bytes = 3 * 2 * C * SPAN * 4            # in + out blocks, double-buffered
    need = scratch_bytes + block_bytes + (1 << 20)
    vmem_limit = min(2 * need, 64 << 20) if need > (16 << 20) else None

    # Weight columns: wcols[l, co, (kh*K+kw)*C + ci] = w_l[co, ci, kh, kw]  -> VMEM tile.
    wcols = jnp.stack([w1, w2, w3]).astype(jnp.float32)          # (L, Co, Ci, K, K)
    wcols = jnp.transpose(wcols, (0, 1, 3, 4, 2)).reshape(N_LAYERS, C, K * K * C)

    # Lane-pack the batch: (N, C, H, W) -> (C, N*H*W), row-major per image.
    xp = jnp.transpose(x, (1, 0, 2, 3)).reshape(C, N * HW)

    out_p = pl.pallas_call(
        _make_fused_kernel(H, W, NB, PAD),
        out_shape=jax.ShapeDtypeStruct((C, N * HW), x.dtype),
        grid=(nb,),
        in_specs=[
            pl.BlockSpec((N_LAYERS, C, K * K * C), lambda b: (0, 0, 0)),  # all conv weights
            pl.BlockSpec((C, SPAN), lambda b: (0, b)),
        ],
        out_specs=pl.BlockSpec((C, SPAN), lambda b: (0, b)),
        scratch_shapes=[
            pltpu.VMEM((C, PAD + SPAN + PAD), jnp.float32),               # ping
            pltpu.VMEM((C, PAD + SPAN + PAD), jnp.float32),               # pong
        ],
        compiler_params=pltpu.CompilerParams(
            dimension_semantics=("parallel",),   # batch blocks are independent
            vmem_limit_bytes=vmem_limit),
    )(wcols, xp)
    return jnp.transpose(out_p.reshape(C, N, H, W), (1, 0, 2, 3))


def init_params(key):
    """Deterministic init mimicking nn.Conv2d default (kaiming-uniform-ish)."""
    ks = jax.random.split(key, 4)
    fan_in = C * K * K
    bound = 1.0 / jnp.sqrt(fan_in)
    shape = (C, C, K, K)
    # conv4 exists in __init__ but is unused in forward; initialized for parity.
    return {
        "conv1": jax.random.uniform(ks[0], shape, jnp.float32, -bound, bound),
        "conv2": jax.random.uniform(ks[1], shape, jnp.float32, -bound, bound),
        "conv3": jax.random.uniform(ks[2], shape, jnp.float32, -bound, bound),
        "conv4": jax.random.uniform(ks[3], shape, jnp.float32, -bound, bound),
    }


def net_forward(params, x):
    return fused_net_forward(x, params["conv1"], params["conv2"], params["conv3"])


def _ref_forward(params, x):
    """Pure-JAX reference (lax conv) for verification."""
    def conv(x, w):
        return jax.lax.conv_general_dilated(
            x, w, window_strides=(1, 1), padding="SAME",
            dimension_numbers=("NCHW", "OIHW", "NCHW"))
    out = conv(x, params["conv1"])
    out = conv(out, params["conv2"])
    out = conv(out, params["conv3"])
    return out


if __name__ == "__main__":
    key = jax.random.PRNGKey(0)
    pkey, xkey = jax.random.split(key)
    params = init_params(pkey)
    x = jax.random.normal(xkey, (2, 3, 16, 16), dtype=jnp.float32)

    out = jax.jit(net_forward)(params, x)
    jax.block_until_ready(out)

    ref = _ref_forward(params, x)
    assert out.shape == (2, 3, 16, 16)
    assert jnp.allclose(out, ref, atol=1e-4, rtol=1e-4), "mismatch vs lax reference"
    print("KERNEL_OK")
</pallas_src>

<mosaic_0001>
module attributes {stable_mosaic.version = 11 : i64} {
  func.func @kernel(%arg0: i32, %arg1: memref<3x3x27xf32, #tpu.memory_space<vmem>>, %arg2: memref<3x512xf32, #tpu.memory_space<vmem>>, %arg3: memref<3x512xf32, #tpu.memory_space<vmem>>, %arg4: memref<3x768xf32, #tpu.memory_space<vmem>>, %arg5: memref<3x768xf32, #tpu.memory_space<vmem>>) attributes {dimension_semantics = [#tpu.dimension_semantics<parallel>], iteration_bounds = array<i64: 1>, scalar_prefetch = 0 : i64, scratch_operands = 2 : i64, tpu.core_type = #tpu.core_type<tc>, window_params = [{pipeline_mode = #tpu.pipeline_mode<synchronous>, transform_indices = @transform_0, window_bounds = array<i64: 3, 3, 27>}, {transform_indices = @transform_1, window_bounds = array<i64: 3, 512>}, {transform_indices = @transform_2, window_bounds = array<i64: 3, 512>}]} {
    %0 = tpu.iota {dimensions = array<i32: 1>} : vector<1x512xi32>
    %c15_i32 = arith.constant 15 : i32
    %1 = vector.broadcast %c15_i32 : i32 to vector<1x512xi32>
    %2 = arith.andi %0, %1 : vector<1x512xi32>
    %c255_i32 = arith.constant 255 : i32
    %3 = vector.broadcast %c255_i32 : i32 to vector<1x512xi32>
    %4 = arith.andi %0, %3 : vector<1x512xi32>
    %c4_i32 = arith.constant 4 : i32
    %5 = vector.broadcast %c4_i32 : i32 to vector<1x512xi32>
    %6 = arith.shrsi %4, %5 : vector<1x512xi32>
    %c0_i32 = arith.constant 0 : i32
    %7 = vector.broadcast %c0_i32 : i32 to vector<1x512xi32>
    %8 = arith.cmpi ne, %2, %7 : vector<1x512xi32>
    %9 = arith.extui %8 : vector<1x512xi1> to vector<1x512xi32>
    %10 = arith.sitofp %9 : vector<1x512xi32> to vector<1x512xf32>
    %c15_i32_0 = arith.constant 15 : i32
    %11 = vector.broadcast %c15_i32_0 : i32 to vector<1x512xi32>
    %12 = arith.cmpi ne, %2, %11 : vector<1x512xi32>
    %13 = arith.extui %12 : vector<1x512xi1> to vector<1x512xi32>
    %14 = arith.sitofp %13 : vector<1x512xi32> to vector<1x512xf32>
    %c0_i32_1 = arith.constant 0 : i32
    %15 = vector.broadcast %c0_i32_1 : i32 to vector<1x512xi32>
    %16 = arith.cmpi ne, %6, %15 : vector<1x512xi32>
    %17 = arith.extui %16 : vector<1x512xi1> to vector<1x512xi32>
    %18 = arith.sitofp %17 : vector<1x512xi32> to vector<1x512xf32>
    %c15_i32_2 = arith.constant 15 : i32
    %19 = vector.broadcast %c15_i32_2 : i32 to vector<1x512xi32>
    %20 = arith.cmpi ne, %6, %19 : vector<1x512xi32>
    %21 = arith.extui %20 : vector<1x512xi1> to vector<1x512xi32>
    %22 = arith.sitofp %21 : vector<1x512xi32> to vector<1x512xf32>
    %23 = arith.mulf %18, %10 : vector<1x512xf32>
    %24 = arith.mulf %18, %14 : vector<1x512xf32>
    %25 = arith.mulf %22, %10 : vector<1x512xf32>
    %26 = arith.mulf %22, %14 : vector<1x512xf32>
    %cst = arith.constant 0.000000e+00 : f32
    %27 = vector.broadcast %cst : f32 to vector<3x128xf32>
    %c0 = arith.constant 0 : index
    %c0_3 = arith.constant 0 : index
    %28 = vector.load %arg4[%c0, %c0_3] : memref<3x768xf32, #tpu.memory_space<vmem>>, vector<3x128xf32>
    tpu.vector_store %arg4[%c0, %c0_3], %27 {strides = array<i32>} : memref<3x768xf32, #tpu.memory_space<vmem>>, vector<3x128xf32>,
    %c0_4 = arith.constant 0 : index
    %c640 = arith.constant 640 : index
    %29 = vector.load %arg4[%c0_4, %c640] : memref<3x768xf32, #tpu.memory_space<vmem>>, vector<3x128xf32>
    tpu.vector_store %arg4[%c0_4, %c640], %27 {strides = array<i32>} : memref<3x768xf32, #tpu.memory_space<vmem>>, vector<3x128xf32>,
    %c0_5 = arith.constant 0 : index
    %c0_6 = arith.constant 0 : index
    %30 = vector.load %arg5[%c0_5, %c0_6] : memref<3x768xf32, #tpu.memory_space<vmem>>, vector<3x128xf32>
    tpu.vector_store %arg5[%c0_5, %c0_6], %27 {strides = array<i32>} : memref<3x768xf32, #tpu.memory_space<vmem>>, vector<3x128xf32>,
    %c0_7 = arith.constant 0 : index
    %c640_8 = arith.constant 640 : index
    %31 = vector.load %arg5[%c0_7, %c640_8] : memref<3x768xf32, #tpu.memory_space<vmem>>, vector<3x128xf32>
    tpu.vector_store %arg5[%c0_7, %c640_8], %27 {strides = array<i32>} : memref<3x768xf32, #tpu.memory_space<vmem>>, vector<3x128xf32>,
    %c0_9 = arith.constant 0 : index
    %c0_10 = arith.constant 0 : index
    %32 = vector.load %arg2[%c0_9, %c0_10] : memref<3x512xf32, #tpu.memory_space<vmem>>, vector<3x512xf32>
    %c0_11 = arith.constant 0 : index
    %c128 = arith.constant 128 : index
    %33 = vector.load %arg4[%c0_11, %c128] : memref<3x768xf32, #tpu.memory_space<vmem>>, vector<3x512xf32>
    tpu.vector_store %arg4[%c0_11, %c128], %32 {strides = array<i32>} : memref<3x768xf32, #tpu.memory_space<vmem>>, vector<3x512xf32>,
    %c0_12 = arith.constant 0 : index
    %c0_13 = arith.constant 0 : index
    %c0_14 = arith.constant 0 : index
    %34 = vector.load %arg1[%c0_12, %c0_13, %c0_14] : memref<3x3x27xf32, #tpu.memory_space<vmem>>, vector<1x3x27xf32>
    %35 = vector.shape_cast %34 : vector<1x3x27xf32> to vector<3x27xf32>
    %c0_15 = arith.constant 0 : index
    %c111 = arith.constant 111 : index
    %36 = vector.load %arg4[%c0_15, %c111] : memref<3x768xf32, #tpu.memory_space<vmem>>, vector<3x512xf32>
    %37 = vector.broadcast %23 : vector<1x512xf32> to vector<3x512xf32>
    %38 = arith.mulf %36, %37 : vector<3x512xf32>
    %39 = vector.extract_strided_slice %35 {offsets = [0, 0], sizes = [3, 1], strides = [1, 1]} : vector<3x27xf32> to vector<3x1xf32>
    %40 = vector.extract_strided_slice %38 {offsets = [0, 0], sizes = [1, 512], strides = [1, 1]} : vector<3x512xf32> to vector<1x512xf32>
    %41 = vector.broadcast %39 : vector<3x1xf32> to vector<3x512xf32>
    %42 = vector.broadcast %40 : vector<1x512xf32> to vector<3x512xf32>
    %43 = arith.mulf %41, %42 : vector<3x512xf32>
    %44 = vector.extract_strided_slice %35 {offsets = [0, 1], sizes = [3, 1], strides = [1, 1]} : vector<3x27xf32> to vector<3x1xf32>
    %45 = vector.extract_strided_slice %38 {offsets = [1, 0], sizes = [1, 512], strides = [1, 1]} : vector<3x512xf32> to vector<1x512xf32>
    %46 = vector.broadcast %44 : vector<3x1xf32> to vector<3x512xf32>
    %47 = vector.broadcast %45 : vector<1x512xf32> to vector<3x512xf32>
    %48 = arith.mulf %46, %47 : vector<3x512xf32>
    %49 = arith.addf %43, %48 : vector<3x512xf32>
    %50 = vector.extract_strided_slice %35 {offsets = [0, 2], sizes = [3, 1], strides = [1, 1]} : vector<3x27xf32> to vector<3x1xf32>
    %51 = vector.extract_strided_slice %38 {offsets = [2, 0], sizes = [1, 512], strides = [1, 1]} : vector<3x512xf32> to vector<1x512xf32>
    %52 = vector.broadcast %50 : vector<3x1xf32> to vector<3x512xf32>
    %53 = vector.broadcast %51 : vector<1x512xf32> to vector<3x512xf32>
    %54 = arith.mulf %52, %53 : vector<3x512xf32>
    %55 = arith.addf %49, %54 : vector<3x512xf32>
    %c0_16 = arith.constant 0 : index
    %c112 = arith.constant 112 : index
    %56 = vector.load %arg4[%c0_16, %c112] : memref<3x768xf32, #tpu.memory_space<vmem>>, vector<3x512xf32>
    %57 = vector.broadcast %18 : vector<1x512xf32> to vector<3x512xf32>
    %58 = arith.mulf %56, %57 : vector<3x512xf32>
    %59 = vector.extract_strided_slice %35 {offsets = [0, 3], sizes = [3, 1], strides = [1, 1]} : vector<3x27xf32> to vector<3x1xf32>
    %60 = vector.extract_strided_slice %58 {offsets = [0, 0], sizes = [1, 512], strides = [1, 1]} : vector<3x512xf32> to vector<1x512xf32>
    %61 = vector.broadcast %59 : vector<3x1xf32> to vector<3x512xf32>
    %62 = vector.broadcast %60 : vector<1x512xf32> to vector<3x512xf32>
    %63 = arith.mulf %61, %62 : vector<3x512xf32>
    %64 = arith.addf %55, %63 : vector<3x512xf32>
    %65 = vector.extract_strided_slice %35 {offsets = [0, 4], sizes = [3, 1], strides = [1, 1]} : vector<3x27xf32> to vector<3x1xf32>
    %66 = vector.extract_strided_slice %58 {offsets = [1, 0], sizes = [1, 512], strides = [1, 1]} : vector<3x512xf32> to vector<1x512xf32>
    %67 = vector.broadcast %65 : vector<3x1xf32> to vector<3x512xf32>
    %68 = vector.broadcast %66 : vector<1x512xf32> to vector<3x512xf32>
    %69 = arith.mulf %67, %68 : vector<3x512xf32>
    %70 = arith.addf %64, %69 : vector<3x512xf32>
    %71 = vector.extract_strided_slice %35 {offsets = [0, 5], sizes = [3, 1], strides = [1, 1]} : vector<3x27xf32> to vector<3x1xf32>
    %72 = vector.extract_strided_slice %58 {offsets = [2, 0], sizes = [1, 512], strides = [1, 1]} : vector<3x512xf32> to vector<1x512xf32>
    %73 = vector.broadcast %71 : vector<3x1xf32> to vector<3x512xf32>
    %74 = vector.broadcast %72 : vector<1x512xf32> to vector<3x512xf32>
    %75 = arith.mulf %73, %74 : vector<3x512xf32>
    %76 = arith.addf %70, %75 : vector<3x512xf32>
    %c0_17 = arith.constant 0 : index
    %c113 = arith.constant 113 : index
    %77 = vector.load %arg4[%c0_17, %c113] : memref<3x768xf32, #tpu.memory_space<vmem>>, vector<3x512xf32>
    %78 = vector.broadcast %24 : vector<1x512xf32> to vector<3x512xf32>
    %79 = arith.mulf %77, %78 : vector<3x512xf32>
    %80 = vector.extract_strided_slice %35 {offsets = [0, 6], sizes = [3, 1], strides = [1, 1]} : vector<3x27xf32> to vector<3x1xf32>
    %81 = vector.extract_strided_slice %79 {offsets = [0, 0], sizes = [1, 512], strides = [1, 1]} : vector<3x512xf32> to vector<1x512xf32>
    %82 = vector.broadcast %80 : vector<3x1xf32> to vector<3x512xf32>
    %83 = vector.broadcast %81 : vector<1x512xf32> to vector<3x512xf32>
    %84 = arith.mulf %82, %83 : vector<3x512xf32>
    %85 = arith.addf %76, %84 : vector<3x512xf32>
    %86 = vector.extract_strided_slice %35 {offsets = [0, 7], sizes = [3, 1], strides = [1, 1]} : vector<3x27xf32> to vector<3x1xf32>
    %87 = vector.extract_strided_slice %79 {offsets = [1, 0], sizes = [1, 512], strides = [1, 1]} : vector<3x512xf32> to vector<1x512xf32>
    %88 = vector.broadcast %86 : vector<3x1xf32> to vector<3x512xf32>
    %89 = vector.broadcast %87 : vector<1x512xf32> to vector<3x512xf32>
    %90 = arith.mulf %88, %89 : vector<3x512xf32>
    %91 = arith.addf %85, %90 : vector<3x512xf32>
    %92 = vector.extract_strided_slice %35 {offsets = [0, 8], sizes = [3, 1], strides = [1, 1]} : vector<3x27xf32> to vector<3x1xf32>
    %93 = vector.extract_strided_slice %79 {offsets = [2, 0], sizes = [1, 512], strides = [1, 1]} : vector<3x512xf32> to vector<1x512xf32>
    %94 = vector.broadcast %92 : vector<3x1xf32> to vector<3x512xf32>
    %95 = vector.broadcast %93 : vector<1x512xf32> to vector<3x512xf32>
    %96 = arith.mulf %94, %95 : vector<3x512xf32>
    %97 = arith.addf %91, %96 : vector<3x512xf32>
    %c0_18 = arith.constant 0 : index
    %c127 = arith.constant 127 : index
    %98 = vector.load %arg4[%c0_18, %c127] : memref<3x768xf32, #tpu.memory_space<vmem>>, vector<3x512xf32>
    %99 = vector.broadcast %10 : vector<1x512xf32> to vector<3x512xf32>
    %100 = arith.mulf %98, %99 : vector<3x512xf32>
    %101 = vector.extract_strided_slice %35 {offsets = [0, 9], sizes = [3, 1], strides = [1, 1]} : vector<3x27xf32> to vector<3x1xf32>
    %102 = vector.extract_strided_slice %100 {offsets = [0, 0], sizes = [1, 512], strides = [1, 1]} : vector<3x512xf32> to vector<1x512xf32>
    %103 = vector.broadcast %101 : vector<3x1xf32> to vector<3x512xf32>
    %104 = vector.broadcast %102 : vector<1x512xf32> to vector<3x512xf32>
    %105 = arith.mulf %103, %104 : vector<3x512xf32>
    %106 = vector.extract_strided_slice %35 {offsets = [0, 10], sizes = [3, 1], strides = [1, 1]} : vector<3x27xf32> to vector<3x1xf32>
    %107 = vector.extract_strided_slice %100 {offsets = [1, 0], sizes = [1, 512], strides = [1, 1]} : vector<3x512xf32> to vector<1x512xf32>
    %108 = vector.broadcast %106 : vector<3x1xf32> to vector<3x512xf32>
    %109 = vector.broadcast %107 : vector<1x512xf32> to vector<3x512xf32>
    %110 = arith.mulf %108, %109 : vector<3x512xf32>
    %111 = arith.addf %105, %110 : vector<3x512xf32>
    %112 = vector.extract_strided_slice %35 {offsets = [0, 11], sizes = [3, 1], strides = [1, 1]} : vector<3x27xf32> to vector<3x1xf32>
    %113 = vector.extract_strided_slice %100 {offsets = [2, 0], sizes = [1, 512], strides = [1, 1]} : vector<3x512xf32> to vector<1x512xf32>
    %114 = vector.broadcast %112 : vector<3x1xf32> to vector<3x512xf32>
    %115 = vector.broadcast %113 : vector<1x512xf32> to vector<3x512xf32>
    %116 = arith.mulf %114, %115 : vector<3x512xf32>
    %117 = arith.addf %111, %116 : vector<3x512xf32>
    %c0_19 = arith.constant 0 : index
    %c128_20 = arith.constant 128 : index
    %118 = vector.load %arg4[%c0_19, %c128_20] : memref<3x768xf32, #tpu.memory_space<vmem>>, vector<3x512xf32>
    %119 = vector.extract_strided_slice %35 {offsets = [0, 12], sizes = [3, 1], strides = [1, 1]} : vector<3x27xf32> to vector<3x1xf32>
    %120 = vector.extract_strided_slice %118 {offsets = [0, 0], sizes = [1, 512], strides = [1, 1]} : vector<3x512xf32> to vector<1x512xf32>
    %121 = vector.broadcast %119 : vector<3x1xf32> to vector<3x512xf32>
    %122 = vector.broadcast %120 : vector<1x512xf32> to vector<3x512xf32>
    %123 = arith.mulf %121, %122 : vector<3x512xf32>
    %124 = arith.addf %117, %123 : vector<3x512xf32>
    %125 = vector.extract_strided_slice %35 {offsets = [0, 13], sizes = [3, 1], strides = [1, 1]} : vector<3x27xf32> to vector<3x1xf32>
    %126 = vector.extract_strided_slice %118 {offsets = [1, 0], sizes = [1, 512], strides = [1, 1]} : vector<3x512xf32> to vector<1x512xf32>
    %127 = vector.broadcast %125 : vector<3x1xf32> to vector<3x512xf32>
    %128 = vector.broadcast %126 : vector<1x512xf32> to vector<3x512xf32>
    %129 = arith.mulf %127, %128 : vector<3x512xf32>
    %130 = arith.addf %124, %129 : vector<3x512xf32>
    %131 = vector.extract_strided_slice %35 {offsets = [0, 14], sizes = [3, 1], strides = [1, 1]} : vector<3x27xf32> to vector<3x1xf32>
    %132 = vector.extract_strided_slice %118 {offsets = [2, 0], sizes = [1, 512], strides = [1, 1]} : vector<3x512xf32> to vector<1x512xf32>
    %133 = vector.broadcast %131 : vector<3x1xf32> to vector<3x512xf32>
    %134 = vector.broadcast %132 : vector<1x512xf32> to vector<3x512xf32>
    %135 = arith.mulf %133, %134 : vector<3x512xf32>
    %136 = arith.addf %130, %135 : vector<3x512xf32>
    %c0_21 = arith.constant 0 : index
    %c129 = arith.constant 129 : index
    %137 = vector.load %arg4[%c0_21, %c129] : memref<3x768xf32, #tpu.memory_space<vmem>>, vector<3x512xf32>
    %138 = vector.broadcast %14 : vector<1x512xf32> to vector<3x512xf32>
    %139 = arith.mulf %137, %138 : vector<3x512xf32>
    %140 = vector.extract_strided_slice %35 {offsets = [0, 15], sizes = [3, 1], strides = [1, 1]} : vector<3x27xf32> to vector<3x1xf32>
    %141 = vector.extract_strided_slice %139 {offsets = [0, 0], sizes = [1, 512], strides = [1, 1]} : vector<3x512xf32> to vector<1x512xf32>
    %142 = vector.broadcast %140 : vector<3x1xf32> to vector<3x512xf32>
    %143 = vector.broadcast %141 : vector<1x512xf32> to vector<3x512xf32>
    %144 = arith.mulf %142, %143 : vector<3x512xf32>
    %145 = arith.addf %136, %144 : vector<3x512xf32>
    %146 = vector.extract_strided_slice %35 {offsets = [0, 16], sizes = [3, 1], strides = [1, 1]} : vector<3x27xf32> to vector<3x1xf32>
    %147 = vector.extract_strided_slice %139 {offsets = [1, 0], sizes = [1, 512], strides = [1, 1]} : vector<3x512xf32> to vector<1x512xf32>
    %148 = vector.broadcast %146 : vector<3x1xf32> to vector<3x512xf32>
    %149 = vector.broadcast %147 : vector<1x512xf32> to vector<3x512xf32>
    %150 = arith.mulf %148, %149 : vector<3x512xf32>
    %151 = arith.addf %145, %150 : vector<3x512xf32>
    %152 = vector.extract_strided_slice %35 {offsets = [0, 17], sizes = [3, 1], strides = [1, 1]} : vector<3x27xf32> to vector<3x1xf32>
    %153 = vector.extract_strided_slice %139 {offsets = [2, 0], sizes = [1, 512], strides = [1, 1]} : vector<3x512xf32> to vector<1x512xf32>
    %154 = vector.broadcast %152 : vector<3x1xf32> to vector<3x512xf32>
    %155 = vector.broadcast %153 : vector<1x512xf32> to vector<3x512xf32>
    %156 = arith.mulf %154, %155 : vector<3x512xf32>
    %157 = arith.addf %151, %156 : vector<3x512xf32>
    %c0_22 = arith.constant 0 : index
    %c143 = arith.constant 143 : index
    %158 = vector.load %arg4[%c0_22, %c143] : memref<3x768xf32, #tpu.memory_space<vmem>>, vector<3x512xf32>
    %159 = vector.broadcast %25 : vector<1x512xf32> to vector<3x512xf32>
    %160 = arith.mulf %158, %159 : vector<3x512xf32>
    %161 = vector.extract_strided_slice %35 {offsets = [0, 18], sizes = [3, 1], strides = [1, 1]} : vector<3x27xf32> to vector<3x1xf32>
    %162 = vector.extract_strided_slice %160 {offsets = [0, 0], sizes = [1, 512], strides = [1, 1]} : vector<3x512xf32> to vector<1x512xf32>
    %163 = vector.broadcast %161 : vector<3x1xf32> to vector<3x512xf32>
    %164 = vector.broadcast %162 : vector<1x512xf32> to vector<3x512xf32>
    %165 = arith.mulf %163, %164 : vector<3x512xf32>
    %166 = vector.extract_strided_slice %35 {offsets = [0, 19], sizes = [3, 1], strides = [1, 1]} : vector<3x27xf32> to vector<3x1xf32>
    %167 = vector.extract_strided_slice %160 {offsets = [1, 0], sizes = [1, 512], strides = [1, 1]} : vector<3x512xf32> to vector<1x512xf32>
    %168 = vector.broadcast %166 : vector<3x1xf32> to vector<3x512xf32>
    %169 = vector.broadcast %167 : vector<1x512xf32> to vector<3x512xf32>
    %170 = arith.mulf %168, %169 : vector<3x512xf32>
    %171 = arith.addf %165, %170 : vector<3x512xf32>
    %172 = vector.extract_strided_slice %35 {offsets = [0, 20], sizes = [3, 1], strides = [1, 1]} : vector<3x27xf32> to vector<3x1xf32>
    %173 = vector.extract_strided_slice %160 {offsets = [2, 0], sizes = [1, 512], strides = [1, 1]} : vector<3x512xf32> to vector<1x512xf32>
    %174 = vector.broadcast %172 : vector<3x1xf32> to vector<3x512xf32>
    %175 = vector.broadcast %173 : vector<1x512xf32> to vector<3x512xf32>
    %176 = arith.mulf %174, %175 : vector<3x512xf32>
    %177 = arith.addf %171, %176 : vector<3x512xf32>
    %c0_23 = arith.constant 0 : index
    %c144 = arith.constant 144 : index
    %178 = vector.load %arg4[%c0_23, %c144] : memref<3x768xf32, #tpu.memory_space<vmem>>, vector<3x512xf32>
    %179 = vector.broadcast %22 : vector<1x512xf32> to vector<3x512xf32>
    %180 = arith.mulf %178, %179 : vector<3x512xf32>
    %181 = vector.extract_strided_slice %35 {offsets = [0, 21], sizes = [3, 1], strides = [1, 1]} : vector<3x27xf32> to vector<3x1xf32>
    %182 = vector.extract_strided_slice %180 {offsets = [0, 0], sizes = [1, 512], strides = [1, 1]} : vector<3x512xf32> to vector<1x512xf32>
    %183 = vector.broadcast %181 : vector<3x1xf32> to vector<3x512xf32>
    %184 = vector.broadcast %182 : vector<1x512xf32> to vector<3x512xf32>
    %185 = arith.mulf %183, %184 : vector<3x512xf32>
    %186 = arith.addf %177, %185 : vector<3x512xf32>
    %187 = vector.extract_strided_slice %35 {offsets = [0, 22], sizes = [3, 1], strides = [1, 1]} : vector<3x27xf32> to vector<3x1xf32>
    %188 = vector.extract_strided_slice %180 {offsets = [1, 0], sizes = [1, 512], strides = [1, 1]} : vector<3x512xf32> to vector<1x512xf32>
    %189 = vector.broadcast %187 : vector<3x1xf32> to vector<3x512xf32>
    %190 = vector.broadcast %188 : vector<1x512xf32> to vector<3x512xf32>
    %191 = arith.mulf %189, %190 : vector<3x512xf32>
    %192 = arith.addf %186, %191 : vector<3x512xf32>
    %193 = vector.extract_strided_slice %35 {offsets = [0, 23], sizes = [3, 1], strides = [1, 1]} : vector<3x27xf32> to vector<3x1xf32>
    %194 = vector.extract_strided_slice %180 {offsets = [2, 0], sizes = [1, 512], strides = [1, 1]} : vector<3x512xf32> to vector<1x512xf32>
    %195 = vector.broadcast %193 : vector<3x1xf32> to vector<3x512xf32>
    %196 = vector.broadcast %194 : vector<1x512xf32> to vector<3x512xf32>
    %197 = arith.mulf %195, %196 : vector<3x512xf32>
    %198 = arith.addf %192, %197 : vector<3x512xf32>
    %c0_24 = arith.constant 0 : index
    %c145 = arith.constant 145 : index
    %199 = vector.load %arg4[%c0_24, %c145] : memref<3x768xf32, #tpu.memory_space<vmem>>, vector<3x512xf32>
    %200 = vector.broadcast %26 : vector<1x512xf32> to vector<3x512xf32>
    %201 = arith.mulf %199, %200 : vector<3x512xf32>
    %202 = vector.extract_strided_slice %35 {offsets = [0, 24], sizes = [3, 1], strides = [1, 1]} : vector<3x27xf32> to vector<3x1xf32>
    %203 = vector.extract_strided_slice %201 {offsets = [0, 0], sizes = [1, 512], strides = [1, 1]} : vector<3x512xf32> to vector<1x512xf32>
    %204 = vector.broadcast %202 : vector<3x1xf32> to vector<3x512xf32>
    %205 = vector.broadcast %203 : vector<1x512xf32> to vector<3x512xf32>
    %206 = arith.mulf %204, %205 : vector<3x512xf32>
    %207 = arith.addf %198, %206 : vector<3x512xf32>
    %208 = vector.extract_strided_slice %35 {offsets = [0, 25], sizes = [3, 1], strides = [1, 1]} : vector<3x27xf32> to vector<3x1xf32>
    %209 = vector.extract_strided_slice %201 {offsets = [1, 0], sizes = [1, 512], strides = [1, 1]} : vector<3x512xf32> to vector<1x512xf32>
    %210 = vector.broadcast %208 : vector<3x1xf32> to vector<3x512xf32>
    %211 = vector.broadcast %209 : vector<1x512xf32> to vector<3x512xf32>
    %212 = arith.mulf %210, %211 : vector<3x512xf32>
    %213 = arith.addf %207, %212 : vector<3x512xf32>
    %214 = vector.extract_strided_slice %35 {offsets = [0, 26], sizes = [3, 1], strides = [1, 1]} : vector<3x27xf32> to vector<3x1xf32>
    %215 = vector.extract_strided_slice %201 {offsets = [2, 0], sizes = [1, 512], strides = [1, 1]} : vector<3x512xf32> to vector<1x512xf32>
    %216 = vector.broadcast %214 : vector<3x1xf32> to vector<3x512xf32>
    %217 = vector.broadcast %215 : vector<1x512xf32> to vector<3x512xf32>
    %218 = arith.mulf %216, %217 : vector<3x512xf32>
    %219 = arith.addf %213, %218 : vector<3x512xf32>
    %220 = arith.addf %97, %157 : vector<3x512xf32>
    %221 = arith.addf %220, %219 : vector<3x512xf32>
    %c0_25 = arith.constant 0 : index
    %c128_26 = arith.constant 128 : index
    %222 = vector.load %arg5[%c0_25, %c128_26] : memref<3x768xf32, #tpu.memory_space<vmem>>, vector<3x512xf32>
    tpu.vector_store %arg5[%c0_25, %c128_26], %221 {strides = array<i32>} : memref<3x768xf32, #tpu.memory_space<vmem>>, vector<3x512xf32>,
    %c1 = arith.constant 1 : index
    %c0_27 = arith.constant 0 : index
    %c0_28 = arith.constant 0 : index
    %223 = vector.load %arg1[%c1, %c0_27, %c0_28] : memref<3x3x27xf32, #tpu.memory_space<vmem>>, vector<1x3x27xf32>
    %224 = vector.shape_cast %223 : vector<1x3x27xf32> to vector<3x27xf32>
    %c0_29 = arith.constant 0 : index
    %c111_30 = arith.constant 111 : index
    %225 = vector.load %arg5[%c0_29, %c111_30] : memref<3x768xf32, #tpu.memory_space<vmem>>, vector<3x512xf32>
    %226 = vector.broadcast %23 : vector<1x512xf32> to vector<3x512xf32>
    %227 = arith.mulf %225, %226 : vector<3x512xf32>
    %228 = vector.extract_strided_slice %224 {offsets = [0, 0], sizes = [3, 1], strides = [1, 1]} : vector<3x27xf32> to vector<3x1xf32>
    %229 = vector.extract_strided_slice %227 {offsets = [0, 0], sizes = [1, 512], strides = [1, 1]} : vector<3x512xf32> to vector<1x512xf32>
    %230 = vector.broadcast %228 : vector<3x1xf32> to vector<3x512xf32>
    %231 = vector.broadcast %229 : vector<1x512xf32> to vector<3x512xf32>
    %232 = arith.mulf %230, %231 : vector<3x512xf32>
    %233 = vector.extract_strided_slice %224 {offsets = [0, 1], sizes = [3, 1], strides = [1, 1]} : vector<3x27xf32> to vector<3x1xf32>
    %234 = vector.extract_strided_slice %227 {offsets = [1, 0], sizes = [1, 512], strides = [1, 1]} : vector<3x512xf32> to vector<1x512xf32>
    %235 = vector.broadcast %233 : vector<3x1xf32> to vector<3x512xf32>
    %236 = vector.broadcast %234 : vector<1x512xf32> to vector<3x512xf32>
    %237 = arith.mulf %235, %236 : vector<3x512xf32>
    %238 = arith.addf %232, %237 : vector<3x512xf32>
    %239 = vector.extract_strided_slice %224 {offsets = [0, 2], sizes = [3, 1], strides = [1, 1]} : vector<3x27xf32> to vector<3x1xf32>
    %240 = vector.extract_strided_slice %227 {offsets = [2, 0], sizes = [1, 512], strides = [1, 1]} : vector<3x512xf32> to vector<1x512xf32>
    %241 = vector.broadcast %239 : vector<3x1xf32> to vector<3x512xf32>
    %242 = vector.broadcast %240 : vector<1x512xf32> to vector<3x512xf32>
    %243 = arith.mulf %241, %242 : vector<3x512xf32>
    %244 = arith.addf %238, %243 : vector<3x512xf32>
    %c0_31 = arith.constant 0 : index
    %c112_32 = arith.constant 112 : index
    %245 = vector.load %arg5[%c0_31, %c112_32] : memref<3x768xf32, #tpu.memory_space<vmem>>, vector<3x512xf32>
    %246 = vector.broadcast %18 : vector<1x512xf32> to vector<3x512xf32>
    %247 = arith.mulf %245, %246 : vector<3x512xf32>
    %248 = vector.extract_strided_slice %224 {offsets = [0, 3], sizes = [3, 1], strides = [1, 1]} : vector<3x27xf32> to vector<3x1xf32>
    %249 = vector.extract_strided_slice %247 {offsets = [0, 0], sizes = [1, 512], strides = [1, 1]} : vector<3x512xf32> to vector<1x512xf32>
    %250 = vector.broadcast %248 : vector<3x1xf32> to vector<3x512xf32>
    %251 = vector.broadcast %249 : vector<1x512xf32> to vector<3x512xf32>
    %252 = arith.mulf %250, %251 : vector<3x512xf32>
    %253 = arith.addf %244, %252 : vector<3x512xf32>
    %254 = vector.extract_strided_slice %224 {offsets = [0, 4], sizes = [3, 1], strides = [1, 1]} : vector<3x27xf32> to vector<3x1xf32>
    %255 = vector.extract_strided_slice %247 {offsets = [1, 0], sizes = [1, 512], strides = [1, 1]} : vector<3x512xf32> to vector<1x512xf32>
    %256 = vector.broadcast %254 : vector<3x1xf32> to vector<3x512xf32>
    %257 = vector.broadcast %255 : vector<1x512xf32> to vector<3x512xf32>
    %258 = arith.mulf %256, %257 : vector<3x512xf32>
    %259 = arith.addf %253, %258 : vector<3x512xf32>
    %260 = vector.extract_strided_slice %224 {offsets = [0, 5], sizes = [3, 1], strides = [1, 1]} : vector<3x27xf32> to vector<3x1xf32>
    %261 = vector.extract_strided_slice %247 {offsets = [2, 0], sizes = [1, 512], strides = [1, 1]} : vector<3x512xf32> to vector<1x512xf32>
    %262 = vector.broadcast %260 : vector<3x1xf32> to vector<3x512xf32>
    %263 = vector.broadcast %261 : vector<1x512xf32> to vector<3x512xf32>
    %264 = arith.mulf %262, %263 : vector<3x512xf32>
    %265 = arith.addf %259, %264 : vector<3x512xf32>
    %c0_33 = arith.constant 0 : index
    %c113_34 = arith.constant 113 : index
    %266 = vector.load %arg5[%c0_33, %c113_34] : memref<3x768xf32, #tpu.memory_space<vmem>>, vector<3x512xf32>
    %267 = vector.broadcast %24 : vector<1x512xf32> to vector<3x512xf32>
    %268 = arith.mulf %266, %267 : vector<3x512xf32>
    %269 = vector.extract_strided_slice %224 {offsets = [0, 6], sizes = [3, 1], strides = [1, 1]} : vector<3x27xf32> to vector<3x1xf32>
    %270 = vector.extract_strided_slice %268 {offsets = [0, 0], sizes = [1, 512], strides = [1, 1]} : vector<3x512xf32> to vector<1x512xf32>
    %271 = vector.broadcast %269 : vector<3x1xf32> to vector<3x512xf32>
    %272 = vector.broadcast %270 : vector<1x512xf32> to vector<3x512xf32>
    %273 = arith.mulf %271, %272 : vector<3x512xf32>
    %274 = arith.addf %265, %273 : vector<3x512xf32>
    %275 = vector.extract_strided_slice %224 {offsets = [0, 7], sizes = [3, 1], strides = [1, 1]} : vector<3x27xf32> to vector<3x1xf32>
    %276 = vector.extract_strided_slice %268 {offsets = [1, 0], sizes = [1, 512], strides = [1, 1]} : vector<3x512xf32> to vector<1x512xf32>
    %277 = vector.broadcast %275 : vector<3x1xf32> to vector<3x512xf32>
    %278 = vector.broadcast %276 : vector<1x512xf32> to vector<3x512xf32>
    %279 = arith.mulf %277, %278 : vector<3x512xf32>
    %280 = arith.addf %274, %279 : vector<3x512xf32>
    %281 = vector.extract_strided_slice %224 {offsets = [0, 8], sizes = [3, 1], strides = [1, 1]} : vector<3x27xf32> to vector<3x1xf32>
    %282 = vector.extract_strided_slice %268 {offsets = [2, 0], sizes = [1, 512], strides = [1, 1]} : vector<3x512xf32> to vector<1x512xf32>
    %283 = vector.broadcast %281 : vector<3x1xf32> to vector<3x512xf32>
    %284 = vector.broadcast %282 : vector<1x512xf32> to vector<3x512xf32>
    %285 = arith.mulf %283, %284 : vector<3x512xf32>
    %286 = arith.addf %280, %285 : vector<3x512xf32>
    %c0_35 = arith.constant 0 : index
    %c127_36 = arith.constant 127 : index
    %287 = vector.load %arg5[%c0_35, %c127_36] : memref<3x768xf32, #tpu.memory_space<vmem>>, vector<3x512xf32>
    %288 = vector.broadcast %10 : vector<1x512xf32> to vector<3x512xf32>
    %289 = arith.mulf %287, %288 : vector<3x512xf32>
    %290 = vector.extract_strided_slice %224 {offsets = [0, 9], sizes = [3, 1], strides = [1, 1]} : vector<3x27xf32> to vector<3x1xf32>
    %291 = vector.extract_strided_slice %289 {offsets = [0, 0], sizes = [1, 512], strides = [1, 1]} : vector<3x512xf32> to vector<1x512xf32>
    %292 = vector.broadcast %290 : vector<3x1xf32> to vector<3x512xf32>
    %293 = vector.broadcast %291 : vector<1x512xf32> to vector<3x512xf32>
    %294 = arith.mulf %292, %293 : vector<3x512xf32>
    %295 = vector.extract_strided_slice %224 {offsets = [0, 10], sizes = [3, 1], strides = [1, 1]} : vector<3x27xf32> to vector<3x1xf32>
    %296 = vector.extract_strided_slice %289 {offsets = [1, 0], sizes = [1, 512], strides = [1, 1]} : vector<3x512xf32> to vector<1x512xf32>
    %297 = vector.broadcast %295 : vector<3x1xf32> to vector<3x512xf32>
    %298 = vector.broadcast %296 : vector<1x512xf32> to vector<3x512xf32>
    %299 = arith.mulf %297, %298 : vector<3x512xf32>
    %300 = arith.addf %294, %299 : vector<3x512xf32>
    %301 = vector.extract_strided_slice %224 {offsets = [0, 11], sizes = [3, 1], strides = [1, 1]} : vector<3x27xf32> to vector<3x1xf32>
    %302 = vector.extract_strided_slice %289 {offsets = [2, 0], sizes = [1, 512], strides = [1, 1]} : vector<3x512xf32> to vector<1x512xf32>
    %303 = vector.broadcast %301 : vector<3x1xf32> to vector<3x512xf32>
    %304 = vector.broadcast %302 : vector<1x512xf32> to vector<3x512xf32>
    %305 = arith.mulf %303, %304 : vector<3x512xf32>
    %306 = arith.addf %300, %305 : vector<3x512xf32>
    %c0_37 = arith.constant 0 : index
    %c128_38 = arith.constant 128 : index
    %307 = vector.load %arg5[%c0_37, %c128_38] : memref<3x768xf32, #tpu.memory_space<vmem>>, vector<3x512xf32>
    %308 = vector.extract_strided_slice %224 {offsets = [0, 12], sizes = [3, 1], strides = [1, 1]} : vector<3x27xf32> to vector<3x1xf32>
    %309 = vector.extract_strided_slice %307 {offsets = [0, 0], sizes = [1, 512], strides = [1, 1]} : vector<3x512xf32> to vector<1x512xf32>
    %310 = vector.broadcast %308 : vector<3x1xf32> to vector<3x512xf32>
    %311 = vector.broadcast %309 : vector<1x512xf32> to vector<3x512xf32>
    %312 = arith.mulf %310, %311 : vector<3x512xf32>
    %313 = arith.addf %306, %312 : vector<3x512xf32>
    %314 = vector.extract_strided_slice %224 {offsets = [0, 13], sizes = [3, 1], strides = [1, 1]} : vector<3x27xf32> to vector<3x1xf32>
    %315 = vector.extract_strided_slice %307 {offsets = [1, 0], sizes = [1, 512], strides = [1, 1]} : vector<3x512xf32> to vector<1x512xf32>
    %316 = vector.broadcast %314 : vector<3x1xf32> to vector<3x512xf32>
    %317 = vector.broadcast %315 : vector<1x512xf32> to vector<3x512xf32>
    %318 = arith.mulf %316, %317 : vector<3x512xf32>
    %319 = arith.addf %313, %318 : vector<3x512xf32>
    %320 = vector.extract_strided_slice %224 {offsets = [0, 14], sizes = [3, 1], strides = [1, 1]} : vector<3x27xf32> to vector<3x1xf32>
    %321 = vector.extract_strided_slice %307 {offsets = [2, 0], sizes = [1, 512], strides = [1, 1]} : vector<3x512xf32> to vector<1x512xf32>
    %322 = vector.broadcast %320 : vector<3x1xf32> to vector<3x512xf32>
    %323 = vector.broadcast %321 : vector<1x512xf32> to vector<3x512xf32>
    %324 = arith.mulf %322, %323 : vector<3x512xf32>
    %325 = arith.addf %319, %324 : vector<3x512xf32>
    %c0_39 = arith.constant 0 : index
    %c129_40 = arith.constant 129 : index
    %326 = vector.load %arg5[%c0_39, %c129_40] : memref<3x768xf32, #tpu.memory_space<vmem>>, vector<3x512xf32>
    %327 = vector.broadcast %14 : vector<1x512xf32> to vector<3x512xf32>
    %328 = arith.mulf %326, %327 : vector<3x512xf32>
    %329 = vector.extract_strided_slice %224 {offsets = [0, 15], sizes = [3, 1], strides = [1, 1]} : vector<3x27xf32> to vector<3x1xf32>
    %330 = vector.extract_strided_slice %328 {offsets = [0, 0], sizes = [1, 512], strides = [1, 1]} : vector<3x512xf32> to vector<1x512xf32>
    %331 = vector.broadcast %329 : vector<3x1xf32> to vector<3x512xf32>
    %332 = vector.broadcast %330 : vector<1x512xf32> to vector<3x512xf32>
    %333 = arith.mulf %331, %332 : vector<3x512xf32>
    %334 = arith.addf %325, %333 : vector<3x512xf32>
    %335 = vector.extract_strided_slice %224 {offsets = [0, 16], sizes = [3, 1], strides = [1, 1]} : vector<3x27xf32> to vector<3x1xf32>
    %336 = vector.extract_strided_slice %328 {offsets = [1, 0], sizes = [1, 512], strides = [1, 1]} : vector<3x512xf32> to vector<1x512xf32>
    %337 = vector.broadcast %335 : vector<3x1xf32> to vector<3x512xf32>
    %338 = vector.broadcast %336 : vector<1x512xf32> to vector<3x512xf32>
    %339 = arith.mulf %337, %338 : vector<3x512xf32>
    %340 = arith.addf %334, %339 : vector<3x512xf32>
    %341 = vector.extract_strided_slice %224 {offsets = [0, 17], sizes = [3, 1], strides = [1, 1]} : vector<3x27xf32> to vector<3x1xf32>
    %342 = vector.extract_strided_slice %328 {offsets = [2, 0], sizes = [1, 512], strides = [1, 1]} : vector<3x512xf32> to vector<1x512xf32>
    %343 = vector.broadcast %341 : vector<3x1xf32> to vector<3x512xf32>
    %344 = vector.broadcast %342 : vector<1x512xf32> to vector<3x512xf32>
    %345 = arith.mulf %343, %344 : vector<3x512xf32>
    %346 = arith.addf %340, %345 : vector<3x512xf32>
    %c0_41 = arith.constant 0 : index
    %c143_42 = arith.constant 143 : index
    %347 = vector.load %arg5[%c0_41, %c143_42] : memref<3x768xf32, #tpu.memory_space<vmem>>, vector<3x512xf32>
    %348 = vector.broadcast %25 : vector<1x512xf32> to vector<3x512xf32>
    %349 = arith.mulf %347, %348 : vector<3x512xf32>
    %350 = vector.extract_strided_slice %224 {offsets = [0, 18], sizes = [3, 1], strides = [1, 1]} : vector<3x27xf32> to vector<3x1xf32>
    %351 = vector.extract_strided_slice %349 {offsets = [0, 0], sizes = [1, 512], strides = [1, 1]} : vector<3x512xf32> to vector<1x512xf32>
    %352 = vector.broadcast %350 : vector<3x1xf32> to vector<3x512xf32>
    %353 = vector.broadcast %351 : vector<1x512xf32> to vector<3x512xf32>
    %354 = arith.mulf %352, %353 : vector<3x512xf32>
    %355 = vector.extract_strided_slice %224 {offsets = [0, 19], sizes = [3, 1], strides = [1, 1]} : vector<3x27xf32> to vector<3x1xf32>
    %356 = vector.extract_strided_slice %349 {offsets = [1, 0], sizes = [1, 512], strides = [1, 1]} : vector<3x512xf32> to vector<1x512xf32>
    %357 = vector.broadcast %355 : vector<3x1xf32> to vector<3x512xf32>
    %358 = vector.broadcast %356 : vector<1x512xf32> to vector<3x512xf32>
    %359 = arith.mulf %357, %358 : vector<3x512xf32>
    %360 = arith.addf %354, %359 : vector<3x512xf32>
    %361 = vector.extract_strided_slice %224 {offsets = [0, 20], sizes = [3, 1], strides = [1, 1]} : vector<3x27xf32> to vector<3x1xf32>
    %362 = vector.extract_strided_slice %349 {offsets = [2, 0], sizes = [1, 512], strides = [1, 1]} : vector<3x512xf32> to vector<1x512xf32>
    %363 = vector.broadcast %361 : vector<3x1xf32> to vector<3x512xf32>
    %364 = vector.broadcast %362 : vector<1x512xf32> to vector<3x512xf32>
    %365 = arith.mulf %363, %364 : vector<3x512xf32>
    %366 = arith.addf %360, %365 : vector<3x512xf32>
    %c0_43 = arith.constant 0 : index
    %c144_44 = arith.constant 144 : index
    %367 = vector.load %arg5[%c0_43, %c144_44] : memref<3x768xf32, #tpu.memory_space<vmem>>, vector<3x512xf32>
    %368 = vector.broadcast %22 : vector<1x512xf32> to vector<3x512xf32>
    %369 = arith.mulf %367, %368 : vector<3x512xf32>
    %370 = vector.extract_strided_slice %224 {offsets = [0, 21], sizes = [3, 1], strides = [1, 1]} : vector<3x27xf32> to vector<3x1xf32>
    %371 = vector.extract_strided_slice %369 {offsets = [0, 0], sizes = [1, 512], strides = [1, 1]} : vector<3x512xf32> to vector<1x512xf32>
    %372 = vector.broadcast %370 : vector<3x1xf32> to vector<3x512xf32>
    %373 = vector.broadcast %371 : vector<1x512xf32> to vector<3x512xf32>
    %374 = arith.mulf %372, %373 : vector<3x512xf32>
    %375 = arith.addf %366, %374 : vector<3x512xf32>
    %376 = vector.extract_strided_slice %224 {offsets = [0, 22], sizes = [3, 1], strides = [1, 1]} : vector<3x27xf32> to vector<3x1xf32>
    %377 = vector.extract_strided_slice %369 {offsets = [1, 0], sizes = [1, 512], strides = [1, 1]} : vector<3x512xf32> to vector<1x512xf32>
    %378 = vector.broadcast %376 : vector<3x1xf32> to vector<3x512xf32>
    %379 = vector.broadcast %377 : vector<1x512xf32> to vector<3x512xf32>
    %380 = arith.mulf %378, %379 : vector<3x512xf32>
    %381 = arith.addf %375, %380 : vector<3x512xf32>
    %382 = vector.extract_strided_slice %224 {offsets = [0, 23], sizes = [3, 1], strides = [1, 1]} : vector<3x27xf32> to vector<3x1xf32>
    %383 = vector.extract_strided_slice %369 {offsets = [2, 0], sizes = [1, 512], strides = [1, 1]} : vector<3x512xf32> to vector<1x512xf32>
    %384 = vector.broadcast %382 : vector<3x1xf32> to vector<3x512xf32>
    %385 = vector.broadcast %383 : vector<1x512xf32> to vector<3x512xf32>
    %386 = arith.mulf %384, %385 : vector<3x512xf32>
    %387 = arith.addf %381, %386 : vector<3x512xf32>
    %c0_45 = arith.constant 0 : index
    %c145_46 = arith.constant 145 : index
    %388 = vector.load %arg5[%c0_45, %c145_46] : memref<3x768xf32, #tpu.memory_space<vmem>>, vector<3x512xf32>
    %389 = vector.broadcast %26 : vector<1x512xf32> to vector<3x512xf32>
    %390 = arith.mulf %388, %389 : vector<3x512xf32>
    %391 = vector.extract_strided_slice %224 {offsets = [0, 24], sizes = [3, 1], strides = [1, 1]} : vector<3x27xf32> to vector<3x1xf32>
    %392 = vector.extract_strided_slice %390 {offsets = [0, 0], sizes = [1, 512], strides = [1, 1]} : vector<3x512xf32> to vector<1x512xf32>
    %393 = vector.broadcast %391 : vector<3x1xf32> to vector<3x512xf32>
    %394 = vector.broadcast %392 : vector<1x512xf32> to vector<3x512xf32>
    %395 = arith.mulf %393, %394 : vector<3x512xf32>
    %396 = arith.addf %387, %395 : vector<3x512xf32>
    %397 = vector.extract_strided_slice %224 {offsets = [0, 25], sizes = [3, 1], strides = [1, 1]} : vector<3x27xf32> to vector<3x1xf32>
    %398 = vector.extract_strided_slice %390 {offsets = [1, 0], sizes = [1, 512], strides = [1, 1]} : vector<3x512xf32> to vector<1x512xf32>
    %399 = vector.broadcast %397 : vector<3x1xf32> to vector<3x512xf32>
    %400 = vector.broadcast %398 : vector<1x512xf32> to vector<3x512xf32>
    %401 = arith.mulf %399, %400 : vector<3x512xf32>
    %402 = arith.addf %396, %401 : vector<3x512xf32>
    %403 = vector.extract_strided_slice %224 {offsets = [0, 26], sizes = [3, 1], strides = [1, 1]} : vector<3x27xf32> to vector<3x1xf32>
    %404 = vector.extract_strided_slice %390 {offsets = [2, 0], sizes = [1, 512], strides = [1, 1]} : vector<3x512xf32> to vector<1x512xf32>
    %405 = vector.broadcast %403 : vector<3x1xf32> to vector<3x512xf32>
    %406 = vector.broadcast %404 : vector<1x512xf32> to vector<3x512xf32>
    %407 = arith.mulf %405, %406 : vector<3x512xf32>
    %408 = arith.addf %402, %407 : vector<3x512xf32>
    %409 = arith.addf %286, %346 : vector<3x512xf32>
    %410 = arith.addf %409, %408 : vector<3x512xf32>
    %c0_47 = arith.constant 0 : index
    %c128_48 = arith.constant 128 : index
    %411 = vector.load %arg4[%c0_47, %c128_48] : memref<3x768xf32, #tpu.memory_space<vmem>>, vector<3x512xf32>
    tpu.vector_store %arg4[%c0_47, %c128_48], %410 {strides = array<i32>} : memref<3x768xf32, #tpu.memory_space<vmem>>, vector<3x512xf32>,
    %c2 = arith.constant 2 : index
    %c0_49 = arith.constant 0 : index
    %c0_50 = arith.constant 0 : index
    %412 = vector.load %arg1[%c2, %c0_49, %c0_50] : memref<3x3x27xf32, #tpu.memory_space<vmem>>, vector<1x3x27xf32>
    %413 = vector.shape_cast %412 : vector<1x3x27xf32> to vector<3x27xf32>
    %c0_51 = arith.constant 0 : index
    %c111_52 = arith.constant 111 : index
    %414 = vector.load %arg4[%c0_51, %c111_52] : memref<3x768xf32, #tpu.memory_space<vmem>>, vector<3x512xf32>
    %415 = vector.broadcast %23 : vector<1x512xf32> to vector<3x512xf32>
    %416 = arith.mulf %414, %415 : vector<3x512xf32>
    %417 = vector.extract_strided_slice %413 {offsets = [0, 0], sizes = [3, 1], strides = [1, 1]} : vector<3x27xf32> to vector<3x1xf32>
    %418 = vector.extract_strided_slice %416 {offsets = [0, 0], sizes = [1, 512], strides = [1, 1]} : vector<3x512xf32> to vector<1x512xf32>
    %419 = vector.broadcast %417 : vector<3x1xf32> to vector<3x512xf32>
    %420 = vector.broadcast %418 : vector<1x512xf32> to vector<3x512xf32>
    %421 = arith.mulf %419, %420 : vector<3x512xf32>
    %422 = vector.extract_strided_slice %413 {offsets = [0, 1], sizes = [3, 1], strides = [1, 1]} : vector<3x27xf32> to vector<3x1xf32>
    %423 = vector.extract_strided_slice %416 {offsets = [1, 0], sizes = [1, 512], strides = [1, 1]} : vector<3x512xf32> to vector<1x512xf32>
    %424 = vector.broadcast %422 : vector<3x1xf32> to vector<3x512xf32>
    %425 = vector.broadcast %423 : vector<1x512xf32> to vector<3x512xf32>
    %426 = arith.mulf %424, %425 : vector<3x512xf32>
    %427 = arith.addf %421, %426 : vector<3x512xf32>
    %428 = vector.extract_strided_slice %413 {offsets = [0, 2], sizes = [3, 1], strides = [1, 1]} : vector<3x27xf32> to vector<3x1xf32>
    %429 = vector.extract_strided_slice %416 {offsets = [2, 0], sizes = [1, 512], strides = [1, 1]} : vector<3x512xf32> to vector<1x512xf32>
    %430 = vector.broadcast %428 : vector<3x1xf32> to vector<3x512xf32>
    %431 = vector.broadcast %429 : vector<1x512xf32> to vector<3x512xf32>
    %432 = arith.mulf %430, %431 : vector<3x512xf32>
    %433 = arith.addf %427, %432 : vector<3x512xf32>
    %c0_53 = arith.constant 0 : index
    %c112_54 = arith.constant 112 : index
    %434 = vector.load %arg4[%c0_53, %c112_54] : memref<3x768xf32, #tpu.memory_space<vmem>>, vector<3x512xf32>
    %435 = vector.broadcast %18 : vector<1x512xf32> to vector<3x512xf32>
    %436 = arith.mulf %434, %435 : vector<3x512xf32>
    %437 = vector.extract_strided_slice %413 {offsets = [0, 3], sizes = [3, 1], strides = [1, 1]} : vector<3x27xf32> to vector<3x1xf32>
    %438 = vector.extract_strided_slice %436 {offsets = [0, 0], sizes = [1, 512], strides = [1, 1]} : vector<3x512xf32> to vector<1x512xf32>
    %439 = vector.broadcast %437 : vector<3x1xf32> to vector<3x512xf32>
    %440 = vector.broadcast %438 : vector<1x512xf32> to vector<3x512xf32>
    %441 = arith.mulf %439, %440 : vector<3x512xf32>
    %442 = arith.addf %433, %441 : vector<3x512xf32>
    %443 = vector.extract_strided_slice %413 {offsets = [0, 4], sizes = [3, 1], strides = [1, 1]} : vector<3x27xf32> to vector<3x1xf32>
    %444 = vector.extract_strided_slice %436 {offsets = [1, 0], sizes = [1, 512], strides = [1, 1]} : vector<3x512xf32> to vector<1x512xf32>
    %445 = vector.broadcast %443 : vector<3x1xf32> to vector<3x512xf32>
    %446 = vector.broadcast %444 : vector<1x512xf32> to vector<3x512xf32>
    %447 = arith.mulf %445, %446 : vector<3x512xf32>
    %448 = arith.addf %442, %447 : vector<3x512xf32>
    %449 = vector.extract_strided_slice %413 {offsets = [0, 5], sizes = [3, 1], strides = [1, 1]} : vector<3x27xf32> to vector<3x1xf32>
    %450 = vector.extract_strided_slice %436 {offsets = [2, 0], sizes = [1, 512], strides = [1, 1]} : vector<3x512xf32> to vector<1x512xf32>
    %451 = vector.broadcast %449 : vector<3x1xf32> to vector<3x512xf32>
    %452 = vector.broadcast %450 : vector<1x512xf32> to vector<3x512xf32>
    %453 = arith.mulf %451, %452 : vector<3x512xf32>
    %454 = arith.addf %448, %453 : vector<3x512xf32>
    %c0_55 = arith.constant 0 : index
    %c113_56 = arith.constant 113 : index
    %455 = vector.load %arg4[%c0_55, %c113_56] : memref<3x768xf32, #tpu.memory_space<vmem>>, vector<3x512xf32>
    %456 = vector.broadcast %24 : vector<1x512xf32> to vector<3x512xf32>
    %457 = arith.mulf %455, %456 : vector<3x512xf32>
    %458 = vector.extract_strided_slice %413 {offsets = [0, 6], sizes = [3, 1], strides = [1, 1]} : vector<3x27xf32> to vector<3x1xf32>
    %459 = vector.extract_strided_slice %457 {offsets = [0, 0], sizes = [1, 512], strides = [1, 1]} : vector<3x512xf32> to vector<1x512xf32>
    %460 = vector.broadcast %458 : vector<3x1xf32> to vector<3x512xf32>
    %461 = vector.broadcast %459 : vector<1x512xf32> to vector<3x512xf32>
    %462 = arith.mulf %460, %461 : vector<3x512xf32>
    %463 = arith.addf %454, %462 : vector<3x512xf32>
    %464 = vector.extract_strided_slice %413 {offsets = [0, 7], sizes = [3, 1], strides = [1, 1]} : vector<3x27xf32> to vector<3x1xf32>
    %465 = vector.extract_strided_slice %457 {offsets = [1, 0], sizes = [1, 512], strides = [1, 1]} : vector<3x512xf32> to vector<1x512xf32>
    %466 = vector.broadcast %464 : vector<3x1xf32> to vector<3x512xf32>
    %467 = vector.broadcast %465 : vector<1x512xf32> to vector<3x512xf32>
    %468 = arith.mulf %466, %467 : vector<3x512xf32>
    %469 = arith.addf %463, %468 : vector<3x512xf32>
    %470 = vector.extract_strided_slice %413 {offsets = [0, 8], sizes = [3, 1], strides = [1, 1]} : vector<3x27xf32> to vector<3x1xf32>
    %471 = vector.extract_strided_slice %457 {offsets = [2, 0], sizes = [1, 512], strides = [1, 1]} : vector<3x512xf32> to vector<1x512xf32>
    %472 = vector.broadcast %470 : vector<3x1xf32> to vector<3x512xf32>
    %473 = vector.broadcast %471 : vector<1x512xf32> to vector<3x512xf32>
    %474 = arith.mulf %472, %473 : vector<3x512xf32>
    %475 = arith.addf %469, %474 : vector<3x512xf32>
    %c0_57 = arith.constant 0 : index
    %c127_58 = arith.constant 127 : index
    %476 = vector.load %arg4[%c0_57, %c127_58] : memref<3x768xf32, #tpu.memory_space<vmem>>, vector<3x512xf32>
    %477 = vector.broadcast %10 : vector<1x512xf32> to vector<3x512xf32>
    %478 = arith.mulf %476, %477 : vector<3x512xf32>
    %479 = vector.extract_strided_slice %413 {offsets = [0, 9], sizes = [3, 1], strides = [1, 1]} : vector<3x27xf32> to vector<3x1xf32>
    %480 = vector.extract_strided_slice %478 {offsets = [0, 0], sizes = [1, 512], strides = [1, 1]} : vector<3x512xf32> to vector<1x512xf32>
    %481 = vector.broadcast %479 : vector<3x1xf32> to vector<3x512xf32>
    %482 = vector.broadcast %480 : vector<1x512xf32> to vector<3x512xf32>
    %483 = arith.mulf %481, %482 : vector<3x512xf32>
    %484 = vector.extract_strided_slice %413 {offsets = [0, 10], sizes = [3, 1], strides = [1, 1]} : vector<3x27xf32> to vector<3x1xf32>
    %485 = vector.extract_strided_slice %478 {offsets = [1, 0], sizes = [1, 512], strides = [1, 1]} : vector<3x512xf32> to vector<1x512xf32>
    %486 = vector.broadcast %484 : vector<3x1xf32> to vector<3x512xf32>
    %487 = vector.broadcast %485 : vector<1x512xf32> to vector<3x512xf32>
    %488 = arith.mulf %486, %487 : vector<3x512xf32>
    %489 = arith.addf %483, %488 : vector<3x512xf32>
    %490 = vector.extract_strided_slice %413 {offsets = [0, 11], sizes = [3, 1], strides = [1, 1]} : vector<3x27xf32> to vector<3x1xf32>
    %491 = vector.extract_strided_slice %478 {offsets = [2, 0], sizes = [1, 512], strides = [1, 1]} : vector<3x512xf32> to vector<1x512xf32>
    %492 = vector.broadcast %490 : vector<3x1xf32> to vector<3x512xf32>
    %493 = vector.broadcast %491 : vector<1x512xf32> to vector<3x512xf32>
    %494 = arith.mulf %492, %493 : vector<3x512xf32>
    %495 = arith.addf %489, %494 : vector<3x512xf32>
    %c0_59 = arith.constant 0 : index
    %c128_60 = arith.constant 128 : index
    %496 = vector.load %arg4[%c0_59, %c128_60] : memref<3x768xf32, #tpu.memory_space<vmem>>, vector<3x512xf32>
    %497 = vector.extract_strided_slice %413 {offsets = [0, 12], sizes = [3, 1], strides = [1, 1]} : vector<3x27xf32> to vector<3x1xf32>
    %498 = vector.extract_strided_slice %496 {offsets = [0, 0], sizes = [1, 512], strides = [1, 1]} : vector<3x512xf32> to vector<1x512xf32>
    %499 = vector.broadcast %497 : vector<3x1xf32> to vector<3x512xf32>
    %500 = vector.broadcast %498 : vector<1x512xf32> to vector<3x512xf32>
    %501 = arith.mulf %499, %500 : vector<3x512xf32>
    %502 = arith.addf %495, %501 : vector<3x512xf32>
    %503 = vector.extract_strided_slice %413 {offsets = [0, 13], sizes = [3, 1], strides = [1, 1]} : vector<3x27xf32> to vector<3x1xf32>
    %504 = vector.extract_strided_slice %496 {offsets = [1, 0], sizes = [1, 512], strides = [1, 1]} : vector<3x512xf32> to vector<1x512xf32>
    %505 = vector.broadcast %503 : vector<3x1xf32> to vector<3x512xf32>
    %506 = vector.broadcast %504 : vector<1x512xf32> to vector<3x512xf32>
    %507 = arith.mulf %505, %506 : vector<3x512xf32>
    %508 = arith.addf %502, %507 : vector<3x512xf32>
    %509 = vector.extract_strided_slice %413 {offsets = [0, 14], sizes = [3, 1], strides = [1, 1]} : vector<3x27xf32> to vector<3x1xf32>
    %510 = vector.extract_strided_slice %496 {offsets = [2, 0], sizes = [1, 512], strides = [1, 1]} : vector<3x512xf32> to vector<1x512xf32>
    %511 = vector.broadcast %509 : vector<3x1xf32> to vector<3x512xf32>
    %512 = vector.broadcast %510 : vector<1x512xf32> to vector<3x512xf32>
    %513 = arith.mulf %511, %512 : vector<3x512xf32>
    %514 = arith.addf %508, %513 : vector<3x512xf32>
    %c0_61 = arith.constant 0 : index
    %c129_62 = arith.constant 129 : index
    %515 = vector.load %arg4[%c0_61, %c129_62] : memref<3x768xf32, #tpu.memory_space<vmem>>, vector<3x512xf32>
    %516 = vector.broadcast %14 : vector<1x512xf32> to vector<3x512xf32>
    %517 = arith.mulf %515, %516 : vector<3x512xf32>
    %518 = vector.extract_strided_slice %413 {offsets = [0, 15], sizes = [3, 1], strides = [1, 1]} : vector<3x27xf32> to vector<3x1xf32>
    %519 = vector.extract_strided_slice %517 {offsets = [0, 0], sizes = [1, 512], strides = [1, 1]} : vector<3x512xf32> to vector<1x512xf32>
    %520 = vector.broadcast %518 : vector<3x1xf32> to vector<3x512xf32>
    %521 = vector.broadcast %519 : vector<1x512xf32> to vector<3x512xf32>
    %522 = arith.mulf %520, %521 : vector<3x512xf32>
    %523 = arith.addf %514, %522 : vector<3x512xf32>
    %524 = vector.extract_strided_slice %413 {offsets = [0, 16], sizes = [3, 1], strides = [1, 1]} : vector<3x27xf32> to vector<3x1xf32>
    %525 = vector.extract_strided_slice %517 {offsets = [1, 0], sizes = [1, 512], strides = [1, 1]} : vector<3x512xf32> to vector<1x512xf32>
    %526 = vector.broadcast %524 : vector<3x1xf32> to vector<3x512xf32>
    %527 = vector.broadcast %525 : vector<1x512xf32> to vector<3x512xf32>
    %528 = arith.mulf %526, %527 : vector<3x512xf32>
    %529 = arith.addf %523, %528 : vector<3x512xf32>
    %530 = vector.extract_strided_slice %413 {offsets = [0, 17], sizes = [3, 1], strides = [1, 1]} : vector<3x27xf32> to vector<3x1xf32>
    %531 = vector.extract_strided_slice %517 {offsets = [2, 0], sizes = [1, 512], strides = [1, 1]} : vector<3x512xf32> to vector<1x512xf32>
    %532 = vector.broadcast %530 : vector<3x1xf32> to vector<3x512xf32>
    %533 = vector.broadcast %531 : vector<1x512xf32> to vector<3x512xf32>
    %534 = arith.mulf %532, %533 : vector<3x512xf32>
    %535 = arith.addf %529, %534 : vector<3x512xf32>
    %c0_63 = arith.constant 0 : index
    %c143_64 = arith.constant 143 : index
    %536 = vector.load %arg4[%c0_63, %c143_64] : memref<3x768xf32, #tpu.memory_space<vmem>>, vector<3x512xf32>
    %537 = vector.broadcast %25 : vector<1x512xf32> to vector<3x512xf32>
    %538 = arith.mulf %536, %537 : vector<3x512xf32>
    %539 = vector.extract_strided_slice %413 {offsets = [0, 18], sizes = [3, 1], strides = [1, 1]} : vector<3x27xf32> to vector<3x1xf32>
    %540 = vector.extract_strided_slice %538 {offsets = [0, 0], sizes = [1, 512], strides = [1, 1]} : vector<3x512xf32> to vector<1x512xf32>
    %541 = vector.broadcast %539 : vector<3x1xf32> to vector<3x512xf32>
    %542 = vector.broadcast %540 : vector<1x512xf32> to vector<3x512xf32>
    %543 = arith.mulf %541, %542 : vector<3x512xf32>
    %544 = vector.extract_strided_slice %413 {offsets = [0, 19], sizes = [3, 1], strides = [1, 1]} : vector<3x27xf32> to vector<3x1xf32>
    %545 = vector.extract_strided_slice %538 {offsets = [1, 0], sizes = [1, 512], strides = [1, 1]} : vector<3x512xf32> to vector<1x512xf32>
    %546 = vector.broadcast %544 : vector<3x1xf32> to vector<3x512xf32>
    %547 = vector.broadcast %545 : vector<1x512xf32> to vector<3x512xf32>
    %548 = arith.mulf %546, %547 : vector<3x512xf32>
    %549 = arith.addf %543, %548 : vector<3x512xf32>
    %550 = vector.extract_strided_slice %413 {offsets = [0, 20], sizes = [3, 1], strides = [1, 1]} : vector<3x27xf32> to vector<3x1xf32>
    %551 = vector.extract_strided_slice %538 {offsets = [2, 0], sizes = [1, 512], strides = [1, 1]} : vector<3x512xf32> to vector<1x512xf32>
    %552 = vector.broadcast %550 : vector<3x1xf32> to vector<3x512xf32>
    %553 = vector.broadcast %551 : vector<1x512xf32> to vector<3x512xf32>
    %554 = arith.mulf %552, %553 : vector<3x512xf32>
    %555 = arith.addf %549, %554 : vector<3x512xf32>
    %c0_65 = arith.constant 0 : index
    %c144_66 = arith.constant 144 : index
    %556 = vector.load %arg4[%c0_65, %c144_66] : memref<3x768xf32, #tpu.memory_space<vmem>>, vector<3x512xf32>
    %557 = vector.broadcast %22 : vector<1x512xf32> to vector<3x512xf32>
    %558 = arith.mulf %556, %557 : vector<3x512xf32>
    %559 = vector.extract_strided_slice %413 {offsets = [0, 21], sizes = [3, 1], strides = [1, 1]} : vector<3x27xf32> to vector<3x1xf32>
    %560 = vector.extract_strided_slice %558 {offsets = [0, 0], sizes = [1, 512], strides = [1, 1]} : vector<3x512xf32> to vector<1x512xf32>
    %561 = vector.broadcast %559 : vector<3x1xf32> to vector<3x512xf32>
    %562 = vector.broadcast %560 : vector<1x512xf32> to vector<3x512xf32>
    %563 = arith.mulf %561, %562 : vector<3x512xf32>
    %564 = arith.addf %555, %563 : vector<3x512xf32>
    %565 = vector.extract_strided_slice %413 {offsets = [0, 22], sizes = [3, 1], strides = [1, 1]} : vector<3x27xf32> to vector<3x1xf32>
    %566 = vector.extract_strided_slice %558 {offsets = [1, 0], sizes = [1, 512], strides = [1, 1]} : vector<3x512xf32> to vector<1x512xf32>
    %567 = vector.broadcast %565 : vector<3x1xf32> to vector<3x512xf32>
    %568 = vector.broadcast %566 : vector<1x512xf32> to vector<3x512xf32>
    %569 = arith.mulf %567, %568 : vector<3x512xf32>
    %570 = arith.addf %564, %569 : vector<3x512xf32>
    %571 = vector.extract_strided_slice %413 {offsets = [0, 23], sizes = [3, 1], strides = [1, 1]} : vector<3x27xf32> to vector<3x1xf32>
    %572 = vector.extract_strided_slice %558 {offsets = [2, 0], sizes = [1, 512], strides = [1, 1]} : vector<3x512xf32> to vector<1x512xf32>
    %573 = vector.broadcast %571 : vector<3x1xf32> to vector<3x512xf32>
    %574 = vector.broadcast %572 : vector<1x512xf32> to vector<3x512xf32>
    %575 = arith.mulf %573, %574 : vector<3x512xf32>
    %576 = arith.addf %570, %575 : vector<3x512xf32>
    %c0_67 = arith.constant 0 : index
    %c145_68 = arith.constant 145 : index
    %577 = vector.load %arg4[%c0_67, %c145_68] : memref<3x768xf32, #tpu.memory_space<vmem>>, vector<3x512xf32>
    %578 = vector.broadcast %26 : vector<1x512xf32> to vector<3x512xf32>
    %579 = arith.mulf %577, %578 : vector<3x512xf32>
    %580 = vector.extract_strided_slice %413 {offsets = [0, 24], sizes = [3, 1], strides = [1, 1]} : vector<3x27xf32> to vector<3x1xf32>
    %581 = vector.extract_strided_slice %579 {offsets = [0, 0], sizes = [1, 512], strides = [1, 1]} : vector<3x512xf32> to vector<1x512xf32>
    %582 = vector.broadcast %580 : vector<3x1xf32> to vector<3x512xf32>
    %583 = vector.broadcast %581 : vector<1x512xf32> to vector<3x512xf32>
    %584 = arith.mulf %582, %583 : vector<3x512xf32>
    %585 = arith.addf %576, %584 : vector<3x512xf32>
    %586 = vector.extract_strided_slice %413 {offsets = [0, 25], sizes = [3, 1], strides = [1, 1]} : vector<3x27xf32> to vector<3x1xf32>
    %587 = vector.extract_strided_slice %579 {offsets = [1, 0], sizes = [1, 512], strides = [1, 1]} : vector<3x512xf32> to vector<1x512xf32>
    %588 = vector.broadcast %586 : vector<3x1xf32> to vector<3x512xf32>
    %589 = vector.broadcast %587 : vector<1x512xf32> to vector<3x512xf32>
    %590 = arith.mulf %588, %589 : vector<3x512xf32>
    %591 = arith.addf %585, %590 : vector<3x512xf32>
    %592 = vector.extract_strided_slice %413 {offsets = [0, 26], sizes = [3, 1], strides = [1, 1]} : vector<3x27xf32> to vector<3x1xf32>
    %593 = vector.extract_strided_slice %579 {offsets = [2, 0], sizes = [1, 512], strides = [1, 1]} : vector<3x512xf32> to vector<1x512xf32>
    %594 = vector.broadcast %592 : vector<3x1xf32> to vector<3x512xf32>
    %595 = vector.broadcast %593 : vector<1x512xf32> to vector<3x512xf32>
    %596 = arith.mulf %594, %595 : vector<3x512xf32>
    %597 = arith.addf %591, %596 : vector<3x512xf32>
    %598 = arith.addf %475, %535 : vector<3x512xf32>
    %599 = arith.addf %598, %597 : vector<3x512xf32>
    %c0_69 = arith.constant 0 : index
    %c0_70 = arith.constant 0 : index
    %600 = vector.load %arg3[%c0_69, %c0_70] : memref<3x512xf32, #tpu.memory_space<vmem>>, vector<3x512xf32>
    tpu.vector_store %arg3[%c0_69, %c0_70], %599 {strides = array<i32>} : memref<3x512xf32, #tpu.memory_space<vmem>>, vector<3x512xf32>,
    return
  }
  func.func @transform_0(%arg0: i32) -> (i32, i32, i32) {
    %c0_i32 = arith.constant 0 : i32
    %c0_i32_0 = arith.constant 0 : i32
    %c0_i32_1 = arith.constant 0 : i32
    %c0_i32_2 = arith.constant 0 : i32
    return %c0_i32, %c0_i32_0, %c0_i32_1 : i32, i32, i32
  }
  func.func @transform_1(%arg0: i32) -> (i32, i32) {
    %c0_i32 = arith.constant 0 : i32
    %c0_i32_0 = arith.constant 0 : i32
    return %c0_i32, %arg0 : i32, i32
  }
  func.func @transform_2(%arg0: i32) -> (i32, i32) {
    %c0_i32 = arith.constant 0 : i32
    %c0_i32_0 = arith.constant 0 : i32
    return %c0_i32, %arg0 : i32, i32
  }
}

</mosaic_0001>

<llo_original>
// kernel: net_forward.1
$region0: #{net_forward.1}
  #allocation0 [shape = 'u32[]', space=smem, size = 0x4, offset = 0x4, fixed_abs, tag = 'smem constant byte address 0x4 - core index']
  #allocation1 [shape = 'u32[144,128]{1,0:T(1,128)}', space=vmem, size = 0x12000, scoped, tag = 'internal scratch']
  #allocation2 [shape = 'f32[3,768]{1,0:T(4,128)}', space=vmem, size = 0x3000, scoped, tag = 'scratch operand']
  #allocation3 [shape = 'f32[3,768]{1,0:T(4,128)}', space=vmem, size = 0x3000, scoped, tag = 'scratch operand']
  %s0 = inlined_call_operand.vmem [shape: f32[3,3,27], index: 0, kind: input, shape index: {}]
  %s1 = inlined_call_operand.vmem [shape: f32[3,512], index: 1, kind: input, shape index: {}]
  %s2 = inlined_call_operand.vmem [shape: f32[3,512], index: 2, kind: output, shape index: {}]
  %s3 = sld [smem:[#allocation0]]
  $region18: #{net_forward.1} parent=0
    _
  %s5 = ssub.s32 1, %s3
  %s6 = scalar_select 0, %s5, %s3
  // Predicated region
  $region2: #{net_forward.1} parent=0 // pred_check
    _
  $region3: #{net_forward.1} parent=0 // pred_check_branch
    %8 = sbr.rel (0) target = $region5
  $region4: #{net_forward.1} parent=0 // pred_region
    _
  $region5: #{net_forward.1} parent=0 // pred_fallthru
    _
  // Predicated region
  $region6: #{net_forward.1} parent=0 // pred_check
    _
  $region7: #{net_forward.1} parent=0 // pred_check_branch
    %10 = sbr.rel (0) target = $region9
  $region8: #{net_forward.1} parent=0 // pred_region
    _
  $region9: #{net_forward.1} parent=0 // pred_fallthru
    _
  %v11 = vlaneseq
  %v12 = vand.u32 %v11, 127
  %v13 = vadd.s32 %v12, 128
  %v14 = vadd.s32 %v12, 256
  %v15 = vadd.s32 %v12, 384
  %v16 = vand.u32 %v12, 15
  %v17 = vand.u32 %v13, 15
  %v18 = vand.u32 %v14, 15
  %v19 = vand.u32 %v15, 15
  %v20 = vand.u32 %v12, 255
  %v21 = vand.u32 %v13, 255
  %v22 = vand.u32 %v14, 255
  %v23 = vand.u32 %v15, 255
  %v24 = vshra.s32 %v20, 4
  %v25 = vshra.s32 %v21, 4
  %v26 = vshra.s32 %v22, 4
  %v27 = vshra.s32 %v23, 4
  %vm28 = vcmp.ne.s32.totalorder %v16, 0
  %vm29 = vcmp.ne.s32.totalorder %v17, 0
  %vm30 = vcmp.ne.s32.totalorder %v18, 0
  %vm31 = vcmp.ne.s32.totalorder %v19, 0
  %v32 = vsel %vm28, 1, 0
  %v33 = vsel %vm29, 1, 0
  %v34 = vsel %vm30, 1, 0
  %v35 = vsel %vm31, 1, 0
  %v36 = vcvt.s32.f32 %v32
  %v37 = vcvt.s32.f32 %v33
  %v38 = vcvt.s32.f32 %v34
  %v39 = vcvt.s32.f32 %v35
  %vm40 = vcmp.ne.s32.totalorder %v16, 15
  %vm41 = vcmp.ne.s32.totalorder %v17, 15
  %vm42 = vcmp.ne.s32.totalorder %v18, 15
  %vm43 = vcmp.ne.s32.totalorder %v19, 15
  %v44 = vsel %vm40, 1, 0
  %v45 = vsel %vm41, 1, 0
  %v46 = vsel %vm42, 1, 0
  %v47 = vsel %vm43, 1, 0
  %v48 = vcvt.s32.f32 %v44
  %v49 = vcvt.s32.f32 %v45
  %v50 = vcvt.s32.f32 %v46
  %v51 = vcvt.s32.f32 %v47
  %vm52 = vcmp.ne.s32.totalorder %v24, 0
  %vm53 = vcmp.ne.s32.totalorder %v25, 0
  %vm54 = vcmp.ne.s32.totalorder %v26, 0
  %vm55 = vcmp.ne.s32.totalorder %v27, 0
  %v56 = vsel %vm52, 1, 0
  %v57 = vsel %vm53, 1, 0
  %v58 = vsel %vm54, 1, 0
  %v59 = vsel %vm55, 1, 0
  %v60 = vcvt.s32.f32 %v56
  %v61 = vcvt.s32.f32 %v57
  %v62 = vcvt.s32.f32 %v58
  %v63 = vcvt.s32.f32 %v59
  %vm64 = vcmp.ne.s32.totalorder %v24, 15
  %vm65 = vcmp.ne.s32.totalorder %v25, 15
  %vm66 = vcmp.ne.s32.totalorder %v26, 15
  %vm67 = vcmp.ne.s32.totalorder %v27, 15
  %v68 = vsel %vm64, 1, 0
  %v69 = vsel %vm65, 1, 0
  %v70 = vsel %vm66, 1, 0
  %v71 = vsel %vm67, 1, 0
  %v72 = vcvt.s32.f32 %v68
  %v73 = vcvt.s32.f32 %v69
  %v74 = vcvt.s32.f32 %v70
  %v75 = vcvt.s32.f32 %v71
  %v76 = vmul.f32 %v60, %v36
  %v77 = vmul.f32 %v61, %v37
  %v78 = vmul.f32 %v62, %v38
  %v79 = vmul.f32 %v63, %v39
  %v80 = vmul.f32 %v60, %v48
  %v81 = vmul.f32 %v61, %v49
  %v82 = vmul.f32 %v62, %v50
  %v83 = vmul.f32 %v63, %v51
  %v84 = vmul.f32 %v72, %v36
  %v85 = vmul.f32 %v73, %v37
  %v86 = vmul.f32 %v74, %v38
  %v87 = vmul.f32 %v75, %v39
  %v88 = vmul.f32 %v72, %v48
  %v89 = vmul.f32 %v73, %v49
  %v90 = vmul.f32 %v74, %v50
  %v91 = vmul.f32 %v75, %v51
  %92 = vst [vmem:[#allocation2] sm:$0x7] 0.0
  %93 = vst [vmem:[#allocation2 + $0x14] sm:$0x7] 0.0
  %94 = vst [vmem:[#allocation3] sm:$0x7] 0.0
  %95 = vst [vmem:[#allocation3 + $0x14] sm:$0x7] 0.0
  %v96 = vld [vmem:[%s1] sm:$0x77]
  %v97 = vld [vmem:[%s1 + $0x8] sm:$0x77]
  %98 = vst [vmem:[#allocation2 + $0x4] sm:$0x77] %v96
  %99 = vst [vmem:[#allocation2 + $0xc] sm:$0x77] %v97
  %v100 = vld [vmem:[%s0] sm:$0x7]
  %v101 = vld [vmem:[#allocation2] sm:$0x77]
  %v102 = vld [vmem:[#allocation2 + $0x8] sm:$0x77]
  %v103 = vld [vmem:[#allocation2 + $0x10] sm:$0x7]
  %v108 = vcombine.low %v76, %v77
  %v109 = vcombine.low %v78, %v79
  %110 = vrot.lane.b32.xlu0 %v108, 111
  %v111 = vpop.permute.xlu0 %110
  %112 = vrot.lane.b32.xlu0 %v109, 111
  %v113 = vpop.permute.xlu0 %112
  %v114 = vrot.slane %v111, 4
  %v115 = vrot.slane %v113, 4
  %vm116 = vcmask 908288
  %v117 = vsel %vm116, %v114, %v111
  %vm118 = vcmask 1043456
  %v119 = vsel %vm118, %v114, %v115
  %v120 = vsel %vm116, %v119, %v113
  %v124 = vmul.f32 %v101, %v117
  %v125 = vmul.f32 %v102, %v120
  %v126 = vmul.f32 %v103, %v115
  %128 = vset.pattern.permute.xlu0 0
  %129 = vperm.xlu0 %128, %v100
  %v130 = vpop.permute.xlu0 %129
  %v135 = vlaneseq
  %v136 = vshrl.u32 %v135, 7
  %v137 = vsub.s32 0, %v136
  %v138 = vrot.slane %v124, %v137
  %v139 = vlaneseq
  %v140 = vshrl.u32 %v139, 7
  %v141 = vsub.s32 4, %v140
  %v142 = vrot.slane %v124, %v141
  %v143 = vlaneseq
  %v144 = vshrl.u32 %v143, 7
  %v145 = vsub.s32 0, %v144
  %v146 = vrot.slane %v125, %v145
  %v147 = vlaneseq
  %v148 = vshrl.u32 %v147, 7
  %v149 = vsub.s32 4, %v148
  %v150 = vrot.slane %v125, %v149
  %v151 = vlaneseq
  %v152 = vshrl.u32 %v151, 7
  %v153 = vsub.s32 0, %v152
  %v154 = vrot.slane %v126, %v153
  %v160 = vlaneseq
  %v161 = vshrl.u32 %v160, 7
  %v162 = vsub.s32 0, %v161
  %v163 = vrot.slane %v138, %v162
  %v164 = vlaneseq
  %v165 = vshrl.u32 %v164, 7
  %v166 = vsub.s32 0, %v165
  %v167 = vrot.slane %v142, %v166
  %v168 = vlaneseq
  %v169 = vshrl.u32 %v168, 7
  %v170 = vsub.s32 0, %v169
  %v171 = vrot.slane %v146, %v170
  %v172 = vlaneseq
  %v173 = vshrl.u32 %v172, 7
  %v174 = vsub.s32 0, %v173
  %v175 = vrot.slane %v150, %v174
  %v176 = vlaneseq
  %v177 = vshrl.u32 %v176, 7
  %v178 = vsub.s32 0, %v177
  %v179 = vrot.slane %v154, %v178
  %v180 = vmul.f32 %v130, %v163
  %v181 = vmul.f32 %v130, %v167
  %v182 = vmul.f32 %v130, %v171
  %v183 = vmul.f32 %v130, %v175
  %v184 = vmul.f32 %v130, %v179
  %185 = vset.pattern.permute.xlu0 1
  %186 = vperm.xlu0 %185, %v100
  %v187 = vpop.permute.xlu0 %186
  %v189 = vlaneseq
  %v190 = vshrl.u32 %v189, 7
  %v191 = vsub.s32 1, %v190
  %v192 = vrot.slane %v124, %v191
  %v193 = vlaneseq
  %v194 = vshrl.u32 %v193, 7
  %v195 = vsub.s32 5, %v194
  %v196 = vrot.slane %v124, %v195
  %v197 = vlaneseq
  %v198 = vshrl.u32 %v197, 7
  %v199 = vsub.s32 1, %v198
  %v200 = vrot.slane %v125, %v199
  %v201 = vlaneseq
  %v202 = vshrl.u32 %v201, 7
  %v203 = vsub.s32 5, %v202
  %v204 = vrot.slane %v125, %v203
  %v205 = vlaneseq
  %v206 = vshrl.u32 %v205, 7
  %v207 = vsub.s32 1, %v206
  %v208 = vrot.slane %v126, %v207
  %v214 = vlaneseq
  %v215 = vshrl.u32 %v214, 7
  %v216 = vsub.s32 1, %v215
  %v217 = vrot.slane %v192, %v216
  %v218 = vlaneseq
  %v219 = vshrl.u32 %v218, 7
  %v220 = vsub.s32 1, %v219
  %v221 = vrot.slane %v196, %v220
  %v222 = vlaneseq
  %v223 = vshrl.u32 %v222, 7
  %v224 = vsub.s32 1, %v223
  %v225 = vrot.slane %v200, %v224
  %v226 = vlaneseq
  %v227 = vshrl.u32 %v226, 7
  %v228 = vsub.s32 1, %v227
  %v229 = vrot.slane %v204, %v228
  %v230 = vlaneseq
  %v231 = vshrl.u32 %v230, 7
  %v232 = vsub.s32 1, %v231
  %v233 = vrot.slane %v208, %v232
  %v234 = vmul.f32 %v187, %v217
  %v235 = vmul.f32 %v187, %v221
  %v236 = vmul.f32 %v187, %v225
  %v237 = vmul.f32 %v187, %v229
  %v238 = vmul.f32 %v187, %v233
  %v239 = vadd.f32 %v180, %v234
  %v240 = vadd.f32 %v181, %v235
  %v241 = vadd.f32 %v182, %v236
  %v242 = vadd.f32 %v183, %v237
  %v243 = vadd.f32 %v184, %v238
  %244 = vset.pattern.permute.xlu0 2
  %245 = vperm.xlu0 %244, %v100
  %v246 = vpop.permute.xlu0 %245
  %v248 = vlaneseq
  %v249 = vshrl.u32 %v248, 7
  %v250 = vsub.s32 2, %v249
  %v251 = vrot.slane %v124, %v250
  %v252 = vlaneseq
  %v253 = vshrl.u32 %v252, 7
  %v254 = vsub.s32 6, %v253
  %v255 = vrot.slane %v124, %v254
  %v256 = vlaneseq
  %v257 = vshrl.u32 %v256, 7
  %v258 = vsub.s32 2, %v257
  %v259 = vrot.slane %v125, %v258
  %v260 = vlaneseq
  %v261 = vshrl.u32 %v260, 7
  %v262 = vsub.s32 6, %v261
  %v263 = vrot.slane %v125, %v262
  %v264 = vlaneseq
  %v265 = vshrl.u32 %v264, 7
  %v266 = vsub.s32 2, %v265
  %v267 = vrot.slane %v126, %v266
  %v273 = vlaneseq
  %v274 = vshrl.u32 %v273, 7
  %v275 = vsub.s32 2, %v274
  %v276 = vrot.slane %v251, %v275
  %v277 = vlaneseq
  %v278 = vshrl.u32 %v277, 7
  %v279 = vsub.s32 2, %v278
  %v280 = vrot.slane %v255, %v279
  %v281 = vlaneseq
  %v282 = vshrl.u32 %v281, 7
  %v283 = vsub.s32 2, %v282
  %v284 = vrot.slane %v259, %v283
  %v285 = vlaneseq
  %v286 = vshrl.u32 %v285, 7
  %v287 = vsub.s32 2, %v286
  %v288 = vrot.slane %v263, %v287
  %v289 = vlaneseq
  %v290 = vshrl.u32 %v289, 7
  %v291 = vsub.s32 2, %v290
  %v292 = vrot.slane %v267, %v291
  %v293 = vmul.f32 %v246, %v276
  %v294 = vmul.f32 %v246, %v280
  %v295 = vmul.f32 %v246, %v284
  %v296 = vmul.f32 %v246, %v288
  %v297 = vmul.f32 %v246, %v292
  %v298 = vadd.f32 %v239, %v293
  %v299 = vadd.f32 %v240, %v294
  %v300 = vadd.f32 %v241, %v295
  %v301 = vadd.f32 %v242, %v296
  %v302 = vadd.f32 %v243, %v297
  %v303 = vld [vmem:[#allocation2] sm:$0x77]
  %v304 = vld [vmem:[#allocation2 + $0x8] sm:$0x77]
  %v305 = vld [vmem:[#allocation2 + $0x10] sm:$0x7]
  %v310 = vcombine.low %v60, %v61
  %v311 = vcombine.low %v62, %v63
  %312 = vrot.lane.b32.xlu0 %v310, 112
  %v313 = vpop.permute.xlu0 %312
  %314 = vrot.lane.b32.xlu0 %v311, 112
  %v315 = vpop.permute.xlu0 %314
  %v316 = vrot.slane %v313, 4
  %v317 = vrot.slane %v315, 4
  %vm318 = vcmask 916480
  %v319 = vsel %vm318, %v316, %v313
  %v320 = vsel %vm118, %v316, %v317
  %v321 = vsel %vm318, %v320, %v315
  %v325 = vmul.f32 %v303, %v319
  %v326 = vmul.f32 %v304, %v321
  %v327 = vmul.f32 %v305, %v317
  %328 = vset.pattern.permute.xlu0 3
  %329 = vperm.xlu0 %328, %v100
  %v330 = vpop.permute.xlu0 %329
  %v335 = vlaneseq
  %v336 = vshrl.u32 %v335, 7
  %v337 = vsub.s32 0, %v336
  %v338 = vrot.slane %v325, %v337
  %v339 = vlaneseq
  %v340 = vshrl.u32 %v339, 7
  %v341 = vsub.s32 4, %v340
  %v342 = vrot.slane %v325, %v341
  %v343 = vlaneseq
  %v344 = vshrl.u32 %v343, 7
  %v345 = vsub.s32 0, %v344
  %v346 = vrot.slane %v326, %v345
  %v347 = vlaneseq
  %v348 = vshrl.u32 %v347, 7
  %v349 = vsub.s32 4, %v348
  %v350 = vrot.slane %v326, %v349
  %v351 = vlaneseq
  %v352 = vshrl.u32 %v351, 7
  %v353 = vsub.s32 0, %v352
  %v354 = vrot.slane %v327, %v353
  %v360 = vlaneseq
  %v361 = vshrl.u32 %v360, 7
  %v362 = vsub.s32 0, %v361
  %v363 = vrot.slane %v338, %v362
  %v364 = vlaneseq
  %v365 = vshrl.u32 %v364, 7
  %v366 = vsub.s32 0, %v365
  %v367 = vrot.slane %v342, %v366
  %v368 = vlaneseq
  %v369 = vshrl.u32 %v368, 7
  %v370 = vsub.s32 0, %v369
  %v371 = vrot.slane %v346, %v370
  %v372 = vlaneseq
  %v373 = vshrl.u32 %v372, 7
  %v374 = vsub.s32 0, %v373
  %v375 = vrot.slane %v350, %v374
  %v376 = vlaneseq
  %v377 = vshrl.u32 %v376, 7
  %v378 = vsub.s32 0, %v377
  %v379 = vrot.slane %v354, %v378
  %v380 = vmul.f32 %v330, %v363
  %v381 = vmul.f32 %v330, %v367
  %v382 = vmul.f32 %v330, %v371
  %v383 = vmul.f32 %v330, %v375
  %v384 = vmul.f32 %v330, %v379
  %390 = vrot.lane.b32.xlu0 %v380, 127
  %v391 = vpop.permute.xlu0 %390
  %392 = vrot.lane.b32.xlu0 %v381, 127
  %v393 = vpop.permute.xlu0 %392
  %394 = vrot.lane.b32.xlu0 %v382, 127
  %v395 = vpop.permute.xlu0 %394
  %396 = vrot.lane.b32.xlu0 %v383, 127
  %v397 = vpop.permute.xlu0 %396
  %398 = vrot.lane.b32.xlu0 %v384, 127
  %v399 = vpop.permute.xlu0 %398
  %vm400 = vcmask 1039360
  %v401 = vsel %vm400, %v391, %v393
  %v402 = vsel %vm400, %v393, %v395
  %v403 = vsel %vm400, %v395, %v397
  %v404 = vsel %vm400, %v397, %v399
  %v410 = vadd.f32 %v298, %v401
  %v411 = vadd.f32 %v299, %v402
  %v412 = vadd.f32 %v300, %v403
  %v413 = vadd.f32 %v301, %v404
  %v414 = vadd.f32 %v302, %v399
  %415 = vset.pattern.permute.xlu0 4
  %416 = vperm.xlu0 %415, %v100
  %v417 = vpop.permute.xlu0 %416
  %v419 = vlaneseq
  %v420 = vshrl.u32 %v419, 7
  %v421 = vsub.s32 1, %v420
  %v422 = vrot.slane %v325, %v421
  %v423 = vlaneseq
  %v424 = vshrl.u32 %v423, 7
  %v425 = vsub.s32 5, %v424
  %v426 = vrot.slane %v325, %v425
  %v427 = vlaneseq
  %v428 = vshrl.u32 %v427, 7
  %v429 = vsub.s32 1, %v428
  %v430 = vrot.slane %v326, %v429
  %v431 = vlaneseq
  %v432 = vshrl.u32 %v431, 7
  %v433 = vsub.s32 5, %v432
  %v434 = vrot.slane %v326, %v433
  %v435 = vlaneseq
  %v436 = vshrl.u32 %v435, 7
  %v437 = vsub.s32 1, %v436
  %v438 = vrot.slane %v327, %v437
  %v444 = vlaneseq
  %v445 = vshrl.u32 %v444, 7
  %v446 = vsub.s32 1, %v445
  %v447 = vrot.slane %v422, %v446
  %v448 = vlaneseq
  %v449 = vshrl.u32 %v448, 7
  %v450 = vsub.s32 1, %v449
  %v451 = vrot.slane %v426, %v450
  %v452 = vlaneseq
  %v453 = vshrl.u32 %v452, 7
  %v454 = vsub.s32 1, %v453
  %v455 = vrot.slane %v430, %v454
  %v456 = vlaneseq
  %v457 = vshrl.u32 %v456, 7
  %v458 = vsub.s32 1, %v457
  %v459 = vrot.slane %v434, %v458
  %v460 = vlaneseq
  %v461 = vshrl.u32 %v460, 7
  %v462 = vsub.s32 1, %v461
  %v463 = vrot.slane %v438, %v462
  %v464 = vmul.f32 %v417, %v447
  %v465 = vmul.f32 %v417, %v451
  %v466 = vmul.f32 %v417, %v455
  %v467 = vmul.f32 %v417, %v459
  %v468 = vmul.f32 %v417, %v463
  %474 = vrot.lane.b32.xlu0 %v464, 127
  %v475 = vpop.permute.xlu0 %474
  %476 = vrot.lane.b32.xlu0 %v465, 127
  %v477 = vpop.permute.xlu0 %476
  %478 = vrot.lane.b32.xlu0 %v466, 127
  %v479 = vpop.permute.xlu0 %478
  %480 = vrot.lane.b32.xlu0 %v467, 127
  %v481 = vpop.permute.xlu0 %480
  %482 = vrot.lane.b32.xlu0 %v468, 127
  %v483 = vpop.permute.xlu0 %482
  %v484 = vsel %vm400, %v475, %v477
  %v485 = vsel %vm400, %v477, %v479
  %v486 = vsel %vm400, %v479, %v481
  %v487 = vsel %vm400, %v481, %v483
  %v493 = vadd.f32 %v410, %v484
  %v494 = vadd.f32 %v411, %v485
  %v495 = vadd.f32 %v412, %v486
  %v496 = vadd.f32 %v413, %v487
  %v497 = vadd.f32 %v414, %v483
  %498 = vset.pattern.permute.xlu0 5
  %499 = vperm.xlu0 %498, %v100
  %v500 = vpop.permute.xlu0 %499
  %v502 = vlaneseq
  %v503 = vshrl.u32 %v502, 7
  %v504 = vsub.s32 2, %v503
  %v505 = vrot.slane %v325, %v504
  %v506 = vlaneseq
  %v507 = vshrl.u32 %v506, 7
  %v508 = vsub.s32 6, %v507
  %v509 = vrot.slane %v325, %v508
  %v510 = vlaneseq
  %v511 = vshrl.u32 %v510, 7
  %v512 = vsub.s32 2, %v511
  %v513 = vrot.slane %v326, %v512
  %v514 = vlaneseq
  %v515 = vshrl.u32 %v514, 7
  %v516 = vsub.s32 6, %v515
  %v517 = vrot.slane %v326, %v516
  %v518 = vlaneseq
  %v519 = vshrl.u32 %v518, 7
  %v520 = vsub.s32 2, %v519
  %v521 = vrot.slane %v327, %v520
  %v527 = vlaneseq
  %v528 = vshrl.u32 %v527, 7
  %v529 = vsub.s32 2, %v528
  %v530 = vrot.slane %v505, %v529
  %v531 = vlaneseq
  %v532 = vshrl.u32 %v531, 7
  %v533 = vsub.s32 2, %v532
  %v534 = vrot.slane %v509, %v533
  %v535 = vlaneseq
  %v536 = vshrl.u32 %v535, 7
  %v537 = vsub.s32 2, %v536
  %v538 = vrot.slane %v513, %v537
  %v539 = vlaneseq
  %v540 = vshrl.u32 %v539, 7
  %v541 = vsub.s32 2, %v540
  %v542 = vrot.slane %v517, %v541
  %v543 = vlaneseq
  %v544 = vshrl.u32 %v543, 7
  %v545 = vsub.s32 2, %v544
  %v546 = vrot.slane %v521, %v545
  %v547 = vmul.f32 %v500, %v530
  %v548 = vmul.f32 %v500, %v534
  %v549 = vmul.f32 %v500, %v538
  %v550 = vmul.f32 %v500, %v542
  %v551 = vmul.f32 %v500, %v546
  %557 = vrot.lane.b32.xlu0 %v547, 127
  %v558 = vpop.permute.xlu0 %557
  %559 = vrot.lane.b32.xlu0 %v548, 127
  %v560 = vpop.permute.xlu0 %559
  %561 = vrot.lane.b32.xlu0 %v549, 127
  %v562 = vpop.permute.xlu0 %561
  %563 = vrot.lane.b32.xlu0 %v550, 127
  %v564 = vpop.permute.xlu0 %563
  %565 = vrot.lane.b32.xlu0 %v551, 127
  %v566 = vpop.permute.xlu0 %565
  %v567 = vsel %vm400, %v558, %v560
  %v568 = vsel %vm400, %v560, %v562
  %v569 = vsel %vm400, %v562, %v564
  %v570 = vsel %vm400, %v564, %v566
  %v576 = vadd.f32 %v493, %v567
  %v577 = vadd.f32 %v494, %v568
  %v578 = vadd.f32 %v495, %v569
  %v579 = vadd.f32 %v496, %v570
  %v580 = vadd.f32 %v497, %v566
  %v581 = vld [vmem:[#allocation2] sm:$0x77]
  %v582 = vld [vmem:[#allocation2 + $0x8] sm:$0x77]
  %v583 = vld [vmem:[#allocation2 + $0x10] sm:$0x7]
  %v588 = vcombine.low %v80, %v81
  %v589 = vcombine.low %v82, %v83
  %590 = vrot.lane.b32.xlu0 %v588, 113
  %v591 = vpop.permute.xlu0 %590
  %592 = vrot.lane.b32.xlu0 %v589, 113
  %v593 = vpop.permute.xlu0 %592
  %v594 = vrot.slane %v591, 4
  %v595 = vrot.slane %v593, 4
  %vm596 = vcmask 924672
  %v597 = vsel %vm596, %v594, %v591
  %v598 = vsel %vm118, %v594, %v595
  %v599 = vsel %vm596, %v598, %v593
  %v603 = vmul.f32 %v581, %v597
  %v604 = vmul.f32 %v582, %v599
  %v605 = vmul.f32 %v583, %v595
  %606 = vset.pattern.permute.xlu0 6
  %607 = vperm.xlu0 %606, %v100
  %v608 = vpop.permute.xlu0 %607
  %v613 = vlaneseq
  %v614 = vshrl.u32 %v613, 7
  %v615 = vsub.s32 0, %v614
  %v616 = vrot.slane %v603, %v615
  %v617 = vlaneseq
  %v618 = vshrl.u32 %v617, 7
  %v619 = vsub.s32 4, %v618
  %v620 = vrot.slane %v603, %v619
  %v621 = vlaneseq
  %v622 = vshrl.u32 %v621, 7
  %v623 = vsub.s32 0, %v622
  %v624 = vrot.slane %v604, %v623
  %v625 = vlaneseq
  %v626 = vshrl.u32 %v625, 7
  %v627 = vsub.s32 4, %v626
  %v628 = vrot.slane %v604, %v627
  %v629 = vlaneseq
  %v630 = vshrl.u32 %v629, 7
  %v631 = vsub.s32 0, %v630
  %v632 = vrot.slane %v605, %v631
  %v638 = vlaneseq
  %v639 = vshrl.u32 %v638, 7
  %v640 = vsub.s32 0, %v639
  %v641 = vrot.slane %v616, %v640
  %v642 = vlaneseq
  %v643 = vshrl.u32 %v642, 7
  %v644 = vsub.s32 0, %v643
  %v645 = vrot.slane %v620, %v644
  %v646 = vlaneseq
  %v647 = vshrl.u32 %v646, 7
  %v648 = vsub.s32 0, %v647
  %v649 = vrot.slane %v624, %v648
  %v650 = vlaneseq
  %v651 = vshrl.u32 %v650, 7
  %v652 = vsub.s32 0, %v651
  %v653 = vrot.slane %v628, %v652
  %v654 = vlaneseq
  %v655 = vshrl.u32 %v654, 7
  %v656 = vsub.s32 0, %v655
  %v657 = vrot.slane %v632, %v656
  %v658 = vmul.f32 %v608, %v641
  %v659 = vmul.f32 %v608, %v645
  %v660 = vmul.f32 %v608, %v649
  %v661 = vmul.f32 %v608, %v653
  %v662 = vmul.f32 %v608, %v657
  %668 = vrot.lane.b32.xlu0 %v658, 126
  %v669 = vpop.permute.xlu0 %668
  %670 = vrot.lane.b32.xlu0 %v659, 126
  %v671 = vpop.permute.xlu0 %670
  %672 = vrot.lane.b32.xlu0 %v660, 126
  %v673 = vpop.permute.xlu0 %672
  %674 = vrot.lane.b32.xlu0 %v661, 126
  %v675 = vpop.permute.xlu0 %674
  %676 = vrot.lane.b32.xlu0 %v662, 126
  %v677 = vpop.permute.xlu0 %676
  %vm678 = vcmask 1031168
  %v679 = vsel %vm678, %v669, %v671
  %v680 = vsel %vm678, %v671, %v673
  %v681 = vsel %vm678, %v673, %v675
  %v682 = vsel %vm678, %v675, %v677
  %v688 = vadd.f32 %v576, %v679
  %v689 = vadd.f32 %v577, %v680
  %v690 = vadd.f32 %v578, %v681
  %v691 = vadd.f32 %v579, %v682
  %v692 = vadd.f32 %v580, %v677
  %693 = vset.pattern.permute.xlu0 7
  %694 = vperm.xlu0 %693, %v100
  %v695 = vpop.permute.xlu0 %694
  %v697 = vlaneseq
  %v698 = vshrl.u32 %v697, 7
  %v699 = vsub.s32 1, %v698
  %v700 = vrot.slane %v603, %v699
  %v701 = vlaneseq
  %v702 = vshrl.u32 %v701, 7
  %v703 = vsub.s32 5, %v702
  %v704 = vrot.slane %v603, %v703
  %v705 = vlaneseq
  %v706 = vshrl.u32 %v705, 7
  %v707 = vsub.s32 1, %v706
  %v708 = vrot.slane %v604, %v707
  %v709 = vlaneseq
  %v710 = vshrl.u32 %v709, 7
  %v711 = vsub.s32 5, %v710
  %v712 = vrot.slane %v604, %v711
  %v713 = vlaneseq
  %v714 = vshrl.u32 %v713, 7
  %v715 = vsub.s32 1, %v714
  %v716 = vrot.slane %v605, %v715
  %v722 = vlaneseq
  %v723 = vshrl.u32 %v722, 7
  %v724 = vsub.s32 1, %v723
  %v725 = vrot.slane %v700, %v724
  %v726 = vlaneseq
  %v727 = vshrl.u32 %v726, 7
  %v728 = vsub.s32 1, %v727
  %v729 = vrot.slane %v704, %v728
  %v730 = vlaneseq
  %v731 = vshrl.u32 %v730, 7
  %v732 = vsub.s32 1, %v731
  %v733 = vrot.slane %v708, %v732
  %v734 = vlaneseq
  %v735 = vshrl.u32 %v734, 7
  %v736 = vsub.s32 1, %v735
  %v737 = vrot.slane %v712, %v736
  %v738 = vlaneseq
  %v739 = vshrl.u32 %v738, 7
  %v740 = vsub.s32 1, %v739
  %v741 = vrot.slane %v716, %v740
  %v742 = vmul.f32 %v695, %v725
  %v743 = vmul.f32 %v695, %v729
  %v744 = vmul.f32 %v695, %v733
  %v745 = vmul.f32 %v695, %v737
  %v746 = vmul.f32 %v695, %v741
  %752 = vrot.lane.b32.xlu0 %v742, 126
  %v753 = vpop.permute.xlu0 %752
  %754 = vrot.lane.b32.xlu0 %v743, 126
  %v755 = vpop.permute.xlu0 %754
  %756 = vrot.lane.b32.xlu0 %v744, 126
  %v757 = vpop.permute.xlu0 %756
  %758 = vrot.lane.b32.xlu0 %v745, 126
  %v759 = vpop.permute.xlu0 %758
  %760 = vrot.lane.b32.xlu0 %v746, 126
  %v761 = vpop.permute.xlu0 %760
  %v762 = vsel %vm678, %v753, %v755
  %v763 = vsel %vm678, %v755, %v757
  %v764 = vsel %vm678, %v757, %v759
  %v765 = vsel %vm678, %v759, %v761
  %v771 = vadd.f32 %v688, %v762
  %v772 = vadd.f32 %v689, %v763
  %v773 = vadd.f32 %v690, %v764
  %v774 = vadd.f32 %v691, %v765
  %v775 = vadd.f32 %v692, %v761
  %776 = vset.pattern.permute.xlu0 8
  %777 = vperm.xlu0 %776, %v100
  %v778 = vpop.permute.xlu0 %777
  %v780 = vlaneseq
  %v781 = vshrl.u32 %v780, 7
  %v782 = vsub.s32 2, %v781
  %v783 = vrot.slane %v603, %v782
  %v784 = vlaneseq
  %v785 = vshrl.u32 %v784, 7
  %v786 = vsub.s32 6, %v785
  %v787 = vrot.slane %v603, %v786
  %v788 = vlaneseq
  %v789 = vshrl.u32 %v788, 7
  %v790 = vsub.s32 2, %v789
  %v791 = vrot.slane %v604, %v790
  %v792 = vlaneseq
  %v793 = vshrl.u32 %v792, 7
  %v794 = vsub.s32 6, %v793
  %v795 = vrot.slane %v604, %v794
  %v796 = vlaneseq
  %v797 = vshrl.u32 %v796, 7
  %v798 = vsub.s32 2, %v797
  %v799 = vrot.slane %v605, %v798
  %v805 = vlaneseq
  %v806 = vshrl.u32 %v805, 7
  %v807 = vsub.s32 2, %v806
  %v808 = vrot.slane %v783, %v807
  %v809 = vlaneseq
  %v810 = vshrl.u32 %v809, 7
  %v811 = vsub.s32 2, %v810
  %v812 = vrot.slane %v787, %v811
  %v813 = vlaneseq
  %v814 = vshrl.u32 %v813, 7
  %v815 = vsub.s32 2, %v814
  %v816 = vrot.slane %v791, %v815
  %v817 = vlaneseq
  %v818 = vshrl.u32 %v817, 7
  %v819 = vsub.s32 2, %v818
  %v820 = vrot.slane %v795, %v819
  %v821 = vlaneseq
  %v822 = vshrl.u32 %v821, 7
  %v823 = vsub.s32 2, %v822
  %v824 = vrot.slane %v799, %v823
  %v825 = vmul.f32 %v778, %v808
  %v826 = vmul.f32 %v778, %v812
  %v827 = vmul.f32 %v778, %v816
  %v828 = vmul.f32 %v778, %v820
  %v829 = vmul.f32 %v778, %v824
  %835 = vrot.lane.b32.xlu0 %v825, 126
  %v836 = vpop.permute.xlu0 %835
  %837 = vrot.lane.b32.xlu0 %v826, 126
  %v838 = vpop.permute.xlu0 %837
  %839 = vrot.lane.b32.xlu0 %v827, 126
  %v840 = vpop.permute.xlu0 %839
  %841 = vrot.lane.b32.xlu0 %v828, 126
  %v842 = vpop.permute.xlu0 %841
  %843 = vrot.lane.b32.xlu0 %v829, 126
  %v844 = vpop.permute.xlu0 %843
  %v845 = vsel %vm678, %v836, %v838
  %v846 = vsel %vm678, %v838, %v840
  %v847 = vsel %vm678, %v840, %v842
  %v848 = vsel %vm678, %v842, %v844
  %v854 = vadd.f32 %v771, %v845
  %v855 = vadd.f32 %v772, %v846
  %v856 = vadd.f32 %v773, %v847
  %v857 = vadd.f32 %v774, %v848
  %v858 = vadd.f32 %v775, %v844
  %v859 = vld [vmem:[#allocation2] sm:$0x77]
  %v860 = vld [vmem:[#allocation2 + $0x8] sm:$0x77]
  %v861 = vld [vmem:[#allocation2 + $0x10] sm:$0x7]
  %v866 = vcombine.low %v36, %v37
  %v867 = vcombine.low %v38, %v39
  %868 = vrot.lane.b32.xlu0 %v866, 127
  %v869 = vpop.permute.xlu0 %868
  %870 = vrot.lane.b32.xlu0 %v867, 127
  %v871 = vpop.permute.xlu0 %870
  %v872 = vrot.slane %v869, 4
  %v873 = vrot.slane %v871, 4
  %v874 = vsel %vm400, %v872, %v869
  %v875 = vsel %vm118, %v872, %v873
  %v876 = vsel %vm400, %v875, %v871
  %v880 = vmul.f32 %v859, %v874
  %v881 = vmul.f32 %v860, %v876
  %v882 = vmul.f32 %v861, %v873
  %883 = vset.pattern.permute.xlu0 9
  %884 = vperm.xlu0 %883, %v100
  %v885 = vpop.permute.xlu0 %884
  %v890 = vlaneseq
  %v891 = vshrl.u32 %v890, 7
  %v892 = vsub.s32 0, %v891
  %v893 = vrot.slane %v880, %v892
  %v894 = vlaneseq
  %v895 = vshrl.u32 %v894, 7
  %v896 = vsub.s32 4, %v895
  %v897 = vrot.slane %v880, %v896
  %v898 = vlaneseq
  %v899 = vshrl.u32 %v898, 7
  %v900 = vsub.s32 0, %v899
  %v901 = vrot.slane %v881, %v900
  %v902 = vlaneseq
  %v903 = vshrl.u32 %v902, 7
  %v904 = vsub.s32 4, %v903
  %v905 = vrot.slane %v881, %v904
  %v906 = vlaneseq
  %v907 = vshrl.u32 %v906, 7
  %v908 = vsub.s32 0, %v907
  %v909 = vrot.slane %v882, %v908
  %v915 = vlaneseq
  %v916 = vshrl.u32 %v915, 7
  %v917 = vsub.s32 0, %v916
  %v918 = vrot.slane %v893, %v917
  %v919 = vlaneseq
  %v920 = vshrl.u32 %v919, 7
  %v921 = vsub.s32 0, %v920
  %v922 = vrot.slane %v897, %v921
  %v923 = vlaneseq
  %v924 = vshrl.u32 %v923, 7
  %v925 = vsub.s32 0, %v924
  %v926 = vrot.slane %v901, %v925
  %v927 = vlaneseq
  %v928 = vshrl.u32 %v927, 7
  %v929 = vsub.s32 0, %v928
  %v930 = vrot.slane %v905, %v929
  %v931 = vlaneseq
  %v932 = vshrl.u32 %v931, 7
  %v933 = vsub.s32 0, %v932
  %v934 = vrot.slane %v909, %v933
  %v935 = vmul.f32 %v885, %v918
  %v936 = vmul.f32 %v885, %v922
  %v937 = vmul.f32 %v885, %v926
  %v938 = vmul.f32 %v885, %v930
  %v939 = vmul.f32 %v885, %v934
  %940 = vset.pattern.permute.xlu0 10
  %941 = vperm.xlu0 %940, %v100
  %v942 = vpop.permute.xlu0 %941
  %v944 = vlaneseq
  %v945 = vshrl.u32 %v944, 7
  %v946 = vsub.s32 1, %v945
  %v947 = vrot.slane %v880, %v946
  %v948 = vlaneseq
  %v949 = vshrl.u32 %v948, 7
  %v950 = vsub.s32 5, %v949
  %v951 = vrot.slane %v880, %v950
  %v952 = vlaneseq
  %v953 = vshrl.u32 %v952, 7
  %v954 = vsub.s32 1, %v953
  %v955 = vrot.slane %v881, %v954
  %v956 = vlaneseq
  %v957 = vshrl.u32 %v956, 7
  %v958 = vsub.s32 5, %v957
  %v959 = vrot.slane %v881, %v958
  %v960 = vlaneseq
  %v961 = vshrl.u32 %v960, 7
  %v962 = vsub.s32 1, %v961
  %v963 = vrot.slane %v882, %v962
  %v969 = vlaneseq
  %v970 = vshrl.u32 %v969, 7
  %v971 = vsub.s32 1, %v970
  %v972 = vrot.slane %v947, %v971
  %v973 = vlaneseq
  %v974 = vshrl.u32 %v973, 7
  %v975 = vsub.s32 1, %v974
  %v976 = vrot.slane %v951, %v975
  %v977 = vlaneseq
  %v978 = vshrl.u32 %v977, 7
  %v979 = vsub.s32 1, %v978
  %v980 = vrot.slane %v955, %v979
  %v981 = vlaneseq
  %v982 = vshrl.u32 %v981, 7
  %v983 = vsub.s32 1, %v982
  %v984 = vrot.slane %v959, %v983
  %v985 = vlaneseq
  %v986 = vshrl.u32 %v985, 7
  %v987 = vsub.s32 1, %v986
  %v988 = vrot.slane %v963, %v987
  %v989 = vmul.f32 %v942, %v972
  %v990 = vmul.f32 %v942, %v976
  %v991 = vmul.f32 %v942, %v980
  %v992 = vmul.f32 %v942, %v984
  %v993 = vmul.f32 %v942, %v988
  %v994 = vadd.f32 %v935, %v989
  %v995 = vadd.f32 %v936, %v990
  %v996 = vadd.f32 %v937, %v991
  %v997 = vadd.f32 %v938, %v992
  %v998 = vadd.f32 %v939, %v993
  %999 = vset.pattern.permute.xlu0 11
  %1000 = vperm.xlu0 %999, %v100
  %v1001 = vpop.permute.xlu0 %1000
  %v1003 = vlaneseq
  %v1004 = vshrl.u32 %v1003, 7
  %v1005 = vsub.s32 2, %v1004
  %v1006 = vrot.slane %v880, %v1005
  %v1007 = vlaneseq
  %v1008 = vshrl.u32 %v1007, 7
  %v1009 = vsub.s32 6, %v1008
  %v1010 = vrot.slane %v880, %v1009
  %v1011 = vlaneseq
  %v1012 = vshrl.u32 %v1011, 7
  %v1013 = vsub.s32 2, %v1012
  %v1014 = vrot.slane %v881, %v1013
  %v1015 = vlaneseq
  %v1016 = vshrl.u32 %v1015, 7
  %v1017 = vsub.s32 6, %v1016
  %v1018 = vrot.slane %v881, %v1017
  %v1019 = vlaneseq
  %v1020 = vshrl.u32 %v1019, 7
  %v1021 = vsub.s32 2, %v1020
  %v1022 = vrot.slane %v882, %v1021
  %v1028 = vlaneseq
  %v1029 = vshrl.u32 %v1028, 7
  %v1030 = vsub.s32 2, %v1029
  %v1031 = vrot.slane %v1006, %v1030
  %v1032 = vlaneseq
  %v1033 = vshrl.u32 %v1032, 7
  %v1034 = vsub.s32 2, %v1033
  %v1035 = vrot.slane %v1010, %v1034
  %v1036 = vlaneseq
  %v1037 = vshrl.u32 %v1036, 7
  %v1038 = vsub.s32 2, %v1037
  %v1039 = vrot.slane %v1014, %v1038
  %v1040 = vlaneseq
  %v1041 = vshrl.u32 %v1040, 7
  %v1042 = vsub.s32 2, %v1041
  %v1043 = vrot.slane %v1018, %v1042
  %v1044 = vlaneseq
  %v1045 = vshrl.u32 %v1044, 7
  %v1046 = vsub.s32 2, %v1045
  %v1047 = vrot.slane %v1022, %v1046
  %v1048 = vmul.f32 %v1001, %v1031
  %v1049 = vmul.f32 %v1001, %v1035
  %v1050 = vmul.f32 %v1001, %v1039
  %v1051 = vmul.f32 %v1001, %v1043
  %v1052 = vmul.f32 %v1001, %v1047
  %v1053 = vadd.f32 %v994, %v1048
  %v1054 = vadd.f32 %v995, %v1049
  %v1055 = vadd.f32 %v996, %v1050
  %v1056 = vadd.f32 %v997, %v1051
  %v1057 = vadd.f32 %v998, %v1052
  %v1058 = vld [vmem:[#allocation2 + $0x4] sm:$0x77]
  %v1059 = vld [vmem:[#allocation2 + $0xc] sm:$0x77]
  %1060 = vset.pattern.permute.xlu0 12
  %1061 = vperm.xlu0 %1060, %v100
  %v1062 = vpop.permute.xlu0 %1061
  %v1066 = vlaneseq
  %v1067 = vshrl.u32 %v1066, 7
  %v1068 = vsub.s32 0, %v1067
  %v1069 = vrot.slane %v1058, %v1068
  %v1070 = vlaneseq
  %v1071 = vshrl.u32 %v1070, 7
  %v1072 = vsub.s32 4, %v1071
  %v1073 = vrot.slane %v1058, %v1072
  %v1074 = vlaneseq
  %v1075 = vshrl.u32 %v1074, 7
  %v1076 = vsub.s32 0, %v1075
  %v1077 = vrot.slane %v1059, %v1076
  %v1078 = vlaneseq
  %v1079 = vshrl.u32 %v1078, 7
  %v1080 = vsub.s32 4, %v1079
  %v1081 = vrot.slane %v1059, %v1080
  %v1086 = vlaneseq
  %v1087 = vshrl.u32 %v1086, 7
  %v1088 = vsub.s32 0, %v1087
  %v1089 = vrot.slane %v1069, %v1088
  %v1090 = vlaneseq
  %v1091 = vshrl.u32 %v1090, 7
  %v1092 = vsub.s32 0, %v1091
  %v1093 = vrot.slane %v1073, %v1092
  %v1094 = vlaneseq
  %v1095 = vshrl.u32 %v1094, 7
  %v1096 = vsub.s32 0, %v1095
  %v1097 = vrot.slane %v1077, %v1096
  %v1098 = vlaneseq
  %v1099 = vshrl.u32 %v1098, 7
  %v1100 = vsub.s32 0, %v1099
  %v1101 = vrot.slane %v1081, %v1100
  %v1102 = vmul.f32 %v1062, %v1089
  %v1103 = vmul.f32 %v1062, %v1093
  %v1104 = vmul.f32 %v1062, %v1097
  %v1105 = vmul.f32 %v1062, %v1101
  %1110 = vrot.lane.b32.xlu0 %v1102, 127
  %v1111 = vpop.permute.xlu0 %1110
  %1112 = vrot.lane.b32.xlu0 %v1103, 127
  %v1113 = vpop.permute.xlu0 %1112
  %1114 = vrot.lane.b32.xlu0 %v1104, 127
  %v1115 = vpop.permute.xlu0 %1114
  %1116 = vrot.lane.b32.xlu0 %v1105, 127
  %v1117 = vpop.permute.xlu0 %1116
  %v1118 = vsel %vm400, %v1111, %v1113
  %v1119 = vsel %vm400, %v1113, %v1115
  %v1120 = vsel %vm400, %v1115, %v1117
  %v1126 = vadd.f32 %v1053, %v1111
  %v1127 = vadd.f32 %v1054, %v1118
  %v1128 = vadd.f32 %v1055, %v1119
  %v1129 = vadd.f32 %v1056, %v1120
  %v1130 = vadd.f32 %v1057, %v1117
  %1131 = vset.pattern.permute.xlu0 13
  %1132 = vperm.xlu0 %1131, %v100
  %v1133 = vpop.permute.xlu0 %1132
  %v1135 = vlaneseq
  %v1136 = vshrl.u32 %v1135, 7
  %v1137 = vsub.s32 1, %v1136
  %v1138 = vrot.slane %v1058, %v1137
  %v1139 = vlaneseq
  %v1140 = vshrl.u32 %v1139, 7
  %v1141 = vsub.s32 5, %v1140
  %v1142 = vrot.slane %v1058, %v1141
  %v1143 = vlaneseq
  %v1144 = vshrl.u32 %v1143, 7
  %v1145 = vsub.s32 1, %v1144
  %v1146 = vrot.slane %v1059, %v1145
  %v1147 = vlaneseq
  %v1148 = vshrl.u32 %v1147, 7
  %v1149 = vsub.s32 5, %v1148
  %v1150 = vrot.slane %v1059, %v1149
  %v1155 = vlaneseq
  %v1156 = vshrl.u32 %v1155, 7
  %v1157 = vsub.s32 1, %v1156
  %v1158 = vrot.slane %v1138, %v1157
  %v1159 = vlaneseq
  %v1160 = vshrl.u32 %v1159, 7
  %v1161 = vsub.s32 1, %v1160
  %v1162 = vrot.slane %v1142, %v1161
  %v1163 = vlaneseq
  %v1164 = vshrl.u32 %v1163, 7
  %v1165 = vsub.s32 1, %v1164
  %v1166 = vrot.slane %v1146, %v1165
  %v1167 = vlaneseq
  %v1168 = vshrl.u32 %v1167, 7
  %v1169 = vsub.s32 1, %v1168
  %v1170 = vrot.slane %v1150, %v1169
  %v1171 = vmul.f32 %v1133, %v1158
  %v1172 = vmul.f32 %v1133, %v1162
  %v1173 = vmul.f32 %v1133, %v1166
  %v1174 = vmul.f32 %v1133, %v1170
  %1179 = vrot.lane.b32.xlu0 %v1171, 127
  %v1180 = vpop.permute.xlu0 %1179
  %1181 = vrot.lane.b32.xlu0 %v1172, 127
  %v1182 = vpop.permute.xlu0 %1181
  %1183 = vrot.lane.b32.xlu0 %v1173, 127
  %v1184 = vpop.permute.xlu0 %1183
  %1185 = vrot.lane.b32.xlu0 %v1174, 127
  %v1186 = vpop.permute.xlu0 %1185
  %v1187 = vsel %vm400, %v1180, %v1182
  %v1188 = vsel %vm400, %v1182, %v1184
  %v1189 = vsel %vm400, %v1184, %v1186
  %v1195 = vadd.f32 %v1126, %v1180
  %v1196 = vadd.f32 %v1127, %v1187
  %v1197 = vadd.f32 %v1128, %v1188
  %v1198 = vadd.f32 %v1129, %v1189
  %v1199 = vadd.f32 %v1130, %v1186
  %1200 = vset.pattern.permute.xlu0 14
  %1201 = vperm.xlu0 %1200, %v100
  %v1202 = vpop.permute.xlu0 %1201
  %v1204 = vlaneseq
  %v1205 = vshrl.u32 %v1204, 7
  %v1206 = vsub.s32 2, %v1205
  %v1207 = vrot.slane %v1058, %v1206
  %v1208 = vlaneseq
  %v1209 = vshrl.u32 %v1208, 7
  %v1210 = vsub.s32 6, %v1209
  %v1211 = vrot.slane %v1058, %v1210
  %v1212 = vlaneseq
  %v1213 = vshrl.u32 %v1212, 7
  %v1214 = vsub.s32 2, %v1213
  %v1215 = vrot.slane %v1059, %v1214
  %v1216 = vlaneseq
  %v1217 = vshrl.u32 %v1216, 7
  %v1218 = vsub.s32 6, %v1217
  %v1219 = vrot.slane %v1059, %v1218
  %v1224 = vlaneseq
  %v1225 = vshrl.u32 %v1224, 7
  %v1226 = vsub.s32 2, %v1225
  %v1227 = vrot.slane %v1207, %v1226
  %v1228 = vlaneseq
  %v1229 = vshrl.u32 %v1228, 7
  %v1230 = vsub.s32 2, %v1229
  %v1231 = vrot.slane %v1211, %v1230
  %v1232 = vlaneseq
  %v1233 = vshrl.u32 %v1232, 7
  %v1234 = vsub.s32 2, %v1233
  %v1235 = vrot.slane %v1215, %v1234
  %v1236 = vlaneseq
  %v1237 = vshrl.u32 %v1236, 7
  %v1238 = vsub.s32 2, %v1237
  %v1239 = vrot.slane %v1219, %v1238
  %v1240 = vmul.f32 %v1202, %v1227
  %v1241 = vmul.f32 %v1202, %v1231
  %v1242 = vmul.f32 %v1202, %v1235
  %v1243 = vmul.f32 %v1202, %v1239
  %1248 = vrot.lane.b32.xlu0 %v1240, 127
  %v1249 = vpop.permute.xlu0 %1248
  %1250 = vrot.lane.b32.xlu0 %v1241, 127
  %v1251 = vpop.permute.xlu0 %1250
  %1252 = vrot.lane.b32.xlu0 %v1242, 127
  %v1253 = vpop.permute.xlu0 %1252
  %1254 = vrot.lane.b32.xlu0 %v1243, 127
  %v1255 = vpop.permute.xlu0 %1254
  %v1256 = vsel %vm400, %v1249, %v1251
  %v1257 = vsel %vm400, %v1251, %v1253
  %v1258 = vsel %vm400, %v1253, %v1255
  %v1264 = vadd.f32 %v1195, %v1249
  %v1265 = vadd.f32 %v1196, %v1256
  %v1266 = vadd.f32 %v1197, %v1257
  %v1267 = vadd.f32 %v1198, %v1258
  %v1268 = vadd.f32 %v1199, %v1255
  %v1269 = vld [vmem:[#allocation2 + $0x4] sm:$0x77]
  %v1270 = vld [vmem:[#allocation2 + $0xc] sm:$0x77]
  %v1271 = vld [vmem:[#allocation2 + $0x14] sm:$0x7]
  %v1276 = vcombine.low %v48, %v49
  %v1277 = vcombine.low %v50, %v51
  %1278 = vrot.lane.b32.xlu0 %v1276, 1
  %v1279 = vpop.permute.xlu0 %1278
  %1280 = vrot.lane.b32.xlu0 %v1277, 1
  %v1281 = vpop.permute.xlu0 %1280
  %v1282 = vrot.slane %v1279, 4
  %v1283 = vrot.slane %v1281, 4
  %vm1284 = vcmask 7168
  %v1285 = vsel %vm1284, %v1282, %v1279
  %v1286 = vsel %vm118, %v1282, %v1283
  %v1287 = vsel %vm1284, %v1286, %v1281
  %v1291 = vmul.f32 %v1269, %v1285
  %v1292 = vmul.f32 %v1270, %v1287
  %v1293 = vmul.f32 %v1271, %v1283
  %1294 = vset.pattern.permute.xlu0 15
  %1295 = vperm.xlu0 %1294, %v100
  %v1296 = vpop.permute.xlu0 %1295
  %v1301 = vlaneseq
  %v1302 = vshrl.u32 %v1301, 7
  %v1303 = vsub.s32 0, %v1302
  %v1304 = vrot.slane %v1291, %v1303
  %v1305 = vlaneseq
  %v1306 = vshrl.u32 %v1305, 7
  %v1307 = vsub.s32 4, %v1306
  %v1308 = vrot.slane %v1291, %v1307
  %v1309 = vlaneseq
  %v1310 = vshrl.u32 %v1309, 7
  %v1311 = vsub.s32 0, %v1310
  %v1312 = vrot.slane %v1292, %v1311
  %v1313 = vlaneseq
  %v1314 = vshrl.u32 %v1313, 7
  %v1315 = vsub.s32 4, %v1314
  %v1316 = vrot.slane %v1292, %v1315
  %v1317 = vlaneseq
  %v1318 = vshrl.u32 %v1317, 7
  %v1319 = vsub.s32 0, %v1318
  %v1320 = vrot.slane %v1293, %v1319
  %v1326 = vlaneseq
  %v1327 = vshrl.u32 %v1326, 7
  %v1328 = vsub.s32 0, %v1327
  %v1329 = vrot.slane %v1304, %v1328
  %v1330 = vlaneseq
  %v1331 = vshrl.u32 %v1330, 7
  %v1332 = vsub.s32 0, %v1331
  %v1333 = vrot.slane %v1308, %v1332
  %v1334 = vlaneseq
  %v1335 = vshrl.u32 %v1334, 7
  %v1336 = vsub.s32 0, %v1335
  %v1337 = vrot.slane %v1312, %v1336
  %v1338 = vlaneseq
  %v1339 = vshrl.u32 %v1338, 7
  %v1340 = vsub.s32 0, %v1339
  %v1341 = vrot.slane %v1316, %v1340
  %v1342 = vlaneseq
  %v1343 = vshrl.u32 %v1342, 7
  %v1344 = vsub.s32 0, %v1343
  %v1345 = vrot.slane %v1320, %v1344
  %v1346 = vmul.f32 %v1296, %v1329
  %v1347 = vmul.f32 %v1296, %v1333
  %v1348 = vmul.f32 %v1296, %v1337
  %v1349 = vmul.f32 %v1296, %v1341
  %v1350 = vmul.f32 %v1296, %v1345
  %1356 = vrot.lane.b32.xlu0 %v1346, 126
  %v1357 = vpop.permute.xlu0 %1356
  %1358 = vrot.lane.b32.xlu0 %v1347, 126
  %v1359 = vpop.permute.xlu0 %1358
  %1360 = vrot.lane.b32.xlu0 %v1348, 126
  %v1361 = vpop.permute.xlu0 %1360
  %1362 = vrot.lane.b32.xlu0 %v1349, 126
  %v1363 = vpop.permute.xlu0 %1362
  %1364 = vrot.lane.b32.xlu0 %v1350, 126
  %v1365 = vpop.permute.xlu0 %1364
  %v1366 = vsel %vm678, %v1357, %v1359
  %v1367 = vsel %vm678, %v1359, %v1361
  %v1368 = vsel %vm678, %v1361, %v1363
  %v1369 = vsel %vm678, %v1363, %v1365
  %v1375 = vadd.f32 %v1264, %v1357
  %v1376 = vadd.f32 %v1265, %v1366
  %v1377 = vadd.f32 %v1266, %v1367
  %v1378 = vadd.f32 %v1267, %v1368
  %v1379 = vadd.f32 %v1268, %v1369
  %1380 = vset.pattern.permute.xlu0 16
  %1381 = vperm.xlu0 %1380, %v100
  %v1382 = vpop.permute.xlu0 %1381
  %v1384 = vlaneseq
  %v1385 = vshrl.u32 %v1384, 7
  %v1386 = vsub.s32 1, %v1385
  %v1387 = vrot.slane %v1291, %v1386
  %v1388 = vlaneseq
  %v1389 = vshrl.u32 %v1388, 7
  %v1390 = vsub.s32 5, %v1389
  %v1391 = vrot.slane %v1291, %v1390
  %v1392 = vlaneseq
  %v1393 = vshrl.u32 %v1392, 7
  %v1394 = vsub.s32 1, %v1393
  %v1395 = vrot.slane %v1292, %v1394
  %v1396 = vlaneseq
  %v1397 = vshrl.u32 %v1396, 7
  %v1398 = vsub.s32 5, %v1397
  %v1399 = vrot.slane %v1292, %v1398
  %v1400 = vlaneseq
  %v1401 = vshrl.u32 %v1400, 7
  %v1402 = vsub.s32 1, %v1401
  %v1403 = vrot.slane %v1293, %v1402
  %v1409 = vlaneseq
  %v1410 = vshrl.u32 %v1409, 7
  %v1411 = vsub.s32 1, %v1410
  %v1412 = vrot.slane %v1387, %v1411
  %v1413 = vlaneseq
  %v1414 = vshrl.u32 %v1413, 7
  %v1415 = vsub.s32 1, %v1414
  %v1416 = vrot.slane %v1391, %v1415
  %v1417 = vlaneseq
  %v1418 = vshrl.u32 %v1417, 7
  %v1419 = vsub.s32 1, %v1418
  %v1420 = vrot.slane %v1395, %v1419
  %v1421 = vlaneseq
  %v1422 = vshrl.u32 %v1421, 7
  %v1423 = vsub.s32 1, %v1422
  %v1424 = vrot.slane %v1399, %v1423
  %v1425 = vlaneseq
  %v1426 = vshrl.u32 %v1425, 7
  %v1427 = vsub.s32 1, %v1426
  %v1428 = vrot.slane %v1403, %v1427
  %v1429 = vmul.f32 %v1382, %v1412
  %v1430 = vmul.f32 %v1382, %v1416
  %v1431 = vmul.f32 %v1382, %v1420
  %v1432 = vmul.f32 %v1382, %v1424
  %v1433 = vmul.f32 %v1382, %v1428
  %1439 = vrot.lane.b32.xlu0 %v1429, 126
  %v1440 = vpop.permute.xlu0 %1439
  %1441 = vrot.lane.b32.xlu0 %v1430, 126
  %v1442 = vpop.permute.xlu0 %1441
  %1443 = vrot.lane.b32.xlu0 %v1431, 126
  %v1444 = vpop.permute.xlu0 %1443
  %1445 = vrot.lane.b32.xlu0 %v1432, 126
  %v1446 = vpop.permute.xlu0 %1445
  %1447 = vrot.lane.b32.xlu0 %v1433, 126
  %v1448 = vpop.permute.xlu0 %1447
  %v1449 = vsel %vm678, %v1440, %v1442
  %v1450 = vsel %vm678, %v1442, %v1444
  %v1451 = vsel %vm678, %v1444, %v1446
  %v1452 = vsel %vm678, %v1446, %v1448
  %v1458 = vadd.f32 %v1375, %v1440
  %v1459 = vadd.f32 %v1376, %v1449
  %v1460 = vadd.f32 %v1377, %v1450
  %v1461 = vadd.f32 %v1378, %v1451
  %v1462 = vadd.f32 %v1379, %v1452
  %1463 = vset.pattern.permute.xlu0 17
  %1464 = vperm.xlu0 %1463, %v100
  %v1465 = vpop.permute.xlu0 %1464
  %v1467 = vlaneseq
  %v1468 = vshrl.u32 %v1467, 7
  %v1469 = vsub.s32 2, %v1468
  %v1470 = vrot.slane %v1291, %v1469
  %v1471 = vlaneseq
  %v1472 = vshrl.u32 %v1471, 7
  %v1473 = vsub.s32 6, %v1472
  %v1474 = vrot.slane %v1291, %v1473
  %v1475 = vlaneseq
  %v1476 = vshrl.u32 %v1475, 7
  %v1477 = vsub.s32 2, %v1476
  %v1478 = vrot.slane %v1292, %v1477
  %v1479 = vlaneseq
  %v1480 = vshrl.u32 %v1479, 7
  %v1481 = vsub.s32 6, %v1480
  %v1482 = vrot.slane %v1292, %v1481
  %v1483 = vlaneseq
  %v1484 = vshrl.u32 %v1483, 7
  %v1485 = vsub.s32 2, %v1484
  %v1486 = vrot.slane %v1293, %v1485
  %v1492 = vlaneseq
  %v1493 = vshrl.u32 %v1492, 7
  %v1494 = vsub.s32 2, %v1493
  %v1495 = vrot.slane %v1470, %v1494
  %v1496 = vlaneseq
  %v1497 = vshrl.u32 %v1496, 7
  %v1498 = vsub.s32 2, %v1497
  %v1499 = vrot.slane %v1474, %v1498
  %v1500 = vlaneseq
  %v1501 = vshrl.u32 %v1500, 7
  %v1502 = vsub.s32 2, %v1501
  %v1503 = vrot.slane %v1478, %v1502
  %v1504 = vlaneseq
  %v1505 = vshrl.u32 %v1504, 7
  %v1506 = vsub.s32 2, %v1505
  %v1507 = vrot.slane %v1482, %v1506
  %v1508 = vlaneseq
  %v1509 = vshrl.u32 %v1508, 7
  %v1510 = vsub.s32 2, %v1509
  %v1511 = vrot.slane %v1486, %v1510
  %v1512 = vmul.f32 %v1465, %v1495
  %v1513 = vmul.f32 %v1465, %v1499
  %v1514 = vmul.f32 %v1465, %v1503
  %v1515 = vmul.f32 %v1465, %v1507
  %v1516 = vmul.f32 %v1465, %v1511
  %1522 = vrot.lane.b32.xlu0 %v1512, 126
  %v1523 = vpop.permute.xlu0 %1522
  %1524 = vrot.lane.b32.xlu0 %v1513, 126
  %v1525 = vpop.permute.xlu0 %1524
  %1526 = vrot.lane.b32.xlu0 %v1514, 126
  %v1527 = vpop.permute.xlu0 %1526
  %1528 = vrot.lane.b32.xlu0 %v1515, 126
  %v1529 = vpop.permute.xlu0 %1528
  %1530 = vrot.lane.b32.xlu0 %v1516, 126
  %v1531 = vpop.permute.xlu0 %1530
  %v1532 = vsel %vm678, %v1523, %v1525
  %v1533 = vsel %vm678, %v1525, %v1527
  %v1534 = vsel %vm678, %v1527, %v1529
  %v1535 = vsel %vm678, %v1529, %v1531
  %v1541 = vadd.f32 %v1458, %v1523
  %v1542 = vadd.f32 %v1459, %v1532
  %v1543 = vadd.f32 %v1460, %v1533
  %v1544 = vadd.f32 %v1461, %v1534
  %v1545 = vadd.f32 %v1462, %v1535
  %v1546 = vld [vmem:[#allocation2 + $0x4] sm:$0x77]
  %v1547 = vld [vmem:[#allocation2 + $0xc] sm:$0x77]
  %v1548 = vld [vmem:[#allocation2 + $0x14] sm:$0x7]
  %v1553 = vcombine.low %v84, %v85
  %v1554 = vcombine.low %v86, %v87
  %1555 = vrot.lane.b32.xlu0 %v1553, 15
  %v1556 = vpop.permute.xlu0 %1555
  %1557 = vrot.lane.b32.xlu0 %v1554, 15
  %v1558 = vpop.permute.xlu0 %1557
  %v1559 = vrot.slane %v1556, 4
  %v1560 = vrot.slane %v1558, 4
  %vm1561 = vcmask 121856
  %v1562 = vsel %vm1561, %v1559, %v1556
  %v1563 = vsel %vm118, %v1559, %v1560
  %v1564 = vsel %vm1561, %v1563, %v1558
  %v1568 = vmul.f32 %v1546, %v1562
  %v1569 = vmul.f32 %v1547, %v1564
  %v1570 = vmul.f32 %v1548, %v1560
  %1571 = vset.pattern.permute.xlu0 18
  %1572 = vperm.xlu0 %1571, %v100
  %v1573 = vpop.permute.xlu0 %1572
  %v1578 = vlaneseq
  %v1579 = vshrl.u32 %v1578, 7
  %v1580 = vsub.s32 0, %v1579
  %v1581 = vrot.slane %v1568, %v1580
  %v1582 = vlaneseq
  %v1583 = vshrl.u32 %v1582, 7
  %v1584 = vsub.s32 4, %v1583
  %v1585 = vrot.slane %v1568, %v1584
  %v1586 = vlaneseq
  %v1587 = vshrl.u32 %v1586, 7
  %v1588 = vsub.s32 0, %v1587
  %v1589 = vrot.slane %v1569, %v1588
  %v1590 = vlaneseq
  %v1591 = vshrl.u32 %v1590, 7
  %v1592 = vsub.s32 4, %v1591
  %v1593 = vrot.slane %v1569, %v1592
  %v1594 = vlaneseq
  %v1595 = vshrl.u32 %v1594, 7
  %v1596 = vsub.s32 0, %v1595
  %v1597 = vrot.slane %v1570, %v1596
  %v1603 = vlaneseq
  %v1604 = vshrl.u32 %v1603, 7
  %v1605 = vsub.s32 0, %v1604
  %v1606 = vrot.slane %v1581, %v1605
  %v1607 = vlaneseq
  %v1608 = vshrl.u32 %v1607, 7
  %v1609 = vsub.s32 0, %v1608
  %v1610 = vrot.slane %v1585, %v1609
  %v1611 = vlaneseq
  %v1612 = vshrl.u32 %v1611, 7
  %v1613 = vsub.s32 0, %v1612
  %v1614 = vrot.slane %v1589, %v1613
  %v1615 = vlaneseq
  %v1616 = vshrl.u32 %v1615, 7
  %v1617 = vsub.s32 0, %v1616
  %v1618 = vrot.slane %v1593, %v1617
  %v1619 = vlaneseq
  %v1620 = vshrl.u32 %v1619, 7
  %v1621 = vsub.s32 0, %v1620
  %v1622 = vrot.slane %v1597, %v1621
  %v1623 = vmul.f32 %v1573, %v1606
  %v1624 = vmul.f32 %v1573, %v1610
  %v1625 = vmul.f32 %v1573, %v1614
  %v1626 = vmul.f32 %v1573, %v1618
  %v1627 = vmul.f32 %v1573, %v1622
  %1628 = vset.pattern.permute.xlu0 19
  %1629 = vperm.xlu0 %1628, %v100
  %v1630 = vpop.permute.xlu0 %1629
  %v1632 = vlaneseq
  %v1633 = vshrl.u32 %v1632, 7
  %v1634 = vsub.s32 1, %v1633
  %v1635 = vrot.slane %v1568, %v1634
  %v1636 = vlaneseq
  %v1637 = vshrl.u32 %v1636, 7
  %v1638 = vsub.s32 5, %v1637
  %v1639 = vrot.slane %v1568, %v1638
  %v1640 = vlaneseq
  %v1641 = vshrl.u32 %v1640, 7
  %v1642 = vsub.s32 1, %v1641
  %v1643 = vrot.slane %v1569, %v1642
  %v1644 = vlaneseq
  %v1645 = vshrl.u32 %v1644, 7
  %v1646 = vsub.s32 5, %v1645
  %v1647 = vrot.slane %v1569, %v1646
  %v1648 = vlaneseq
  %v1649 = vshrl.u32 %v1648, 7
  %v1650 = vsub.s32 1, %v1649
  %v1651 = vrot.slane %v1570, %v1650
  %v1657 = vlaneseq
  %v1658 = vshrl.u32 %v1657, 7
  %v1659 = vsub.s32 1, %v1658
  %v1660 = vrot.slane %v1635, %v1659
  %v1661 = vlaneseq
  %v1662 = vshrl.u32 %v1661, 7
  %v1663 = vsub.s32 1, %v1662
  %v1664 = vrot.slane %v1639, %v1663
  %v1665 = vlaneseq
  %v1666 = vshrl.u32 %v1665, 7
  %v1667 = vsub.s32 1, %v1666
  %v1668 = vrot.slane %v1643, %v1667
  %v1669 = vlaneseq
  %v1670 = vshrl.u32 %v1669, 7
  %v1671 = vsub.s32 1, %v1670
  %v1672 = vrot.slane %v1647, %v1671
  %v1673 = vlaneseq
  %v1674 = vshrl.u32 %v1673, 7
  %v1675 = vsub.s32 1, %v1674
  %v1676 = vrot.slane %v1651, %v1675
  %v1677 = vmul.f32 %v1630, %v1660
  %v1678 = vmul.f32 %v1630, %v1664
  %v1679 = vmul.f32 %v1630, %v1668
  %v1680 = vmul.f32 %v1630, %v1672
  %v1681 = vmul.f32 %v1630, %v1676
  %v1682 = vadd.f32 %v1623, %v1677
  %v1683 = vadd.f32 %v1624, %v1678
  %v1684 = vadd.f32 %v1625, %v1679
  %v1685 = vadd.f32 %v1626, %v1680
  %v1686 = vadd.f32 %v1627, %v1681
  %1687 = vset.pattern.permute.xlu0 20
  %1688 = vperm.xlu0 %1687, %v100
  %v1689 = vpop.permute.xlu0 %1688
  %v1691 = vlaneseq
  %v1692 = vshrl.u32 %v1691, 7
  %v1693 = vsub.s32 2, %v1692
  %v1694 = vrot.slane %v1568, %v1693
  %v1695 = vlaneseq
  %v1696 = vshrl.u32 %v1695, 7
  %v1697 = vsub.s32 6, %v1696
  %v1698 = vrot.slane %v1568, %v1697
  %v1699 = vlaneseq
  %v1700 = vshrl.u32 %v1699, 7
  %v1701 = vsub.s32 2, %v1700
  %v1702 = vrot.slane %v1569, %v1701
  %v1703 = vlaneseq
  %v1704 = vshrl.u32 %v1703, 7
  %v1705 = vsub.s32 6, %v1704
  %v1706 = vrot.slane %v1569, %v1705
  %v1707 = vlaneseq
  %v1708 = vshrl.u32 %v1707, 7
  %v1709 = vsub.s32 2, %v1708
  %v1710 = vrot.slane %v1570, %v1709
  %v1716 = vlaneseq
  %v1717 = vshrl.u32 %v1716, 7
  %v1718 = vsub.s32 2, %v1717
  %v1719 = vrot.slane %v1694, %v1718
  %v1720 = vlaneseq
  %v1721 = vshrl.u32 %v1720, 7
  %v1722 = vsub.s32 2, %v1721
  %v1723 = vrot.slane %v1698, %v1722
  %v1724 = vlaneseq
  %v1725 = vshrl.u32 %v1724, 7
  %v1726 = vsub.s32 2, %v1725
  %v1727 = vrot.slane %v1702, %v1726
  %v1728 = vlaneseq
  %v1729 = vshrl.u32 %v1728, 7
  %v1730 = vsub.s32 2, %v1729
  %v1731 = vrot.slane %v1706, %v1730
  %v1732 = vlaneseq
  %v1733 = vshrl.u32 %v1732, 7
  %v1734 = vsub.s32 2, %v1733
  %v1735 = vrot.slane %v1710, %v1734
  %v1736 = vmul.f32 %v1689, %v1719
  %v1737 = vmul.f32 %v1689, %v1723
  %v1738 = vmul.f32 %v1689, %v1727
  %v1739 = vmul.f32 %v1689, %v1731
  %v1740 = vmul.f32 %v1689, %v1735
  %v1741 = vadd.f32 %v1682, %v1736
  %v1742 = vadd.f32 %v1683, %v1737
  %v1743 = vadd.f32 %v1684, %v1738
  %v1744 = vadd.f32 %v1685, %v1739
  %v1745 = vadd.f32 %v1686, %v1740
  %v1746 = vld [vmem:[#allocation2 + $0x4] sm:$0x77]
  %v1747 = vld [vmem:[#allocation2 + $0xc] sm:$0x77]
  %v1748 = vld [vmem:[#allocation2 + $0x14] sm:$0x7]
  %v1753 = vcombine.low %v72, %v73
  %v1754 = vcombine.low %v74, %v75
  %1755 = vrot.lane.b32.xlu0 %v1753, 16
  %v1756 = vpop.permute.xlu0 %1755
  %1757 = vrot.lane.b32.xlu0 %v1754, 16
  %v1758 = vpop.permute.xlu0 %1757
  %v1759 = vrot.slane %v1756, 4
  %v1760 = vrot.slane %v1758, 4
  %vm1761 = vcmask 130048
  %v1762 = vsel %vm1761, %v1759, %v1756
  %v1763 = vsel %vm118, %v1759, %v1760
  %v1764 = vsel %vm1761, %v1763, %v1758
  %v1768 = vmul.f32 %v1746, %v1762
  %v1769 = vmul.f32 %v1747, %v1764
  %v1770 = vmul.f32 %v1748, %v1760
  %1771 = vset.pattern.permute.xlu0 21
  %1772 = vperm.xlu0 %1771, %v100
  %v1773 = vpop.permute.xlu0 %1772
  %v1778 = vlaneseq
  %v1779 = vshrl.u32 %v1778, 7
  %v1780 = vsub.s32 0, %v1779
  %v1781 = vrot.slane %v1768, %v1780
  %v1782 = vlaneseq
  %v1783 = vshrl.u32 %v1782, 7
  %v1784 = vsub.s32 4, %v1783
  %v1785 = vrot.slane %v1768, %v1784
  %v1786 = vlaneseq
  %v1787 = vshrl.u32 %v1786, 7
  %v1788 = vsub.s32 0, %v1787
  %v1789 = vrot.slane %v1769, %v1788
  %v1790 = vlaneseq
  %v1791 = vshrl.u32 %v1790, 7
  %v1792 = vsub.s32 4, %v1791
  %v1793 = vrot.slane %v1769, %v1792
  %v1794 = vlaneseq
  %v1795 = vshrl.u32 %v1794, 7
  %v1796 = vsub.s32 0, %v1795
  %v1797 = vrot.slane %v1770, %v1796
  %v1803 = vlaneseq
  %v1804 = vshrl.u32 %v1803, 7
  %v1805 = vsub.s32 0, %v1804
  %v1806 = vrot.slane %v1781, %v1805
  %v1807 = vlaneseq
  %v1808 = vshrl.u32 %v1807, 7
  %v1809 = vsub.s32 0, %v1808
  %v1810 = vrot.slane %v1785, %v1809
  %v1811 = vlaneseq
  %v1812 = vshrl.u32 %v1811, 7
  %v1813 = vsub.s32 0, %v1812
  %v1814 = vrot.slane %v1789, %v1813
  %v1815 = vlaneseq
  %v1816 = vshrl.u32 %v1815, 7
  %v1817 = vsub.s32 0, %v1816
  %v1818 = vrot.slane %v1793, %v1817
  %v1819 = vlaneseq
  %v1820 = vshrl.u32 %v1819, 7
  %v1821 = vsub.s32 0, %v1820
  %v1822 = vrot.slane %v1797, %v1821
  %v1823 = vmul.f32 %v1773, %v1806
  %v1824 = vmul.f32 %v1773, %v1810
  %v1825 = vmul.f32 %v1773, %v1814
  %v1826 = vmul.f32 %v1773, %v1818
  %v1827 = vmul.f32 %v1773, %v1822
  %1833 = vrot.lane.b32.xlu0 %v1823, 127
  %v1834 = vpop.permute.xlu0 %1833
  %1835 = vrot.lane.b32.xlu0 %v1824, 127
  %v1836 = vpop.permute.xlu0 %1835
  %1837 = vrot.lane.b32.xlu0 %v1825, 127
  %v1838 = vpop.permute.xlu0 %1837
  %1839 = vrot.lane.b32.xlu0 %v1826, 127
  %v1840 = vpop.permute.xlu0 %1839
  %1841 = vrot.lane.b32.xlu0 %v1827, 127
  %v1842 = vpop.permute.xlu0 %1841
  %v1843 = vsel %vm400, %v1834, %v1836
  %v1844 = vsel %vm400, %v1836, %v1838
  %v1845 = vsel %vm400, %v1838, %v1840
  %v1846 = vsel %vm400, %v1840, %v1842
  %v1852 = vadd.f32 %v1741, %v1843
  %v1853 = vadd.f32 %v1742, %v1844
  %v1854 = vadd.f32 %v1743, %v1845
  %v1855 = vadd.f32 %v1744, %v1846
  %v1856 = vadd.f32 %v1745, %v1842
  %1857 = vset.pattern.permute.xlu0 22
  %1858 = vperm.xlu0 %1857, %v100
  %v1859 = vpop.permute.xlu0 %1858
  %v1861 = vlaneseq
  %v1862 = vshrl.u32 %v1861, 7
  %v1863 = vsub.s32 1, %v1862
  %v1864 = vrot.slane %v1768, %v1863
  %v1865 = vlaneseq
  %v1866 = vshrl.u32 %v1865, 7
  %v1867 = vsub.s32 5, %v1866
  %v1868 = vrot.slane %v1768, %v1867
  %v1869 = vlaneseq
  %v1870 = vshrl.u32 %v1869, 7
  %v1871 = vsub.s32 1, %v1870
  %v1872 = vrot.slane %v1769, %v1871
  %v1873 = vlaneseq
  %v1874 = vshrl.u32 %v1873, 7
  %v1875 = vsub.s32 5, %v1874
  %v1876 = vrot.slane %v1769, %v1875
  %v1877 = vlaneseq
  %v1878 = vshrl.u32 %v1877, 7
  %v1879 = vsub.s32 1, %v1878
  %v1880 = vrot.slane %v1770, %v1879
  %v1886 = vlaneseq
  %v1887 = vshrl.u32 %v1886, 7
  %v1888 = vsub.s32 1, %v1887
  %v1889 = vrot.slane %v1864, %v1888
  %v1890 = vlaneseq
  %v1891 = vshrl.u32 %v1890, 7
  %v1892 = vsub.s32 1, %v1891
  %v1893 = vrot.slane %v1868, %v1892
  %v1894 = vlaneseq
  %v1895 = vshrl.u32 %v1894, 7
  %v1896 = vsub.s32 1, %v1895
  %v1897 = vrot.slane %v1872, %v1896
  %v1898 = vlaneseq
  %v1899 = vshrl.u32 %v1898, 7
  %v1900 = vsub.s32 1, %v1899
  %v1901 = vrot.slane %v1876, %v1900
  %v1902 = vlaneseq
  %v1903 = vshrl.u32 %v1902, 7
  %v1904 = vsub.s32 1, %v1903
  %v1905 = vrot.slane %v1880, %v1904
  %v1906 = vmul.f32 %v1859, %v1889
  %v1907 = vmul.f32 %v1859, %v1893
  %v1908 = vmul.f32 %v1859, %v1897
  %v1909 = vmul.f32 %v1859, %v1901
  %v1910 = vmul.f32 %v1859, %v1905
  %1916 = vrot.lane.b32.xlu0 %v1906, 127
  %v1917 = vpop.permute.xlu0 %1916
  %1918 = vrot.lane.b32.xlu0 %v1907, 127
  %v1919 = vpop.permute.xlu0 %1918
  %1920 = vrot.lane.b32.xlu0 %v1908, 127
  %v1921 = vpop.permute.xlu0 %1920
  %1922 = vrot.lane.b32.xlu0 %v1909, 127
  %v1923 = vpop.permute.xlu0 %1922
  %1924 = vrot.lane.b32.xlu0 %v1910, 127
  %v1925 = vpop.permute.xlu0 %1924
  %v1926 = vsel %vm400, %v1917, %v1919
  %v1927 = vsel %vm400, %v1919, %v1921
  %v1928 = vsel %vm400, %v1921, %v1923
  %v1929 = vsel %vm400, %v1923, %v1925
  %v1935 = vadd.f32 %v1852, %v1926
  %v1936 = vadd.f32 %v1853, %v1927
  %v1937 = vadd.f32 %v1854, %v1928
  %v1938 = vadd.f32 %v1855, %v1929
  %v1939 = vadd.f32 %v1856, %v1925
  %1940 = vset.pattern.permute.xlu0 23
  %1941 = vperm.xlu0 %1940, %v100
  %v1942 = vpop.permute.xlu0 %1941
  %v1944 = vlaneseq
  %v1945 = vshrl.u32 %v1944, 7
  %v1946 = vsub.s32 2, %v1945
  %v1947 = vrot.slane %v1768, %v1946
  %v1948 = vlaneseq
  %v1949 = vshrl.u32 %v1948, 7
  %v1950 = vsub.s32 6, %v1949
  %v1951 = vrot.slane %v1768, %v1950
  %v1952 = vlaneseq
  %v1953 = vshrl.u32 %v1952, 7
  %v1954 = vsub.s32 2, %v1953
  %v1955 = vrot.slane %v1769, %v1954
  %v1956 = vlaneseq
  %v1957 = vshrl.u32 %v1956, 7
  %v1958 = vsub.s32 6, %v1957
  %v1959 = vrot.slane %v1769, %v1958
  %v1960 = vlaneseq
  %v1961 = vshrl.u32 %v1960, 7
  %v1962 = vsub.s32 2, %v1961
  %v1963 = vrot.slane %v1770, %v1962
  %v1969 = vlaneseq
  %v1970 = vshrl.u32 %v1969, 7
  %v1971 = vsub.s32 2, %v1970
  %v1972 = vrot.slane %v1947, %v1971
  %v1973 = vlaneseq
  %v1974 = vshrl.u32 %v1973, 7
  %v1975 = vsub.s32 2, %v1974
  %v1976 = vrot.slane %v1951, %v1975
  %v1977 = vlaneseq
  %v1978 = vshrl.u32 %v1977, 7
  %v1979 = vsub.s32 2, %v1978
  %v1980 = vrot.slane %v1955, %v1979
  %v1981 = vlaneseq
  %v1982 = vshrl.u32 %v1981, 7
  %v1983 = vsub.s32 2, %v1982
  %v1984 = vrot.slane %v1959, %v1983
  %v1985 = vlaneseq
  %v1986 = vshrl.u32 %v1985, 7
  %v1987 = vsub.s32 2, %v1986
  %v1988 = vrot.slane %v1963, %v1987
  %v1989 = vmul.f32 %v1942, %v1972
  %v1990 = vmul.f32 %v1942, %v1976
  %v1991 = vmul.f32 %v1942, %v1980
  %v1992 = vmul.f32 %v1942, %v1984
  %v1993 = vmul.f32 %v1942, %v1988
  %1999 = vrot.lane.b32.xlu0 %v1989, 127
  %v2000 = vpop.permute.xlu0 %1999
  %2001 = vrot.lane.b32.xlu0 %v1990, 127
  %v2002 = vpop.permute.xlu0 %2001
  %2003 = vrot.lane.b32.xlu0 %v1991, 127
  %v2004 = vpop.permute.xlu0 %2003
  %2005 = vrot.lane.b32.xlu0 %v1992, 127
  %v2006 = vpop.permute.xlu0 %2005
  %2007 = vrot.lane.b32.xlu0 %v1993, 127
  %v2008 = vpop.permute.xlu0 %2007
  %v2009 = vsel %vm400, %v2000, %v2002
  %v2010 = vsel %vm400, %v2002, %v2004
  %v2011 = vsel %vm400, %v2004, %v2006
  %v2012 = vsel %vm400, %v2006, %v2008
  %v2018 = vadd.f32 %v1935, %v2009
  %v2019 = vadd.f32 %v1936, %v2010
  %v2020 = vadd.f32 %v1937, %v2011
  %v2021 = vadd.f32 %v1938, %v2012
  %v2022 = vadd.f32 %v1939, %v2008
  %v2023 = vld [vmem:[#allocation2 + $0x4] sm:$0x77]
  %v2024 = vld [vmem:[#allocation2 + $0xc] sm:$0x77]
  %v2025 = vld [vmem:[#allocation2 + $0x14] sm:$0x7]
  %v2030 = vcombine.low %v88, %v89
  %v2031 = vcombine.low %v90, %v91
  %2032 = vrot.lane.b32.xlu0 %v2030, 17
  %v2033 = vpop.permute.xlu0 %2032
  %2034 = vrot.lane.b32.xlu0 %v2031, 17
  %v2035 = vpop.permute.xlu0 %2034
  %v2036 = vrot.slane %v2033, 4
  %v2037 = vrot.slane %v2035, 4
  %vm2038 = vcmask 138240
  %v2039 = vsel %vm2038, %v2036, %v2033
  %v2040 = vsel %vm118, %v2036, %v2037
  %v2041 = vsel %vm2038, %v2040, %v2035
  %v2045 = vmul.f32 %v2023, %v2039
  %v2046 = vmul.f32 %v2024, %v2041
  %v2047 = vmul.f32 %v2025, %v2037
  %2048 = vset.pattern.permute.xlu0 24
  %2049 = vperm.xlu0 %2048, %v100
  %v2050 = vpop.permute.xlu0 %2049
  %v2055 = vlaneseq
  %v2056 = vshrl.u32 %v2055, 7
  %v2057 = vsub.s32 0, %v2056
  %v2058 = vrot.slane %v2045, %v2057
  %v2059 = vlaneseq
  %v2060 = vshrl.u32 %v2059, 7
  %v2061 = vsub.s32 4, %v2060
  %v2062 = vrot.slane %v2045, %v2061
  %v2063 = vlaneseq
  %v2064 = vshrl.u32 %v2063, 7
  %v2065 = vsub.s32 0, %v2064
  %v2066 = vrot.slane %v2046, %v2065
  %v2067 = vlaneseq
  %v2068 = vshrl.u32 %v2067, 7
  %v2069 = vsub.s32 4, %v2068
  %v2070 = vrot.slane %v2046, %v2069
  %v2071 = vlaneseq
  %v2072 = vshrl.u32 %v2071, 7
  %v2073 = vsub.s32 0, %v2072
  %v2074 = vrot.slane %v2047, %v2073
  %v2080 = vlaneseq
  %v2081 = vshrl.u32 %v2080, 7
  %v2082 = vsub.s32 0, %v2081
  %v2083 = vrot.slane %v2058, %v2082
  %v2084 = vlaneseq
  %v2085 = vshrl.u32 %v2084, 7
  %v2086 = vsub.s32 0, %v2085
  %v2087 = vrot.slane %v2062, %v2086
  %v2088 = vlaneseq
  %v2089 = vshrl.u32 %v2088, 7
  %v2090 = vsub.s32 0, %v2089
  %v2091 = vrot.slane %v2066, %v2090
  %v2092 = vlaneseq
  %v2093 = vshrl.u32 %v2092, 7
  %v2094 = vsub.s32 0, %v2093
  %v2095 = vrot.slane %v2070, %v2094
  %v2096 = vlaneseq
  %v2097 = vshrl.u32 %v2096, 7
  %v2098 = vsub.s32 0, %v2097
  %v2099 = vrot.slane %v2074, %v2098
  %v2100 = vmul.f32 %v2050, %v2083
  %v2101 = vmul.f32 %v2050, %v2087
  %v2102 = vmul.f32 %v2050, %v2091
  %v2103 = vmul.f32 %v2050, %v2095
  %v2104 = vmul.f32 %v2050, %v2099
  %2110 = vrot.lane.b32.xlu0 %v2100, 126
  %v2111 = vpop.permute.xlu0 %2110
  %2112 = vrot.lane.b32.xlu0 %v2101, 126
  %v2113 = vpop.permute.xlu0 %2112
  %2114 = vrot.lane.b32.xlu0 %v2102, 126
  %v2115 = vpop.permute.xlu0 %2114
  %2116 = vrot.lane.b32.xlu0 %v2103, 126
  %v2117 = vpop.permute.xlu0 %2116
  %2118 = vrot.lane.b32.xlu0 %v2104, 126
  %v2119 = vpop.permute.xlu0 %2118
  %v2120 = vsel %vm678, %v2111, %v2113
  %v2121 = vsel %vm678, %v2113, %v2115
  %v2122 = vsel %vm678, %v2115, %v2117
  %v2123 = vsel %vm678, %v2117, %v2119
  %v2129 = vadd.f32 %v2018, %v2120
  %v2130 = vadd.f32 %v2019, %v2121
  %v2131 = vadd.f32 %v2020, %v2122
  %v2132 = vadd.f32 %v2021, %v2123
  %v2133 = vadd.f32 %v2022, %v2119
  %2134 = vset.pattern.permute.xlu0 25
  %2135 = vperm.xlu0 %2134, %v100
  %v2136 = vpop.permute.xlu0 %2135
  %v2138 = vlaneseq
  %v2139 = vshrl.u32 %v2138, 7
  %v2140 = vsub.s32 1, %v2139
  %v2141 = vrot.slane %v2045, %v2140
  %v2142 = vlaneseq
  %v2143 = vshrl.u32 %v2142, 7
  %v2144 = vsub.s32 5, %v2143
  %v2145 = vrot.slane %v2045, %v2144
  %v2146 = vlaneseq
  %v2147 = vshrl.u32 %v2146, 7
  %v2148 = vsub.s32 1, %v2147
  %v2149 = vrot.slane %v2046, %v2148
  %v2150 = vlaneseq
  %v2151 = vshrl.u32 %v2150, 7
  %v2152 = vsub.s32 5, %v2151
  %v2153 = vrot.slane %v2046, %v2152
  %v2154 = vlaneseq
  %v2155 = vshrl.u32 %v2154, 7
  %v2156 = vsub.s32 1, %v2155
  %v2157 = vrot.slane %v2047, %v2156
  %v2163 = vlaneseq
  %v2164 = vshrl.u32 %v2163, 7
  %v2165 = vsub.s32 1, %v2164
  %v2166 = vrot.slane %v2141, %v2165
  %v2167 = vlaneseq
  %v2168 = vshrl.u32 %v2167, 7
  %v2169 = vsub.s32 1, %v2168
  %v2170 = vrot.slane %v2145, %v2169
  %v2171 = vlaneseq
  %v2172 = vshrl.u32 %v2171, 7
  %v2173 = vsub.s32 1, %v2172
  %v2174 = vrot.slane %v2149, %v2173
  %v2175 = vlaneseq
  %v2176 = vshrl.u32 %v2175, 7
  %v2177 = vsub.s32 1, %v2176
  %v2178 = vrot.slane %v2153, %v2177
  %v2179 = vlaneseq
  %v2180 = vshrl.u32 %v2179, 7
  %v2181 = vsub.s32 1, %v2180
  %v2182 = vrot.slane %v2157, %v2181
  %v2183 = vmul.f32 %v2136, %v2166
  %v2184 = vmul.f32 %v2136, %v2170
  %v2185 = vmul.f32 %v2136, %v2174
  %v2186 = vmul.f32 %v2136, %v2178
  %v2187 = vmul.f32 %v2136, %v2182
  %2193 = vrot.lane.b32.xlu0 %v2183, 126
  %v2194 = vpop.permute.xlu0 %2193
  %2195 = vrot.lane.b32.xlu0 %v2184, 126
  %v2196 = vpop.permute.xlu0 %2195
  %2197 = vrot.lane.b32.xlu0 %v2185, 126
  %v2198 = vpop.permute.xlu0 %2197
  %2199 = vrot.lane.b32.xlu0 %v2186, 126
  %v2200 = vpop.permute.xlu0 %2199
  %2201 = vrot.lane.b32.xlu0 %v2187, 126
  %v2202 = vpop.permute.xlu0 %2201
  %v2203 = vsel %vm678, %v2194, %v2196
  %v2204 = vsel %vm678, %v2196, %v2198
  %v2205 = vsel %vm678, %v2198, %v2200
  %v2206 = vsel %vm678, %v2200, %v2202
  %v2212 = vadd.f32 %v2129, %v2203
  %v2213 = vadd.f32 %v2130, %v2204
  %v2214 = vadd.f32 %v2131, %v2205
  %v2215 = vadd.f32 %v2132, %v2206
  %v2216 = vadd.f32 %v2133, %v2202
  %2217 = vset.pattern.permute.xlu0 26
  %2218 = vperm.xlu0 %2217, %v100
  %v2219 = vpop.permute.xlu0 %2218
  %v2221 = vlaneseq
  %v2222 = vshrl.u32 %v2221, 7
  %v2223 = vsub.s32 2, %v2222
  %v2224 = vrot.slane %v2045, %v2223
  %v2225 = vlaneseq
  %v2226 = vshrl.u32 %v2225, 7
  %v2227 = vsub.s32 6, %v2226
  %v2228 = vrot.slane %v2045, %v2227
  %v2229 = vlaneseq
  %v2230 = vshrl.u32 %v2229, 7
  %v2231 = vsub.s32 2, %v2230
  %v2232 = vrot.slane %v2046, %v2231
  %v2233 = vlaneseq
  %v2234 = vshrl.u32 %v2233, 7
  %v2235 = vsub.s32 6, %v2234
  %v2236 = vrot.slane %v2046, %v2235
  %v2237 = vlaneseq
  %v2238 = vshrl.u32 %v2237, 7
  %v2239 = vsub.s32 2, %v2238
  %v2240 = vrot.slane %v2047, %v2239
  %v2246 = vlaneseq
  %v2247 = vshrl.u32 %v2246, 7
  %v2248 = vsub.s32 2, %v2247
  %v2249 = vrot.slane %v2224, %v2248
  %v2250 = vlaneseq
  %v2251 = vshrl.u32 %v2250, 7
  %v2252 = vsub.s32 2, %v2251
  %v2253 = vrot.slane %v2228, %v2252
  %v2254 = vlaneseq
  %v2255 = vshrl.u32 %v2254, 7
  %v2256 = vsub.s32 2, %v2255
  %v2257 = vrot.slane %v2232, %v2256
  %v2258 = vlaneseq
  %v2259 = vshrl.u32 %v2258, 7
  %v2260 = vsub.s32 2, %v2259
  %v2261 = vrot.slane %v2236, %v2260
  %v2262 = vlaneseq
  %v2263 = vshrl.u32 %v2262, 7
  %v2264 = vsub.s32 2, %v2263
  %v2265 = vrot.slane %v2240, %v2264
  %v2266 = vmul.f32 %v2219, %v2249
  %v2267 = vmul.f32 %v2219, %v2253
  %v2268 = vmul.f32 %v2219, %v2257
  %v2269 = vmul.f32 %v2219, %v2261
  %v2270 = vmul.f32 %v2219, %v2265
  %2276 = vrot.lane.b32.xlu0 %v2266, 126
  %v2277 = vpop.permute.xlu0 %2276
  %2278 = vrot.lane.b32.xlu0 %v2267, 126
  %v2279 = vpop.permute.xlu0 %2278
  %2280 = vrot.lane.b32.xlu0 %v2268, 126
  %v2281 = vpop.permute.xlu0 %2280
  %2282 = vrot.lane.b32.xlu0 %v2269, 126
  %v2283 = vpop.permute.xlu0 %2282
  %2284 = vrot.lane.b32.xlu0 %v2270, 126
  %v2285 = vpop.permute.xlu0 %2284
  %v2286 = vsel %vm678, %v2277, %v2279
  %v2287 = vsel %vm678, %v2279, %v2281
  %v2288 = vsel %vm678, %v2281, %v2283
  %v2289 = vsel %vm678, %v2283, %v2285
  %v2295 = vadd.f32 %v2212, %v2286
  %v2296 = vadd.f32 %v2213, %v2287
  %v2297 = vadd.f32 %v2214, %v2288
  %v2298 = vadd.f32 %v2215, %v2289
  %v2299 = vadd.f32 %v2216, %v2285
  %2305 = vrot.lane.b32.xlu0 %v1541, 112
  %v2306 = vpop.permute.xlu0 %2305
  %2307 = vrot.lane.b32.xlu0 %v1542, 112
  %v2308 = vpop.permute.xlu0 %2307
  %2309 = vrot.lane.b32.xlu0 %v1543, 112
  %v2310 = vpop.permute.xlu0 %2309
  %2311 = vrot.lane.b32.xlu0 %v1544, 112
  %v2312 = vpop.permute.xlu0 %2311
  %2313 = vrot.lane.b32.xlu0 %v1545, 112
  %v2314 = vpop.permute.xlu0 %2313
  %v2315 = vsel %vm318, %v2306, %v2308
  %v2316 = vsel %vm318, %v2308, %v2310
  %v2317 = vsel %vm318, %v2310, %v2312
  %v2318 = vsel %vm318, %v2312, %v2314
  %v2324 = vadd.f32 %v854, %v2315
  %v2325 = vadd.f32 %v855, %v2316
  %v2326 = vadd.f32 %v856, %v2317
  %v2327 = vadd.f32 %v857, %v2318
  %v2328 = vadd.f32 %v858, %v2314
  %2334 = vrot.lane.b32.xlu0 %v2295, 96
  %v2335 = vpop.permute.xlu0 %2334
  %2336 = vrot.lane.b32.xlu0 %v2296, 96
  %v2337 = vpop.permute.xlu0 %2336
  %2338 = vrot.lane.b32.xlu0 %v2297, 96
  %v2339 = vpop.permute.xlu0 %2338
  %2340 = vrot.lane.b32.xlu0 %v2298, 96
  %v2341 = vpop.permute.xlu0 %2340
  %2342 = vrot.lane.b32.xlu0 %v2299, 96
  %v2343 = vpop.permute.xlu0 %2342
  %vm2344 = vcmask 785408
  %v2345 = vsel %vm2344, %v2335, %v2337
  %v2346 = vsel %vm2344, %v2337, %v2339
  %v2347 = vsel %vm2344, %v2339, %v2341
  %v2348 = vsel %vm2344, %v2341, %v2343
  %v2354 = vadd.f32 %v2324, %v2335
  %v2355 = vadd.f32 %v2325, %v2345
  %v2356 = vadd.f32 %v2326, %v2346
  %v2357 = vadd.f32 %v2327, %v2347
  %v2358 = vadd.f32 %v2328, %v2348
  %v2364 = vcombine.low %v2354, %v2355
  %v2365 = vcombine.low %v2356, %v2357
  %2366 = vrot.lane.b32.xlu0 %v2364, 17
  %v2367 = vpop.permute.xlu0 %2366
  %2368 = vrot.lane.b32.xlu0 %v2365, 17
  %v2369 = vpop.permute.xlu0 %2368
  %2370 = vrot.lane.b32.xlu0 %v2358, 17
  %v2371 = vpop.permute.xlu0 %2370
  %v2372 = vrot.slane %v2367, 4
  %v2373 = vrot.slane %v2369, 4
  %v2374 = vrot.slane %v2371, 4
  %v2375 = vsel %vm118, %v2372, %v2373
  %v2376 = vsel %vm2038, %v2367, %v2375
  %v2377 = vsel %vm118, %v2373, %v2374
  %v2378 = vsel %vm2038, %v2369, %v2377
  %2381 = vst [vmem:[#allocation3 + $0x4] sm:$0x77] %v2376
  %2382 = vst [vmem:[#allocation3 + $0xc] sm:$0x77] %v2378
  %s2383 = scalar_lea.vmem %s0, 4
  %v2384 = vld [vmem:[%s2383] sm:$0x7]
  %v2385 = vld [vmem:[#allocation3] sm:$0x77]
  %v2386 = vld [vmem:[#allocation3 + $0x8] sm:$0x77]
  %v2387 = vld [vmem:[#allocation3 + $0x10] sm:$0x7]
  %v2388 = vmul.f32 %v2385, %v117
  %v2389 = vmul.f32 %v2386, %v120
  %v2390 = vmul.f32 %v2387, %v115
  %2392 = vset.pattern.permute.xlu0 0
  %2393 = vperm.xlu0 %2392, %v2384
  %v2394 = vpop.permute.xlu0 %2393
  %v2399 = vlaneseq
  %v2400 = vshrl.u32 %v2399, 7
  %v2401 = vsub.s32 0, %v2400
  %v2402 = vrot.slane %v2388, %v2401
  %v2403 = vlaneseq
  %v2404 = vshrl.u32 %v2403, 7
  %v2405 = vsub.s32 4, %v2404
  %v2406 = vrot.slane %v2388, %v2405
  %v2407 = vlaneseq
  %v2408 = vshrl.u32 %v2407, 7
  %v2409 = vsub.s32 0, %v2408
  %v2410 = vrot.slane %v2389, %v2409
  %v2411 = vlaneseq
  %v2412 = vshrl.u32 %v2411, 7
  %v2413 = vsub.s32 4, %v2412
  %v2414 = vrot.slane %v2389, %v2413
  %v2415 = vlaneseq
  %v2416 = vshrl.u32 %v2415, 7
  %v2417 = vsub.s32 0, %v2416
  %v2418 = vrot.slane %v2390, %v2417
  %v2424 = vlaneseq
  %v2425 = vshrl.u32 %v2424, 7
  %v2426 = vsub.s32 0, %v2425
  %v2427 = vrot.slane %v2402, %v2426
  %v2428 = vlaneseq
  %v2429 = vshrl.u32 %v2428, 7
  %v2430 = vsub.s32 0, %v2429
  %v2431 = vrot.slane %v2406, %v2430
  %v2432 = vlaneseq
  %v2433 = vshrl.u32 %v2432, 7
  %v2434 = vsub.s32 0, %v2433
  %v2435 = vrot.slane %v2410, %v2434
  %v2436 = vlaneseq
  %v2437 = vshrl.u32 %v2436, 7
  %v2438 = vsub.s32 0, %v2437
  %v2439 = vrot.slane %v2414, %v2438
  %v2440 = vlaneseq
  %v2441 = vshrl.u32 %v2440, 7
  %v2442 = vsub.s32 0, %v2441
  %v2443 = vrot.slane %v2418, %v2442
  %v2444 = vmul.f32 %v2394, %v2427
  %v2445 = vmul.f32 %v2394, %v2431
  %v2446 = vmul.f32 %v2394, %v2435
  %v2447 = vmul.f32 %v2394, %v2439
  %v2448 = vmul.f32 %v2394, %v2443
  %2449 = vset.pattern.permute.xlu0 1
  %2450 = vperm.xlu0 %2449, %v2384
  %v2451 = vpop.permute.xlu0 %2450
  %v2453 = vlaneseq
  %v2454 = vshrl.u32 %v2453, 7
  %v2455 = vsub.s32 1, %v2454
  %v2456 = vrot.slane %v2388, %v2455
  %v2457 = vlaneseq
  %v2458 = vshrl.u32 %v2457, 7
  %v2459 = vsub.s32 5, %v2458
  %v2460 = vrot.slane %v2388, %v2459
  %v2461 = vlaneseq
  %v2462 = vshrl.u32 %v2461, 7
  %v2463 = vsub.s32 1, %v2462
  %v2464 = vrot.slane %v2389, %v2463
  %v2465 = vlaneseq
  %v2466 = vshrl.u32 %v2465, 7
  %v2467 = vsub.s32 5, %v2466
  %v2468 = vrot.slane %v2389, %v2467
  %v2469 = vlaneseq
  %v2470 = vshrl.u32 %v2469, 7
  %v2471 = vsub.s32 1, %v2470
  %v2472 = vrot.slane %v2390, %v2471
  %v2478 = vlaneseq
  %v2479 = vshrl.u32 %v2478, 7
  %v2480 = vsub.s32 1, %v2479
  %v2481 = vrot.slane %v2456, %v2480
  %v2482 = vlaneseq
  %v2483 = vshrl.u32 %v2482, 7
  %v2484 = vsub.s32 1, %v2483
  %v2485 = vrot.slane %v2460, %v2484
  %v2486 = vlaneseq
  %v2487 = vshrl.u32 %v2486, 7
  %v2488 = vsub.s32 1, %v2487
  %v2489 = vrot.slane %v2464, %v2488
  %v2490 = vlaneseq
  %v2491 = vshrl.u32 %v2490, 7
  %v2492 = vsub.s32 1, %v2491
  %v2493 = vrot.slane %v2468, %v2492
  %v2494 = vlaneseq
  %v2495 = vshrl.u32 %v2494, 7
  %v2496 = vsub.s32 1, %v2495
  %v2497 = vrot.slane %v2472, %v2496
  %v2498 = vmul.f32 %v2451, %v2481
  %v2499 = vmul.f32 %v2451, %v2485
  %v2500 = vmul.f32 %v2451, %v2489
  %v2501 = vmul.f32 %v2451, %v2493
  %v2502 = vmul.f32 %v2451, %v2497
  %v2503 = vadd.f32 %v2444, %v2498
  %v2504 = vadd.f32 %v2445, %v2499
  %v2505 = vadd.f32 %v2446, %v2500
  %v2506 = vadd.f32 %v2447, %v2501
  %v2507 = vadd.f32 %v2448, %v2502
  %2508 = vset.pattern.permute.xlu0 2
  %2509 = vperm.xlu0 %2508, %v2384
  %v2510 = vpop.permute.xlu0 %2509
  %v2512 = vlaneseq
  %v2513 = vshrl.u32 %v2512, 7
  %v2514 = vsub.s32 2, %v2513
  %v2515 = vrot.slane %v2388, %v2514
  %v2516 = vlaneseq
  %v2517 = vshrl.u32 %v2516, 7
  %v2518 = vsub.s32 6, %v2517
  %v2519 = vrot.slane %v2388, %v2518
  %v2520 = vlaneseq
  %v2521 = vshrl.u32 %v2520, 7
  %v2522 = vsub.s32 2, %v2521
  %v2523 = vrot.slane %v2389, %v2522
  %v2524 = vlaneseq
  %v2525 = vshrl.u32 %v2524, 7
  %v2526 = vsub.s32 6, %v2525
  %v2527 = vrot.slane %v2389, %v2526
  %v2528 = vlaneseq
  %v2529 = vshrl.u32 %v2528, 7
  %v2530 = vsub.s32 2, %v2529
  %v2531 = vrot.slane %v2390, %v2530
  %v2537 = vlaneseq
  %v2538 = vshrl.u32 %v2537, 7
  %v2539 = vsub.s32 2, %v2538
  %v2540 = vrot.slane %v2515, %v2539
  %v2541 = vlaneseq
  %v2542 = vshrl.u32 %v2541, 7
  %v2543 = vsub.s32 2, %v2542
  %v2544 = vrot.slane %v2519, %v2543
  %v2545 = vlaneseq
  %v2546 = vshrl.u32 %v2545, 7
  %v2547 = vsub.s32 2, %v2546
  %v2548 = vrot.slane %v2523, %v2547
  %v2549 = vlaneseq
  %v2550 = vshrl.u32 %v2549, 7
  %v2551 = vsub.s32 2, %v2550
  %v2552 = vrot.slane %v2527, %v2551
  %v2553 = vlaneseq
  %v2554 = vshrl.u32 %v2553, 7
  %v2555 = vsub.s32 2, %v2554
  %v2556 = vrot.slane %v2531, %v2555
  %v2557 = vmul.f32 %v2510, %v2540
  %v2558 = vmul.f32 %v2510, %v2544
  %v2559 = vmul.f32 %v2510, %v2548
  %v2560 = vmul.f32 %v2510, %v2552
  %v2561 = vmul.f32 %v2510, %v2556
  %v2562 = vadd.f32 %v2503, %v2557
  %v2563 = vadd.f32 %v2504, %v2558
  %v2564 = vadd.f32 %v2505, %v2559
  %v2565 = vadd.f32 %v2506, %v2560
  %v2566 = vadd.f32 %v2507, %v2561
  %v2567 = vld [vmem:[#allocation3] sm:$0x77]
  %v2568 = vld [vmem:[#allocation3 + $0x8] sm:$0x77]
  %v2569 = vld [vmem:[#allocation3 + $0x10] sm:$0x7]
  %v2570 = vmul.f32 %v2567, %v319
  %v2571 = vmul.f32 %v2568, %v321
  %v2572 = vmul.f32 %v2569, %v317
  %2573 = vset.pattern.permute.xlu0 3
  %2574 = vperm.xlu0 %2573, %v2384
  %v2575 = vpop.permute.xlu0 %2574
  %v2580 = vlaneseq
  %v2581 = vshrl.u32 %v2580, 7
  %v2582 = vsub.s32 0, %v2581
  %v2583 = vrot.slane %v2570, %v2582
  %v2584 = vlaneseq
  %v2585 = vshrl.u32 %v2584, 7
  %v2586 = vsub.s32 4, %v2585
  %v2587 = vrot.slane %v2570, %v2586
  %v2588 = vlaneseq
  %v2589 = vshrl.u32 %v2588, 7
  %v2590 = vsub.s32 0, %v2589
  %v2591 = vrot.slane %v2571, %v2590
  %v2592 = vlaneseq
  %v2593 = vshrl.u32 %v2592, 7
  %v2594 = vsub.s32 4, %v2593
  %v2595 = vrot.slane %v2571, %v2594
  %v2596 = vlaneseq
  %v2597 = vshrl.u32 %v2596, 7
  %v2598 = vsub.s32 0, %v2597
  %v2599 = vrot.slane %v2572, %v2598
  %v2605 = vlaneseq
  %v2606 = vshrl.u32 %v2605, 7
  %v2607 = vsub.s32 0, %v2606
  %v2608 = vrot.slane %v2583, %v2607
  %v2609 = vlaneseq
  %v2610 = vshrl.u32 %v2609, 7
  %v2611 = vsub.s32 0, %v2610
  %v2612 = vrot.slane %v2587, %v2611
  %v2613 = vlaneseq
  %v2614 = vshrl.u32 %v2613, 7
  %v2615 = vsub.s32 0, %v2614
  %v2616 = vrot.slane %v2591, %v2615
  %v2617 = vlaneseq
  %v2618 = vshrl.u32 %v2617, 7
  %v2619 = vsub.s32 0, %v2618
  %v2620 = vrot.slane %v2595, %v2619
  %v2621 = vlaneseq
  %v2622 = vshrl.u32 %v2621, 7
  %v2623 = vsub.s32 0, %v2622
  %v2624 = vrot.slane %v2599, %v2623
  %v2625 = vmul.f32 %v2575, %v2608
  %v2626 = vmul.f32 %v2575, %v2612
  %v2627 = vmul.f32 %v2575, %v2616
  %v2628 = vmul.f32 %v2575, %v2620
  %v2629 = vmul.f32 %v2575, %v2624
  %2635 = vrot.lane.b32.xlu0 %v2625, 127
  %v2636 = vpop.permute.xlu0 %2635
  %2637 = vrot.lane.b32.xlu0 %v2626, 127
  %v2638 = vpop.permute.xlu0 %2637
  %2639 = vrot.lane.b32.xlu0 %v2627, 127
  %v2640 = vpop.permute.xlu0 %2639
  %2641 = vrot.lane.b32.xlu0 %v2628, 127
  %v2642 = vpop.permute.xlu0 %2641
  %2643 = vrot.lane.b32.xlu0 %v2629, 127
  %v2644 = vpop.permute.xlu0 %2643
  %v2645 = vsel %vm400, %v2636, %v2638
  %v2646 = vsel %vm400, %v2638, %v2640
  %v2647 = vsel %vm400, %v2640, %v2642
  %v2648 = vsel %vm400, %v2642, %v2644
  %v2654 = vadd.f32 %v2562, %v2645
  %v2655 = vadd.f32 %v2563, %v2646
  %v2656 = vadd.f32 %v2564, %v2647
  %v2657 = vadd.f32 %v2565, %v2648
  %v2658 = vadd.f32 %v2566, %v2644
  %2659 = vset.pattern.permute.xlu0 4
  %2660 = vperm.xlu0 %2659, %v2384
  %v2661 = vpop.permute.xlu0 %2660
  %v2663 = vlaneseq
  %v2664 = vshrl.u32 %v2663, 7
  %v2665 = vsub.s32 1, %v2664
  %v2666 = vrot.slane %v2570, %v2665
  %v2667 = vlaneseq
  %v2668 = vshrl.u32 %v2667, 7
  %v2669 = vsub.s32 5, %v2668
  %v2670 = vrot.slane %v2570, %v2669
  %v2671 = vlaneseq
  %v2672 = vshrl.u32 %v2671, 7
  %v2673 = vsub.s32 1, %v2672
  %v2674 = vrot.slane %v2571, %v2673
  %v2675 = vlaneseq
  %v2676 = vshrl.u32 %v2675, 7
  %v2677 = vsub.s32 5, %v2676
  %v2678 = vrot.slane %v2571, %v2677
  %v2679 = vlaneseq
  %v2680 = vshrl.u32 %v2679, 7
  %v2681 = vsub.s32 1, %v2680
  %v2682 = vrot.slane %v2572, %v2681
  %v2688 = vlaneseq
  %v2689 = vshrl.u32 %v2688, 7
  %v2690 = vsub.s32 1, %v2689
  %v2691 = vrot.slane %v2666, %v2690
  %v2692 = vlaneseq
  %v2693 = vshrl.u32 %v2692, 7
  %v2694 = vsub.s32 1, %v2693
  %v2695 = vrot.slane %v2670, %v2694
  %v2696 = vlaneseq
  %v2697 = vshrl.u32 %v2696, 7
  %v2698 = vsub.s32 1, %v2697
  %v2699 = vrot.slane %v2674, %v2698
  %v2700 = vlaneseq
  %v2701 = vshrl.u32 %v2700, 7
  %v2702 = vsub.s32 1, %v2701
  %v2703 = vrot.slane %v2678, %v2702
  %v2704 = vlaneseq
  %v2705 = vshrl.u32 %v2704, 7
  %v2706 = vsub.s32 1, %v2705
  %v2707 = vrot.slane %v2682, %v2706
  %v2708 = vmul.f32 %v2661, %v2691
  %v2709 = vmul.f32 %v2661, %v2695
  %v2710 = vmul.f32 %v2661, %v2699
  %v2711 = vmul.f32 %v2661, %v2703
  %v2712 = vmul.f32 %v2661, %v2707
  %2718 = vrot.lane.b32.xlu0 %v2708, 127
  %v2719 = vpop.permute.xlu0 %2718
  %2720 = vrot.lane.b32.xlu0 %v2709, 127
  %v2721 = vpop.permute.xlu0 %2720
  %2722 = vrot.lane.b32.xlu0 %v2710, 127
  %v2723 = vpop.permute.xlu0 %2722
  %2724 = vrot.lane.b32.xlu0 %v2711, 127
  %v2725 = vpop.permute.xlu0 %2724
  %2726 = vrot.lane.b32.xlu0 %v2712, 127
  %v2727 = vpop.permute.xlu0 %2726
  %v2728 = vsel %vm400, %v2719, %v2721
  %v2729 = vsel %vm400, %v2721, %v2723
  %v2730 = vsel %vm400, %v2723, %v2725
  %v2731 = vsel %vm400, %v2725, %v2727
  %v2737 = vadd.f32 %v2654, %v2728
  %v2738 = vadd.f32 %v2655, %v2729
  %v2739 = vadd.f32 %v2656, %v2730
  %v2740 = vadd.f32 %v2657, %v2731
  %v2741 = vadd.f32 %v2658, %v2727
  %2742 = vset.pattern.permute.xlu0 5
  %2743 = vperm.xlu0 %2742, %v2384
  %v2744 = vpop.permute.xlu0 %2743
  %v2746 = vlaneseq
  %v2747 = vshrl.u32 %v2746, 7
  %v2748 = vsub.s32 2, %v2747
  %v2749 = vrot.slane %v2570, %v2748
  %v2750 = vlaneseq
  %v2751 = vshrl.u32 %v2750, 7
  %v2752 = vsub.s32 6, %v2751
  %v2753 = vrot.slane %v2570, %v2752
  %v2754 = vlaneseq
  %v2755 = vshrl.u32 %v2754, 7
  %v2756 = vsub.s32 2, %v2755
  %v2757 = vrot.slane %v2571, %v2756
  %v2758 = vlaneseq
  %v2759 = vshrl.u32 %v2758, 7
  %v2760 = vsub.s32 6, %v2759
  %v2761 = vrot.slane %v2571, %v2760
  %v2762 = vlaneseq
  %v2763 = vshrl.u32 %v2762, 7
  %v2764 = vsub.s32 2, %v2763
  %v2765 = vrot.slane %v2572, %v2764
  %v2771 = vlaneseq
  %v2772 = vshrl.u32 %v2771, 7
  %v2773 = vsub.s32 2, %v2772
  %v2774 = vrot.slane %v2749, %v2773
  %v2775 = vlaneseq
  %v2776 = vshrl.u32 %v2775, 7
  %v2777 = vsub.s32 2, %v2776
  %v2778 = vrot.slane %v2753, %v2777
  %v2779 = vlaneseq
  %v2780 = vshrl.u32 %v2779, 7
  %v2781 = vsub.s32 2, %v2780
  %v2782 = vrot.slane %v2757, %v2781
  %v2783 = vlaneseq
  %v2784 = vshrl.u32 %v2783, 7
  %v2785 = vsub.s32 2, %v2784
  %v2786 = vrot.slane %v2761, %v2785
  %v2787 = vlaneseq
  %v2788 = vshrl.u32 %v2787, 7
  %v2789 = vsub.s32 2, %v2788
  %v2790 = vrot.slane %v2765, %v2789
  %v2791 = vmul.f32 %v2744, %v2774
  %v2792 = vmul.f32 %v2744, %v2778
  %v2793 = vmul.f32 %v2744, %v2782
  %v2794 = vmul.f32 %v2744, %v2786
  %v2795 = vmul.f32 %v2744, %v2790
  %2801 = vrot.lane.b32.xlu0 %v2791, 127
  %v2802 = vpop.permute.xlu0 %2801
  %2803 = vrot.lane.b32.xlu0 %v2792, 127
  %v2804 = vpop.permute.xlu0 %2803
  %2805 = vrot.lane.b32.xlu0 %v2793, 127
  %v2806 = vpop.permute.xlu0 %2805
  %2807 = vrot.lane.b32.xlu0 %v2794, 127
  %v2808 = vpop.permute.xlu0 %2807
  %2809 = vrot.lane.b32.xlu0 %v2795, 127
  %v2810 = vpop.permute.xlu0 %2809
  %v2811 = vsel %vm400, %v2802, %v2804
  %v2812 = vsel %vm400, %v2804, %v2806
  %v2813 = vsel %vm400, %v2806, %v2808
  %v2814 = vsel %vm400, %v2808, %v2810
  %v2820 = vadd.f32 %v2737, %v2811
  %v2821 = vadd.f32 %v2738, %v2812
  %v2822 = vadd.f32 %v2739, %v2813
  %v2823 = vadd.f32 %v2740, %v2814
  %v2824 = vadd.f32 %v2741, %v2810
  %v2825 = vld [vmem:[#allocation3] sm:$0x77]
  %v2826 = vld [vmem:[#allocation3 + $0x8] sm:$0x77]
  %v2827 = vld [vmem:[#allocation3 + $0x10] sm:$0x7]
  %v2828 = vmul.f32 %v2825, %v597
  %v2829 = vmul.f32 %v2826, %v599
  %v2830 = vmul.f32 %v2827, %v595
  %2831 = vset.pattern.permute.xlu0 6
  %2832 = vperm.xlu0 %2831, %v2384
  %v2833 = vpop.permute.xlu0 %2832
  %v2838 = vlaneseq
  %v2839 = vshrl.u32 %v2838, 7
  %v2840 = vsub.s32 0, %v2839
  %v2841 = vrot.slane %v2828, %v2840
  %v2842 = vlaneseq
  %v2843 = vshrl.u32 %v2842, 7
  %v2844 = vsub.s32 4, %v2843
  %v2845 = vrot.slane %v2828, %v2844
  %v2846 = vlaneseq
  %v2847 = vshrl.u32 %v2846, 7
  %v2848 = vsub.s32 0, %v2847
  %v2849 = vrot.slane %v2829, %v2848
  %v2850 = vlaneseq
  %v2851 = vshrl.u32 %v2850, 7
  %v2852 = vsub.s32 4, %v2851
  %v2853 = vrot.slane %v2829, %v2852
  %v2854 = vlaneseq
  %v2855 = vshrl.u32 %v2854, 7
  %v2856 = vsub.s32 0, %v2855
  %v2857 = vrot.slane %v2830, %v2856
  %v2863 = vlaneseq
  %v2864 = vshrl.u32 %v2863, 7
  %v2865 = vsub.s32 0, %v2864
  %v2866 = vrot.slane %v2841, %v2865
  %v2867 = vlaneseq
  %v2868 = vshrl.u32 %v2867, 7
  %v2869 = vsub.s32 0, %v2868
  %v2870 = vrot.slane %v2845, %v2869
  %v2871 = vlaneseq
  %v2872 = vshrl.u32 %v2871, 7
  %v2873 = vsub.s32 0, %v2872
  %v2874 = vrot.slane %v2849, %v2873
  %v2875 = vlaneseq
  %v2876 = vshrl.u32 %v2875, 7
  %v2877 = vsub.s32 0, %v2876
  %v2878 = vrot.slane %v2853, %v2877
  %v2879 = vlaneseq
  %v2880 = vshrl.u32 %v2879, 7
  %v2881 = vsub.s32 0, %v2880
  %v2882 = vrot.slane %v2857, %v2881
  %v2883 = vmul.f32 %v2833, %v2866
  %v2884 = vmul.f32 %v2833, %v2870
  %v2885 = vmul.f32 %v2833, %v2874
  %v2886 = vmul.f32 %v2833, %v2878
  %v2887 = vmul.f32 %v2833, %v2882
  %2893 = vrot.lane.b32.xlu0 %v2883, 126
  %v2894 = vpop.permute.xlu0 %2893
  %2895 = vrot.lane.b32.xlu0 %v2884, 126
  %v2896 = vpop.permute.xlu0 %2895
  %2897 = vrot.lane.b32.xlu0 %v2885, 126
  %v2898 = vpop.permute.xlu0 %2897
  %2899 = vrot.lane.b32.xlu0 %v2886, 126
  %v2900 = vpop.permute.xlu0 %2899
  %2901 = vrot.lane.b32.xlu0 %v2887, 126
  %v2902 = vpop.permute.xlu0 %2901
  %v2903 = vsel %vm678, %v2894, %v2896
  %v2904 = vsel %vm678, %v2896, %v2898
  %v2905 = vsel %vm678, %v2898, %v2900
  %v2906 = vsel %vm678, %v2900, %v2902
  %v2912 = vadd.f32 %v2820, %v2903
  %v2913 = vadd.f32 %v2821, %v2904
  %v2914 = vadd.f32 %v2822, %v2905
  %v2915 = vadd.f32 %v2823, %v2906
  %v2916 = vadd.f32 %v2824, %v2902
  %2917 = vset.pattern.permute.xlu0 7
  %2918 = vperm.xlu0 %2917, %v2384
  %v2919 = vpop.permute.xlu0 %2918
  %v2921 = vlaneseq
  %v2922 = vshrl.u32 %v2921, 7
  %v2923 = vsub.s32 1, %v2922
  %v2924 = vrot.slane %v2828, %v2923
  %v2925 = vlaneseq
  %v2926 = vshrl.u32 %v2925, 7
  %v2927 = vsub.s32 5, %v2926
  %v2928 = vrot.slane %v2828, %v2927
  %v2929 = vlaneseq
  %v2930 = vshrl.u32 %v2929, 7
  %v2931 = vsub.s32 1, %v2930
  %v2932 = vrot.slane %v2829, %v2931
  %v2933 = vlaneseq
  %v2934 = vshrl.u32 %v2933, 7
  %v2935 = vsub.s32 5, %v2934
  %v2936 = vrot.slane %v2829, %v2935
  %v2937 = vlaneseq
  %v2938 = vshrl.u32 %v2937, 7
  %v2939 = vsub.s32 1, %v2938
  %v2940 = vrot.slane %v2830, %v2939
  %v2946 = vlaneseq
  %v2947 = vshrl.u32 %v2946, 7
  %v2948 = vsub.s32 1, %v2947
  %v2949 = vrot.slane %v2924, %v2948
  %v2950 = vlaneseq
  %v2951 = vshrl.u32 %v2950, 7
  %v2952 = vsub.s32 1, %v2951
  %v2953 = vrot.slane %v2928, %v2952
  %v2954 = vlaneseq
  %v2955 = vshrl.u32 %v2954, 7
  %v2956 = vsub.s32 1, %v2955
  %v2957 = vrot.slane %v2932, %v2956
  %v2958 = vlaneseq
  %v2959 = vshrl.u32 %v2958, 7
  %v2960 = vsub.s32 1, %v2959
  %v2961 = vrot.slane %v2936, %v2960
  %v2962 = vlaneseq
  %v2963 = vshrl.u32 %v2962, 7
  %v2964 = vsub.s32 1, %v2963
  %v2965 = vrot.slane %v2940, %v2964
  %v2966 = vmul.f32 %v2919, %v2949
  %v2967 = vmul.f32 %v2919, %v2953
  %v2968 = vmul.f32 %v2919, %v2957
  %v2969 = vmul.f32 %v2919, %v2961
  %v2970 = vmul.f32 %v2919, %v2965
  %2976 = vrot.lane.b32.xlu0 %v2966, 126
  %v2977 = vpop.permute.xlu0 %2976
  %2978 = vrot.lane.b32.xlu0 %v2967, 126
  %v2979 = vpop.permute.xlu0 %2978
  %2980 = vrot.lane.b32.xlu0 %v2968, 126
  %v2981 = vpop.permute.xlu0 %2980
  %2982 = vrot.lane.b32.xlu0 %v2969, 126
  %v2983 = vpop.permute.xlu0 %2982
  %2984 = vrot.lane.b32.xlu0 %v2970, 126
  %v2985 = vpop.permute.xlu0 %2984
  %v2986 = vsel %vm678, %v2977, %v2979
  %v2987 = vsel %vm678, %v2979, %v2981
  %v2988 = vsel %vm678, %v2981, %v2983
  %v2989 = vsel %vm678, %v2983, %v2985
  %v2995 = vadd.f32 %v2912, %v2986
  %v2996 = vadd.f32 %v2913, %v2987
  %v2997 = vadd.f32 %v2914, %v2988
  %v2998 = vadd.f32 %v2915, %v2989
  %v2999 = vadd.f32 %v2916, %v2985
  %3000 = vset.pattern.permute.xlu0 8
  %3001 = vperm.xlu0 %3000, %v2384
  %v3002 = vpop.permute.xlu0 %3001
  %v3004 = vlaneseq
  %v3005 = vshrl.u32 %v3004, 7
  %v3006 = vsub.s32 2, %v3005
  %v3007 = vrot.slane %v2828, %v3006
  %v3008 = vlaneseq
  %v3009 = vshrl.u32 %v3008, 7
  %v3010 = vsub.s32 6, %v3009
  %v3011 = vrot.slane %v2828, %v3010
  %v3012 = vlaneseq
  %v3013 = vshrl.u32 %v3012, 7
  %v3014 = vsub.s32 2, %v3013
  %v3015 = vrot.slane %v2829, %v3014
  %v3016 = vlaneseq
  %v3017 = vshrl.u32 %v3016, 7
  %v3018 = vsub.s32 6, %v3017
  %v3019 = vrot.slane %v2829, %v3018
  %v3020 = vlaneseq
  %v3021 = vshrl.u32 %v3020, 7
  %v3022 = vsub.s32 2, %v3021
  %v3023 = vrot.slane %v2830, %v3022
  %v3029 = vlaneseq
  %v3030 = vshrl.u32 %v3029, 7
  %v3031 = vsub.s32 2, %v3030
  %v3032 = vrot.slane %v3007, %v3031
  %v3033 = vlaneseq
  %v3034 = vshrl.u32 %v3033, 7
  %v3035 = vsub.s32 2, %v3034
  %v3036 = vrot.slane %v3011, %v3035
  %v3037 = vlaneseq
  %v3038 = vshrl.u32 %v3037, 7
  %v3039 = vsub.s32 2, %v3038
  %v3040 = vrot.slane %v3015, %v3039
  %v3041 = vlaneseq
  %v3042 = vshrl.u32 %v3041, 7
  %v3043 = vsub.s32 2, %v3042
  %v3044 = vrot.slane %v3019, %v3043
  %v3045 = vlaneseq
  %v3046 = vshrl.u32 %v3045, 7
  %v3047 = vsub.s32 2, %v3046
  %v3048 = vrot.slane %v3023, %v3047
  %v3049 = vmul.f32 %v3002, %v3032
  %v3050 = vmul.f32 %v3002, %v3036
  %v3051 = vmul.f32 %v3002, %v3040
  %v3052 = vmul.f32 %v3002, %v3044
  %v3053 = vmul.f32 %v3002, %v3048
  %3059 = vrot.lane.b32.xlu0 %v3049, 126
  %v3060 = vpop.permute.xlu0 %3059
  %3061 = vrot.lane.b32.xlu0 %v3050, 126
  %v3062 = vpop.permute.xlu0 %3061
  %3063 = vrot.lane.b32.xlu0 %v3051, 126
  %v3064 = vpop.permute.xlu0 %3063
  %3065 = vrot.lane.b32.xlu0 %v3052, 126
  %v3066 = vpop.permute.xlu0 %3065
  %3067 = vrot.lane.b32.xlu0 %v3053, 126
  %v3068 = vpop.permute.xlu0 %3067
  %v3069 = vsel %vm678, %v3060, %v3062
  %v3070 = vsel %vm678, %v3062, %v3064
  %v3071 = vsel %vm678, %v3064, %v3066
  %v3072 = vsel %vm678, %v3066, %v3068
  %v3078 = vadd.f32 %v2995, %v3069
  %v3079 = vadd.f32 %v2996, %v3070
  %v3080 = vadd.f32 %v2997, %v3071
  %v3081 = vadd.f32 %v2998, %v3072
  %v3082 = vadd.f32 %v2999, %v3068
  %v3083 = vld [vmem:[#allocation3] sm:$0x77]
  %v3084 = vld [vmem:[#allocation3 + $0x8] sm:$0x77]
  %v3085 = vld [vmem:[#allocation3 + $0x10] sm:$0x7]
  %v3086 = vmul.f32 %v3083, %v874
  %v3087 = vmul.f32 %v3084, %v876
  %v3088 = vmul.f32 %v3085, %v873
  %3089 = vset.pattern.permute.xlu0 9
  %3090 = vperm.xlu0 %3089, %v2384
  %v3091 = vpop.permute.xlu0 %3090
  %v3096 = vlaneseq
  %v3097 = vshrl.u32 %v3096, 7
  %v3098 = vsub.s32 0, %v3097
  %v3099 = vrot.slane %v3086, %v3098
  %v3100 = vlaneseq
  %v3101 = vshrl.u32 %v3100, 7
  %v3102 = vsub.s32 4, %v3101
  %v3103 = vrot.slane %v3086, %v3102
  %v3104 = vlaneseq
  %v3105 = vshrl.u32 %v3104, 7
  %v3106 = vsub.s32 0, %v3105
  %v3107 = vrot.slane %v3087, %v3106
  %v3108 = vlaneseq
  %v3109 = vshrl.u32 %v3108, 7
  %v3110 = vsub.s32 4, %v3109
  %v3111 = vrot.slane %v3087, %v3110
  %v3112 = vlaneseq
  %v3113 = vshrl.u32 %v3112, 7
  %v3114 = vsub.s32 0, %v3113
  %v3115 = vrot.slane %v3088, %v3114
  %v3121 = vlaneseq
  %v3122 = vshrl.u32 %v3121, 7
  %v3123 = vsub.s32 0, %v3122
  %v3124 = vrot.slane %v3099, %v3123
  %v3125 = vlaneseq
  %v3126 = vshrl.u32 %v3125, 7
  %v3127 = vsub.s32 0, %v3126
  %v3128 = vrot.slane %v3103, %v3127
  %v3129 = vlaneseq
  %v3130 = vshrl.u32 %v3129, 7
  %v3131 = vsub.s32 0, %v3130
  %v3132 = vrot.slane %v3107, %v3131
  %v3133 = vlaneseq
  %v3134 = vshrl.u32 %v3133, 7
  %v3135 = vsub.s32 0, %v3134
  %v3136 = vrot.slane %v3111, %v3135
  %v3137 = vlaneseq
  %v3138 = vshrl.u32 %v3137, 7
  %v3139 = vsub.s32 0, %v3138
  %v3140 = vrot.slane %v3115, %v3139
  %v3141 = vmul.f32 %v3091, %v3124
  %v3142 = vmul.f32 %v3091, %v3128
  %v3143 = vmul.f32 %v3091, %v3132
  %v3144 = vmul.f32 %v3091, %v3136
  %v3145 = vmul.f32 %v3091, %v3140
  %3146 = vset.pattern.permute.xlu0 10
  %3147 = vperm.xlu0 %3146, %v2384
  %v3148 = vpop.permute.xlu0 %3147
  %v3150 = vlaneseq
  %v3151 = vshrl.u32 %v3150, 7
  %v3152 = vsub.s32 1, %v3151
  %v3153 = vrot.slane %v3086, %v3152
  %v3154 = vlaneseq
  %v3155 = vshrl.u32 %v3154, 7
  %v3156 = vsub.s32 5, %v3155
  %v3157 = vrot.slane %v3086, %v3156
  %v3158 = vlaneseq
  %v3159 = vshrl.u32 %v3158, 7
  %v3160 = vsub.s32 1, %v3159
  %v3161 = vrot.slane %v3087, %v3160
  %v3162 = vlaneseq
  %v3163 = vshrl.u32 %v3162, 7
  %v3164 = vsub.s32 5, %v3163
  %v3165 = vrot.slane %v3087, %v3164
  %v3166 = vlaneseq
  %v3167 = vshrl.u32 %v3166, 7
  %v3168 = vsub.s32 1, %v3167
  %v3169 = vrot.slane %v3088, %v3168
  %v3175 = vlaneseq
  %v3176 = vshrl.u32 %v3175, 7
  %v3177 = vsub.s32 1, %v3176
  %v3178 = vrot.slane %v3153, %v3177
  %v3179 = vlaneseq
  %v3180 = vshrl.u32 %v3179, 7
  %v3181 = vsub.s32 1, %v3180
  %v3182 = vrot.slane %v3157, %v3181
  %v3183 = vlaneseq
  %v3184 = vshrl.u32 %v3183, 7
  %v3185 = vsub.s32 1, %v3184
  %v3186 = vrot.slane %v3161, %v3185
  %v3187 = vlaneseq
  %v3188 = vshrl.u32 %v3187, 7
  %v3189 = vsub.s32 1, %v3188
  %v3190 = vrot.slane %v3165, %v3189
  %v3191 = vlaneseq
  %v3192 = vshrl.u32 %v3191, 7
  %v3193 = vsub.s32 1, %v3192
  %v3194 = vrot.slane %v3169, %v3193
  %v3195 = vmul.f32 %v3148, %v3178
  %v3196 = vmul.f32 %v3148, %v3182
  %v3197 = vmul.f32 %v3148, %v3186
  %v3198 = vmul.f32 %v3148, %v3190
  %v3199 = vmul.f32 %v3148, %v3194
  %v3200 = vadd.f32 %v3141, %v3195
  %v3201 = vadd.f32 %v3142, %v3196
  %v3202 = vadd.f32 %v3143, %v3197
  %v3203 = vadd.f32 %v3144, %v3198
  %v3204 = vadd.f32 %v3145, %v3199
  %3205 = vset.pattern.permute.xlu0 11
  %3206 = vperm.xlu0 %3205, %v2384
  %v3207 = vpop.permute.xlu0 %3206
  %v3209 = vlaneseq
  %v3210 = vshrl.u32 %v3209, 7
  %v3211 = vsub.s32 2, %v3210
  %v3212 = vrot.slane %v3086, %v3211
  %v3213 = vlaneseq
  %v3214 = vshrl.u32 %v3213, 7
  %v3215 = vsub.s32 6, %v3214
  %v3216 = vrot.slane %v3086, %v3215
  %v3217 = vlaneseq
  %v3218 = vshrl.u32 %v3217, 7
  %v3219 = vsub.s32 2, %v3218
  %v3220 = vrot.slane %v3087, %v3219
  %v3221 = vlaneseq
  %v3222 = vshrl.u32 %v3221, 7
  %v3223 = vsub.s32 6, %v3222
  %v3224 = vrot.slane %v3087, %v3223
  %v3225 = vlaneseq
  %v3226 = vshrl.u32 %v3225, 7
  %v3227 = vsub.s32 2, %v3226
  %v3228 = vrot.slane %v3088, %v3227
  %v3234 = vlaneseq
  %v3235 = vshrl.u32 %v3234, 7
  %v3236 = vsub.s32 2, %v3235
  %v3237 = vrot.slane %v3212, %v3236
  %v3238 = vlaneseq
  %v3239 = vshrl.u32 %v3238, 7
  %v3240 = vsub.s32 2, %v3239
  %v3241 = vrot.slane %v3216, %v3240
  %v3242 = vlaneseq
  %v3243 = vshrl.u32 %v3242, 7
  %v3244 = vsub.s32 2, %v3243
  %v3245 = vrot.slane %v3220, %v3244
  %v3246 = vlaneseq
  %v3247 = vshrl.u32 %v3246, 7
  %v3248 = vsub.s32 2, %v3247
  %v3249 = vrot.slane %v3224, %v3248
  %v3250 = vlaneseq
  %v3251 = vshrl.u32 %v3250, 7
  %v3252 = vsub.s32 2, %v3251
  %v3253 = vrot.slane %v3228, %v3252
  %v3254 = vmul.f32 %v3207, %v3237
  %v3255 = vmul.f32 %v3207, %v3241
  %v3256 = vmul.f32 %v3207, %v3245
  %v3257 = vmul.f32 %v3207, %v3249
  %v3258 = vmul.f32 %v3207, %v3253
  %v3259 = vadd.f32 %v3200, %v3254
  %v3260 = vadd.f32 %v3201, %v3255
  %v3261 = vadd.f32 %v3202, %v3256
  %v3262 = vadd.f32 %v3203, %v3257
  %v3263 = vadd.f32 %v3204, %v3258
  %v3264 = vld [vmem:[#allocation3 + $0x4] sm:$0x77]
  %v3265 = vld [vmem:[#allocation3 + $0xc] sm:$0x77]
  %3266 = vset.pattern.permute.xlu0 12
  %3267 = vperm.xlu0 %3266, %v2384
  %v3268 = vpop.permute.xlu0 %3267
  %v3272 = vlaneseq
  %v3273 = vshrl.u32 %v3272, 7
  %v3274 = vsub.s32 0, %v3273
  %v3275 = vrot.slane %v3264, %v3274
  %v3276 = vlaneseq
  %v3277 = vshrl.u32 %v3276, 7
  %v3278 = vsub.s32 4, %v3277
  %v3279 = vrot.slane %v3264, %v3278
  %v3280 = vlaneseq
  %v3281 = vshrl.u32 %v3280, 7
  %v3282 = vsub.s32 0, %v3281
  %v3283 = vrot.slane %v3265, %v3282
  %v3284 = vlaneseq
  %v3285 = vshrl.u32 %v3284, 7
  %v3286 = vsub.s32 4, %v3285
  %v3287 = vrot.slane %v3265, %v3286
  %v3292 = vlaneseq
  %v3293 = vshrl.u32 %v3292, 7
  %v3294 = vsub.s32 0, %v3293
  %v3295 = vrot.slane %v3275, %v3294
  %v3296 = vlaneseq
  %v3297 = vshrl.u32 %v3296, 7
  %v3298 = vsub.s32 0, %v3297
  %v3299 = vrot.slane %v3279, %v3298
  %v3300 = vlaneseq
  %v3301 = vshrl.u32 %v3300, 7
  %v3302 = vsub.s32 0, %v3301
  %v3303 = vrot.slane %v3283, %v3302
  %v3304 = vlaneseq
  %v3305 = vshrl.u32 %v3304, 7
  %v3306 = vsub.s32 0, %v3305
  %v3307 = vrot.slane %v3287, %v3306
  %v3308 = vmul.f32 %v3268, %v3295
  %v3309 = vmul.f32 %v3268, %v3299
  %v3310 = vmul.f32 %v3268, %v3303
  %v3311 = vmul.f32 %v3268, %v3307
  %3316 = vrot.lane.b32.xlu0 %v3308, 127
  %v3317 = vpop.permute.xlu0 %3316
  %3318 = vrot.lane.b32.xlu0 %v3309, 127
  %v3319 = vpop.permute.xlu0 %3318
  %3320 = vrot.lane.b32.xlu0 %v3310, 127
  %v3321 = vpop.permute.xlu0 %3320
  %3322 = vrot.lane.b32.xlu0 %v3311, 127
  %v3323 = vpop.permute.xlu0 %3322
  %v3324 = vsel %vm400, %v3317, %v3319
  %v3325 = vsel %vm400, %v3319, %v3321
  %v3326 = vsel %vm400, %v3321, %v3323
  %v3332 = vadd.f32 %v3259, %v3317
  %v3333 = vadd.f32 %v3260, %v3324
  %v3334 = vadd.f32 %v3261, %v3325
  %v3335 = vadd.f32 %v3262, %v3326
  %v3336 = vadd.f32 %v3263, %v3323
  %3337 = vset.pattern.permute.xlu0 13
  %3338 = vperm.xlu0 %3337, %v2384
  %v3339 = vpop.permute.xlu0 %3338
  %v3341 = vlaneseq
  %v3342 = vshrl.u32 %v3341, 7
  %v3343 = vsub.s32 1, %v3342
  %v3344 = vrot.slane %v3264, %v3343
  %v3345 = vlaneseq
  %v3346 = vshrl.u32 %v3345, 7
  %v3347 = vsub.s32 5, %v3346
  %v3348 = vrot.slane %v3264, %v3347
  %v3349 = vlaneseq
  %v3350 = vshrl.u32 %v3349, 7
  %v3351 = vsub.s32 1, %v3350
  %v3352 = vrot.slane %v3265, %v3351
  %v3353 = vlaneseq
  %v3354 = vshrl.u32 %v3353, 7
  %v3355 = vsub.s32 5, %v3354
  %v3356 = vrot.slane %v3265, %v3355
  %v3361 = vlaneseq
  %v3362 = vshrl.u32 %v3361, 7
  %v3363 = vsub.s32 1, %v3362
  %v3364 = vrot.slane %v3344, %v3363
  %v3365 = vlaneseq
  %v3366 = vshrl.u32 %v3365, 7
  %v3367 = vsub.s32 1, %v3366
  %v3368 = vrot.slane %v3348, %v3367
  %v3369 = vlaneseq
  %v3370 = vshrl.u32 %v3369, 7
  %v3371 = vsub.s32 1, %v3370
  %v3372 = vrot.slane %v3352, %v3371
  %v3373 = vlaneseq
  %v3374 = vshrl.u32 %v3373, 7
  %v3375 = vsub.s32 1, %v3374
  %v3376 = vrot.slane %v3356, %v3375
  %v3377 = vmul.f32 %v3339, %v3364
  %v3378 = vmul.f32 %v3339, %v3368
  %v3379 = vmul.f32 %v3339, %v3372
  %v3380 = vmul.f32 %v3339, %v3376
  %3385 = vrot.lane.b32.xlu0 %v3377, 127
  %v3386 = vpop.permute.xlu0 %3385
  %3387 = vrot.lane.b32.xlu0 %v3378, 127
  %v3388 = vpop.permute.xlu0 %3387
  %3389 = vrot.lane.b32.xlu0 %v3379, 127
  %v3390 = vpop.permute.xlu0 %3389
  %3391 = vrot.lane.b32.xlu0 %v3380, 127
  %v3392 = vpop.permute.xlu0 %3391
  %v3393 = vsel %vm400, %v3386, %v3388
  %v3394 = vsel %vm400, %v3388, %v3390
  %v3395 = vsel %vm400, %v3390, %v3392
  %v3401 = vadd.f32 %v3332, %v3386
  %v3402 = vadd.f32 %v3333, %v3393
  %v3403 = vadd.f32 %v3334, %v3394
  %v3404 = vadd.f32 %v3335, %v3395
  %v3405 = vadd.f32 %v3336, %v3392
  %3406 = vset.pattern.permute.xlu0 14
  %3407 = vperm.xlu0 %3406, %v2384
  %v3408 = vpop.permute.xlu0 %3407
  %v3410 = vlaneseq
  %v3411 = vshrl.u32 %v3410, 7
  %v3412 = vsub.s32 2, %v3411
  %v3413 = vrot.slane %v3264, %v3412
  %v3414 = vlaneseq
  %v3415 = vshrl.u32 %v3414, 7
  %v3416 = vsub.s32 6, %v3415
  %v3417 = vrot.slane %v3264, %v3416
  %v3418 = vlaneseq
  %v3419 = vshrl.u32 %v3418, 7
  %v3420 = vsub.s32 2, %v3419
  %v3421 = vrot.slane %v3265, %v3420
  %v3422 = vlaneseq
  %v3423 = vshrl.u32 %v3422, 7
  %v3424 = vsub.s32 6, %v3423
  %v3425 = vrot.slane %v3265, %v3424
  %v3430 = vlaneseq
  %v3431 = vshrl.u32 %v3430, 7
  %v3432 = vsub.s32 2, %v3431
  %v3433 = vrot.slane %v3413, %v3432
  %v3434 = vlaneseq
  %v3435 = vshrl.u32 %v3434, 7
  %v3436 = vsub.s32 2, %v3435
  %v3437 = vrot.slane %v3417, %v3436
  %v3438 = vlaneseq
  %v3439 = vshrl.u32 %v3438, 7
  %v3440 = vsub.s32 2, %v3439
  %v3441 = vrot.slane %v3421, %v3440
  %v3442 = vlaneseq
  %v3443 = vshrl.u32 %v3442, 7
  %v3444 = vsub.s32 2, %v3443
  %v3445 = vrot.slane %v3425, %v3444
  %v3446 = vmul.f32 %v3408, %v3433
  %v3447 = vmul.f32 %v3408, %v3437
  %v3448 = vmul.f32 %v3408, %v3441
  %v3449 = vmul.f32 %v3408, %v3445
  %3454 = vrot.lane.b32.xlu0 %v3446, 127
  %v3455 = vpop.permute.xlu0 %3454
  %3456 = vrot.lane.b32.xlu0 %v3447, 127
  %v3457 = vpop.permute.xlu0 %3456
  %3458 = vrot.lane.b32.xlu0 %v3448, 127
  %v3459 = vpop.permute.xlu0 %3458
  %3460 = vrot.lane.b32.xlu0 %v3449, 127
  %v3461 = vpop.permute.xlu0 %3460
  %v3462 = vsel %vm400, %v3455, %v3457
  %v3463 = vsel %vm400, %v3457, %v3459
  %v3464 = vsel %vm400, %v3459, %v3461
  %v3470 = vadd.f32 %v3401, %v3455
  %v3471 = vadd.f32 %v3402, %v3462
  %v3472 = vadd.f32 %v3403, %v3463
  %v3473 = vadd.f32 %v3404, %v3464
  %v3474 = vadd.f32 %v3405, %v3461
  %v3475 = vld [vmem:[#allocation3 + $0x4] sm:$0x77]
  %v3476 = vld [vmem:[#allocation3 + $0xc] sm:$0x77]
  %v3477 = vld [vmem:[#allocation3 + $0x14] sm:$0x7]
  %v3478 = vmul.f32 %v3475, %v1285
  %v3479 = vmul.f32 %v3476, %v1287
  %v3480 = vmul.f32 %v3477, %v1283
  %3481 = vset.pattern.permute.xlu0 15
  %3482 = vperm.xlu0 %3481, %v2384
  %v3483 = vpop.permute.xlu0 %3482
  %v3488 = vlaneseq
  %v3489 = vshrl.u32 %v3488, 7
  %v3490 = vsub.s32 0, %v3489
  %v3491 = vrot.slane %v3478, %v3490
  %v3492 = vlaneseq
  %v3493 = vshrl.u32 %v3492, 7
  %v3494 = vsub.s32 4, %v3493
  %v3495 = vrot.slane %v3478, %v3494
  %v3496 = vlaneseq
  %v3497 = vshrl.u32 %v3496, 7
  %v3498 = vsub.s32 0, %v3497
  %v3499 = vrot.slane %v3479, %v3498
  %v3500 = vlaneseq
  %v3501 = vshrl.u32 %v3500, 7
  %v3502 = vsub.s32 4, %v3501
  %v3503 = vrot.slane %v3479, %v3502
  %v3504 = vlaneseq
  %v3505 = vshrl.u32 %v3504, 7
  %v3506 = vsub.s32 0, %v3505
  %v3507 = vrot.slane %v3480, %v3506
  %v3513 = vlaneseq
  %v3514 = vshrl.u32 %v3513, 7
  %v3515 = vsub.s32 0, %v3514
  %v3516 = vrot.slane %v3491, %v3515
  %v3517 = vlaneseq
  %v3518 = vshrl.u32 %v3517, 7
  %v3519 = vsub.s32 0, %v3518
  %v3520 = vrot.slane %v3495, %v3519
  %v3521 = vlaneseq
  %v3522 = vshrl.u32 %v3521, 7
  %v3523 = vsub.s32 0, %v3522
  %v3524 = vrot.slane %v3499, %v3523
  %v3525 = vlaneseq
  %v3526 = vshrl.u32 %v3525, 7
  %v3527 = vsub.s32 0, %v3526
  %v3528 = vrot.slane %v3503, %v3527
  %v3529 = vlaneseq
  %v3530 = vshrl.u32 %v3529, 7
  %v3531 = vsub.s32 0, %v3530
  %v3532 = vrot.slane %v3507, %v3531
  %v3533 = vmul.f32 %v3483, %v3516
  %v3534 = vmul.f32 %v3483, %v3520
  %v3535 = vmul.f32 %v3483, %v3524
  %v3536 = vmul.f32 %v3483, %v3528
  %v3537 = vmul.f32 %v3483, %v3532
  %3543 = vrot.lane.b32.xlu0 %v3533, 126
  %v3544 = vpop.permute.xlu0 %3543
  %3545 = vrot.lane.b32.xlu0 %v3534, 126
  %v3546 = vpop.permute.xlu0 %3545
  %3547 = vrot.lane.b32.xlu0 %v3535, 126
  %v3548 = vpop.permute.xlu0 %3547
  %3549 = vrot.lane.b32.xlu0 %v3536, 126
  %v3550 = vpop.permute.xlu0 %3549
  %3551 = vrot.lane.b32.xlu0 %v3537, 126
  %v3552 = vpop.permute.xlu0 %3551
  %v3553 = vsel %vm678, %v3544, %v3546
  %v3554 = vsel %vm678, %v3546, %v3548
  %v3555 = vsel %vm678, %v3548, %v3550
  %v3556 = vsel %vm678, %v3550, %v3552
  %v3562 = vadd.f32 %v3470, %v3544
  %v3563 = vadd.f32 %v3471, %v3553
  %v3564 = vadd.f32 %v3472, %v3554
  %v3565 = vadd.f32 %v3473, %v3555
  %v3566 = vadd.f32 %v3474, %v3556
  %3567 = vset.pattern.permute.xlu0 16
  %3568 = vperm.xlu0 %3567, %v2384
  %v3569 = vpop.permute.xlu0 %3568
  %v3571 = vlaneseq
  %v3572 = vshrl.u32 %v3571, 7
  %v3573 = vsub.s32 1, %v3572
  %v3574 = vrot.slane %v3478, %v3573
  %v3575 = vlaneseq
  %v3576 = vshrl.u32 %v3575, 7
  %v3577 = vsub.s32 5, %v3576
  %v3578 = vrot.slane %v3478, %v3577
  %v3579 = vlaneseq
  %v3580 = vshrl.u32 %v3579, 7
  %v3581 = vsub.s32 1, %v3580
  %v3582 = vrot.slane %v3479, %v3581
  %v3583 = vlaneseq
  %v3584 = vshrl.u32 %v3583, 7
  %v3585 = vsub.s32 5, %v3584
  %v3586 = vrot.slane %v3479, %v3585
  %v3587 = vlaneseq
  %v3588 = vshrl.u32 %v3587, 7
  %v3589 = vsub.s32 1, %v3588
  %v3590 = vrot.slane %v3480, %v3589
  %v3596 = vlaneseq
  %v3597 = vshrl.u32 %v3596, 7
  %v3598 = vsub.s32 1, %v3597
  %v3599 = vrot.slane %v3574, %v3598
  %v3600 = vlaneseq
  %v3601 = vshrl.u32 %v3600, 7
  %v3602 = vsub.s32 1, %v3601
  %v3603 = vrot.slane %v3578, %v3602
  %v3604 = vlaneseq
  %v3605 = vshrl.u32 %v3604, 7
  %v3606 = vsub.s32 1, %v3605
  %v3607 = vrot.slane %v3582, %v3606
  %v3608 = vlaneseq
  %v3609 = vshrl.u32 %v3608, 7
  %v3610 = vsub.s32 1, %v3609
  %v3611 = vrot.slane %v3586, %v3610
  %v3612 = vlaneseq
  %v3613 = vshrl.u32 %v3612, 7
  %v3614 = vsub.s32 1, %v3613
  %v3615 = vrot.slane %v3590, %v3614
  %v3616 = vmul.f32 %v3569, %v3599
  %v3617 = vmul.f32 %v3569, %v3603
  %v3618 = vmul.f32 %v3569, %v3607
  %v3619 = vmul.f32 %v3569, %v3611
  %v3620 = vmul.f32 %v3569, %v3615
  %3626 = vrot.lane.b32.xlu0 %v3616, 126
  %v3627 = vpop.permute.xlu0 %3626
  %3628 = vrot.lane.b32.xlu0 %v3617, 126
  %v3629 = vpop.permute.xlu0 %3628
  %3630 = vrot.lane.b32.xlu0 %v3618, 126
  %v3631 = vpop.permute.xlu0 %3630
  %3632 = vrot.lane.b32.xlu0 %v3619, 126
  %v3633 = vpop.permute.xlu0 %3632
  %3634 = vrot.lane.b32.xlu0 %v3620, 126
  %v3635 = vpop.permute.xlu0 %3634
  %v3636 = vsel %vm678, %v3627, %v3629
  %v3637 = vsel %vm678, %v3629, %v3631
  %v3638 = vsel %vm678, %v3631, %v3633
  %v3639 = vsel %vm678, %v3633, %v3635
  %v3645 = vadd.f32 %v3562, %v3627
  %v3646 = vadd.f32 %v3563, %v3636
  %v3647 = vadd.f32 %v3564, %v3637
  %v3648 = vadd.f32 %v3565, %v3638
  %v3649 = vadd.f32 %v3566, %v3639
  %3650 = vset.pattern.permute.xlu0 17
  %3651 = vperm.xlu0 %3650, %v2384
  %v3652 = vpop.permute.xlu0 %3651
  %v3654 = vlaneseq
  %v3655 = vshrl.u32 %v3654, 7
  %v3656 = vsub.s32 2, %v3655
  %v3657 = vrot.slane %v3478, %v3656
  %v3658 = vlaneseq
  %v3659 = vshrl.u32 %v3658, 7
  %v3660 = vsub.s32 6, %v3659
  %v3661 = vrot.slane %v3478, %v3660
  %v3662 = vlaneseq
  %v3663 = vshrl.u32 %v3662, 7
  %v3664 = vsub.s32 2, %v3663
  %v3665 = vrot.slane %v3479, %v3664
  %v3666 = vlaneseq
  %v3667 = vshrl.u32 %v3666, 7
  %v3668 = vsub.s32 6, %v3667
  %v3669 = vrot.slane %v3479, %v3668
  %v3670 = vlaneseq
  %v3671 = vshrl.u32 %v3670, 7
  %v3672 = vsub.s32 2, %v3671
  %v3673 = vrot.slane %v3480, %v3672
  %v3679 = vlaneseq
  %v3680 = vshrl.u32 %v3679, 7
  %v3681 = vsub.s32 2, %v3680
  %v3682 = vrot.slane %v3657, %v3681
  %v3683 = vlaneseq
  %v3684 = vshrl.u32 %v3683, 7
  %v3685 = vsub.s32 2, %v3684
  %v3686 = vrot.slane %v3661, %v3685
  %v3687 = vlaneseq
  %v3688 = vshrl.u32 %v3687, 7
  %v3689 = vsub.s32 2, %v3688
  %v3690 = vrot.slane %v3665, %v3689
  %v3691 = vlaneseq
  %v3692 = vshrl.u32 %v3691, 7
  %v3693 = vsub.s32 2, %v3692
  %v3694 = vrot.slane %v3669, %v3693
  %v3695 = vlaneseq
  %v3696 = vshrl.u32 %v3695, 7
  %v3697 = vsub.s32 2, %v3696
  %v3698 = vrot.slane %v3673, %v3697
  %v3699 = vmul.f32 %v3652, %v3682
  %v3700 = vmul.f32 %v3652, %v3686
  %v3701 = vmul.f32 %v3652, %v3690
  %v3702 = vmul.f32 %v3652, %v3694
  %v3703 = vmul.f32 %v3652, %v3698
  %3709 = vrot.lane.b32.xlu0 %v3699, 126
  %v3710 = vpop.permute.xlu0 %3709
  %3711 = vrot.lane.b32.xlu0 %v3700, 126
  %v3712 = vpop.permute.xlu0 %3711
  %3713 = vrot.lane.b32.xlu0 %v3701, 126
  %v3714 = vpop.permute.xlu0 %3713
  %3715 = vrot.lane.b32.xlu0 %v3702, 126
  %v3716 = vpop.permute.xlu0 %3715
  %3717 = vrot.lane.b32.xlu0 %v3703, 126
  %v3718 = vpop.permute.xlu0 %3717
  %v3719 = vsel %vm678, %v3710, %v3712
  %v3720 = vsel %vm678, %v3712, %v3714
  %v3721 = vsel %vm678, %v3714, %v3716
  %v3722 = vsel %vm678, %v3716, %v3718
  %v3728 = vadd.f32 %v3645, %v3710
  %v3729 = vadd.f32 %v3646, %v3719
  %v3730 = vadd.f32 %v3647, %v3720
  %v3731 = vadd.f32 %v3648, %v3721
  %v3732 = vadd.f32 %v3649, %v3722
  %v3733 = vld [vmem:[#allocation3 + $0x4] sm:$0x77]
  %v3734 = vld [vmem:[#allocation3 + $0xc] sm:$0x77]
  %v3735 = vld [vmem:[#allocation3 + $0x14] sm:$0x7]
  %v3736 = vmul.f32 %v3733, %v1562
  %v3737 = vmul.f32 %v3734, %v1564
  %v3738 = vmul.f32 %v3735, %v1560
  %3739 = vset.pattern.permute.xlu0 18
  %3740 = vperm.xlu0 %3739, %v2384
  %v3741 = vpop.permute.xlu0 %3740
  %v3746 = vlaneseq
  %v3747 = vshrl.u32 %v3746, 7
  %v3748 = vsub.s32 0, %v3747
  %v3749 = vrot.slane %v3736, %v3748
  %v3750 = vlaneseq
  %v3751 = vshrl.u32 %v3750, 7
  %v3752 = vsub.s32 4, %v3751
  %v3753 = vrot.slane %v3736, %v3752
  %v3754 = vlaneseq
  %v3755 = vshrl.u32 %v3754, 7
  %v3756 = vsub.s32 0, %v3755
  %v3757 = vrot.slane %v3737, %v3756
  %v3758 = vlaneseq
  %v3759 = vshrl.u32 %v3758, 7
  %v3760 = vsub.s32 4, %v3759
  %v3761 = vrot.slane %v3737, %v3760
  %v3762 = vlaneseq
  %v3763 = vshrl.u32 %v3762, 7
  %v3764 = vsub.s32 0, %v3763
  %v3765 = vrot.slane %v3738, %v3764
  %v3771 = vlaneseq
  %v3772 = vshrl.u32 %v3771, 7
  %v3773 = vsub.s32 0, %v3772
  %v3774 = vrot.slane %v3749, %v3773
  %v3775 = vlaneseq
  %v3776 = vshrl.u32 %v3775, 7
  %v3777 = vsub.s32 0, %v3776
  %v3778 = vrot.slane %v3753, %v3777
  %v3779 = vlaneseq
  %v3780 = vshrl.u32 %v3779, 7
  %v3781 = vsub.s32 0, %v3780
  %v3782 = vrot.slane %v3757, %v3781
  %v3783 = vlaneseq
  %v3784 = vshrl.u32 %v3783, 7
  %v3785 = vsub.s32 0, %v3784
  %v3786 = vrot.slane %v3761, %v3785
  %v3787 = vlaneseq
  %v3788 = vshrl.u32 %v3787, 7
  %v3789 = vsub.s32 0, %v3788
  %v3790 = vrot.slane %v3765, %v3789
  %v3791 = vmul.f32 %v3741, %v3774
  %v3792 = vmul.f32 %v3741, %v3778
  %v3793 = vmul.f32 %v3741, %v3782
  %v3794 = vmul.f32 %v3741, %v3786
  %v3795 = vmul.f32 %v3741, %v3790
  %3796 = vset.pattern.permute.xlu0 19
  %3797 = vperm.xlu0 %3796, %v2384
  %v3798 = vpop.permute.xlu0 %3797
  %v3800 = vlaneseq
  %v3801 = vshrl.u32 %v3800, 7
  %v3802 = vsub.s32 1, %v3801
  %v3803 = vrot.slane %v3736, %v3802
  %v3804 = vlaneseq
  %v3805 = vshrl.u32 %v3804, 7
  %v3806 = vsub.s32 5, %v3805
  %v3807 = vrot.slane %v3736, %v3806
  %v3808 = vlaneseq
  %v3809 = vshrl.u32 %v3808, 7
  %v3810 = vsub.s32 1, %v3809
  %v3811 = vrot.slane %v3737, %v3810
  %v3812 = vlaneseq
  %v3813 = vshrl.u32 %v3812, 7
  %v3814 = vsub.s32 5, %v3813
  %v3815 = vrot.slane %v3737, %v3814
  %v3816 = vlaneseq
  %v3817 = vshrl.u32 %v3816, 7
  %v3818 = vsub.s32 1, %v3817
  %v3819 = vrot.slane %v3738, %v3818
  %v3825 = vlaneseq
  %v3826 = vshrl.u32 %v3825, 7
  %v3827 = vsub.s32 1, %v3826
  %v3828 = vrot.slane %v3803, %v3827
  %v3829 = vlaneseq
  %v3830 = vshrl.u32 %v3829, 7
  %v3831 = vsub.s32 1, %v3830
  %v3832 = vrot.slane %v3807, %v3831
  %v3833 = vlaneseq
  %v3834 = vshrl.u32 %v3833, 7
  %v3835 = vsub.s32 1, %v3834
  %v3836 = vrot.slane %v3811, %v3835
  %v3837 = vlaneseq
  %v3838 = vshrl.u32 %v3837, 7
  %v3839 = vsub.s32 1, %v3838
  %v3840 = vrot.slane %v3815, %v3839
  %v3841 = vlaneseq
  %v3842 = vshrl.u32 %v3841, 7
  %v3843 = vsub.s32 1, %v3842
  %v3844 = vrot.slane %v3819, %v3843
  %v3845 = vmul.f32 %v3798, %v3828
  %v3846 = vmul.f32 %v3798, %v3832
  %v3847 = vmul.f32 %v3798, %v3836
  %v3848 = vmul.f32 %v3798, %v3840
  %v3849 = vmul.f32 %v3798, %v3844
  %v3850 = vadd.f32 %v3791, %v3845
  %v3851 = vadd.f32 %v3792, %v3846
  %v3852 = vadd.f32 %v3793, %v3847
  %v3853 = vadd.f32 %v3794, %v3848
  %v3854 = vadd.f32 %v3795, %v3849
  %3855 = vset.pattern.permute.xlu0 20
  %3856 = vperm.xlu0 %3855, %v2384
  %v3857 = vpop.permute.xlu0 %3856
  %v3859 = vlaneseq
  %v3860 = vshrl.u32 %v3859, 7
  %v3861 = vsub.s32 2, %v3860
  %v3862 = vrot.slane %v3736, %v3861
  %v3863 = vlaneseq
  %v3864 = vshrl.u32 %v3863, 7
  %v3865 = vsub.s32 6, %v3864
  %v3866 = vrot.slane %v3736, %v3865
  %v3867 = vlaneseq
  %v3868 = vshrl.u32 %v3867, 7
  %v3869 = vsub.s32 2, %v3868
  %v3870 = vrot.slane %v3737, %v3869
  %v3871 = vlaneseq
  %v3872 = vshrl.u32 %v3871, 7
  %v3873 = vsub.s32 6, %v3872
  %v3874 = vrot.slane %v3737, %v3873
  %v3875 = vlaneseq
  %v3876 = vshrl.u32 %v3875, 7
  %v3877 = vsub.s32 2, %v3876
  %v3878 = vrot.slane %v3738, %v3877
  %v3884 = vlaneseq
  %v3885 = vshrl.u32 %v3884, 7
  %v3886 = vsub.s32 2, %v3885
  %v3887 = vrot.slane %v3862, %v3886
  %v3888 = vlaneseq
  %v3889 = vshrl.u32 %v3888, 7
  %v3890 = vsub.s32 2, %v3889
  %v3891 = vrot.slane %v3866, %v3890
  %v3892 = vlaneseq
  %v3893 = vshrl.u32 %v3892, 7
  %v3894 = vsub.s32 2, %v3893
  %v3895 = vrot.slane %v3870, %v3894
  %v3896 = vlaneseq
  %v3897 = vshrl.u32 %v3896, 7
  %v3898 = vsub.s32 2, %v3897
  %v3899 = vrot.slane %v3874, %v3898
  %v3900 = vlaneseq
  %v3901 = vshrl.u32 %v3900, 7
  %v3902 = vsub.s32 2, %v3901
  %v3903 = vrot.slane %v3878, %v3902
  %v3904 = vmul.f32 %v3857, %v3887
  %v3905 = vmul.f32 %v3857, %v3891
  %v3906 = vmul.f32 %v3857, %v3895
  %v3907 = vmul.f32 %v3857, %v3899
  %v3908 = vmul.f32 %v3857, %v3903
  %v3909 = vadd.f32 %v3850, %v3904
  %v3910 = vadd.f32 %v3851, %v3905
  %v3911 = vadd.f32 %v3852, %v3906
  %v3912 = vadd.f32 %v3853, %v3907
  %v3913 = vadd.f32 %v3854, %v3908
  %v3914 = vld [vmem:[#allocation3 + $0x4] sm:$0x77]
  %v3915 = vld [vmem:[#allocation3 + $0xc] sm:$0x77]
  %v3916 = vld [vmem:[#allocation3 + $0x14] sm:$0x7]
  %v3917 = vmul.f32 %v3914, %v1762
  %v3918 = vmul.f32 %v3915, %v1764
  %v3919 = vmul.f32 %v3916, %v1760
  %3920 = vset.pattern.permute.xlu0 21
  %3921 = vperm.xlu0 %3920, %v2384
  %v3922 = vpop.permute.xlu0 %3921
  %v3927 = vlaneseq
  %v3928 = vshrl.u32 %v3927, 7
  %v3929 = vsub.s32 0, %v3928
  %v3930 = vrot.slane %v3917, %v3929
  %v3931 = vlaneseq
  %v3932 = vshrl.u32 %v3931, 7
  %v3933 = vsub.s32 4, %v3932
  %v3934 = vrot.slane %v3917, %v3933
  %v3935 = vlaneseq
  %v3936 = vshrl.u32 %v3935, 7
  %v3937 = vsub.s32 0, %v3936
  %v3938 = vrot.slane %v3918, %v3937
  %v3939 = vlaneseq
  %v3940 = vshrl.u32 %v3939, 7
  %v3941 = vsub.s32 4, %v3940
  %v3942 = vrot.slane %v3918, %v3941
  %v3943 = vlaneseq
  %v3944 = vshrl.u32 %v3943, 7
  %v3945 = vsub.s32 0, %v3944
  %v3946 = vrot.slane %v3919, %v3945
  %v3952 = vlaneseq
  %v3953 = vshrl.u32 %v3952, 7
  %v3954 = vsub.s32 0, %v3953
  %v3955 = vrot.slane %v3930, %v3954
  %v3956 = vlaneseq
  %v3957 = vshrl.u32 %v3956, 7
  %v3958 = vsub.s32 0, %v3957
  %v3959 = vrot.slane %v3934, %v3958
  %v3960 = vlaneseq
  %v3961 = vshrl.u32 %v3960, 7
  %v3962 = vsub.s32 0, %v3961
  %v3963 = vrot.slane %v3938, %v3962
  %v3964 = vlaneseq
  %v3965 = vshrl.u32 %v3964, 7
  %v3966 = vsub.s32 0, %v3965
  %v3967 = vrot.slane %v3942, %v3966
  %v3968 = vlaneseq
  %v3969 = vshrl.u32 %v3968, 7
  %v3970 = vsub.s32 0, %v3969
  %v3971 = vrot.slane %v3946, %v3970
  %v3972 = vmul.f32 %v3922, %v3955
  %v3973 = vmul.f32 %v3922, %v3959
  %v3974 = vmul.f32 %v3922, %v3963
  %v3975 = vmul.f32 %v3922, %v3967
  %v3976 = vmul.f32 %v3922, %v3971
  %3982 = vrot.lane.b32.xlu0 %v3972, 127
  %v3983 = vpop.permute.xlu0 %3982
  %3984 = vrot.lane.b32.xlu0 %v3973, 127
  %v3985 = vpop.permute.xlu0 %3984
  %3986 = vrot.lane.b32.xlu0 %v3974, 127
  %v3987 = vpop.permute.xlu0 %3986
  %3988 = vrot.lane.b32.xlu0 %v3975, 127
  %v3989 = vpop.permute.xlu0 %3988
  %3990 = vrot.lane.b32.xlu0 %v3976, 127
  %v3991 = vpop.permute.xlu0 %3990
  %v3992 = vsel %vm400, %v3983, %v3985
  %v3993 = vsel %vm400, %v3985, %v3987
  %v3994 = vsel %vm400, %v3987, %v3989
  %v3995 = vsel %vm400, %v3989, %v3991
  %v4001 = vadd.f32 %v3909, %v3992
  %v4002 = vadd.f32 %v3910, %v3993
  %v4003 = vadd.f32 %v3911, %v3994
  %v4004 = vadd.f32 %v3912, %v3995
  %v4005 = vadd.f32 %v3913, %v3991
  %4006 = vset.pattern.permute.xlu0 22
  %4007 = vperm.xlu0 %4006, %v2384
  %v4008 = vpop.permute.xlu0 %4007
  %v4010 = vlaneseq
  %v4011 = vshrl.u32 %v4010, 7
  %v4012 = vsub.s32 1, %v4011
  %v4013 = vrot.slane %v3917, %v4012
  %v4014 = vlaneseq
  %v4015 = vshrl.u32 %v4014, 7
  %v4016 = vsub.s32 5, %v4015
  %v4017 = vrot.slane %v3917, %v4016
  %v4018 = vlaneseq
  %v4019 = vshrl.u32 %v4018, 7
  %v4020 = vsub.s32 1, %v4019
  %v4021 = vrot.slane %v3918, %v4020
  %v4022 = vlaneseq
  %v4023 = vshrl.u32 %v4022, 7
  %v4024 = vsub.s32 5, %v4023
  %v4025 = vrot.slane %v3918, %v4024
  %v4026 = vlaneseq
  %v4027 = vshrl.u32 %v4026, 7
  %v4028 = vsub.s32 1, %v4027
  %v4029 = vrot.slane %v3919, %v4028
  %v4035 = vlaneseq
  %v4036 = vshrl.u32 %v4035, 7
  %v4037 = vsub.s32 1, %v4036
  %v4038 = vrot.slane %v4013, %v4037
  %v4039 = vlaneseq
  %v4040 = vshrl.u32 %v4039, 7
  %v4041 = vsub.s32 1, %v4040
  %v4042 = vrot.slane %v4017, %v4041
  %v4043 = vlaneseq
  %v4044 = vshrl.u32 %v4043, 7
  %v4045 = vsub.s32 1, %v4044
  %v4046 = vrot.slane %v4021, %v4045
  %v4047 = vlaneseq
  %v4048 = vshrl.u32 %v4047, 7
  %v4049 = vsub.s32 1, %v4048
  %v4050 = vrot.slane %v4025, %v4049
  %v4051 = vlaneseq
  %v4052 = vshrl.u32 %v4051, 7
  %v4053 = vsub.s32 1, %v4052
  %v4054 = vrot.slane %v4029, %v4053
  %v4055 = vmul.f32 %v4008, %v4038
  %v4056 = vmul.f32 %v4008, %v4042
  %v4057 = vmul.f32 %v4008, %v4046
  %v4058 = vmul.f32 %v4008, %v4050
  %v4059 = vmul.f32 %v4008, %v4054
  %4065 = vrot.lane.b32.xlu0 %v4055, 127
  %v4066 = vpop.permute.xlu0 %4065
  %4067 = vrot.lane.b32.xlu0 %v4056, 127
  %v4068 = vpop.permute.xlu0 %4067
  %4069 = vrot.lane.b32.xlu0 %v4057, 127
  %v4070 = vpop.permute.xlu0 %4069
  %4071 = vrot.lane.b32.xlu0 %v4058, 127
  %v4072 = vpop.permute.xlu0 %4071
  %4073 = vrot.lane.b32.xlu0 %v4059, 127
  %v4074 = vpop.permute.xlu0 %4073
  %v4075 = vsel %vm400, %v4066, %v4068
  %v4076 = vsel %vm400, %v4068, %v4070
  %v4077 = vsel %vm400, %v4070, %v4072
  %v4078 = vsel %vm400, %v4072, %v4074
  %v4084 = vadd.f32 %v4001, %v4075
  %v4085 = vadd.f32 %v4002, %v4076
  %v4086 = vadd.f32 %v4003, %v4077
  %v4087 = vadd.f32 %v4004, %v4078
  %v4088 = vadd.f32 %v4005, %v4074
  %4089 = vset.pattern.permute.xlu0 23
  %4090 = vperm.xlu0 %4089, %v2384
  %v4091 = vpop.permute.xlu0 %4090
  %v4093 = vlaneseq
  %v4094 = vshrl.u32 %v4093, 7
  %v4095 = vsub.s32 2, %v4094
  %v4096 = vrot.slane %v3917, %v4095
  %v4097 = vlaneseq
  %v4098 = vshrl.u32 %v4097, 7
  %v4099 = vsub.s32 6, %v4098
  %v4100 = vrot.slane %v3917, %v4099
  %v4101 = vlaneseq
  %v4102 = vshrl.u32 %v4101, 7
  %v4103 = vsub.s32 2, %v4102
  %v4104 = vrot.slane %v3918, %v4103
  %v4105 = vlaneseq
  %v4106 = vshrl.u32 %v4105, 7
  %v4107 = vsub.s32 6, %v4106
  %v4108 = vrot.slane %v3918, %v4107
  %v4109 = vlaneseq
  %v4110 = vshrl.u32 %v4109, 7
  %v4111 = vsub.s32 2, %v4110
  %v4112 = vrot.slane %v3919, %v4111
  %v4118 = vlaneseq
  %v4119 = vshrl.u32 %v4118, 7
  %v4120 = vsub.s32 2, %v4119
  %v4121 = vrot.slane %v4096, %v4120
  %v4122 = vlaneseq
  %v4123 = vshrl.u32 %v4122, 7
  %v4124 = vsub.s32 2, %v4123
  %v4125 = vrot.slane %v4100, %v4124
  %v4126 = vlaneseq
  %v4127 = vshrl.u32 %v4126, 7
  %v4128 = vsub.s32 2, %v4127
  %v4129 = vrot.slane %v4104, %v4128
  %v4130 = vlaneseq
  %v4131 = vshrl.u32 %v4130, 7
  %v4132 = vsub.s32 2, %v4131
  %v4133 = vrot.slane %v4108, %v4132
  %v4134 = vlaneseq
  %v4135 = vshrl.u32 %v4134, 7
  %v4136 = vsub.s32 2, %v4135
  %v4137 = vrot.slane %v4112, %v4136
  %v4138 = vmul.f32 %v4091, %v4121
  %v4139 = vmul.f32 %v4091, %v4125
  %v4140 = vmul.f32 %v4091, %v4129
  %v4141 = vmul.f32 %v4091, %v4133
  %v4142 = vmul.f32 %v4091, %v4137
  %4148 = vrot.lane.b32.xlu0 %v4138, 127
  %v4149 = vpop.permute.xlu0 %4148
  %4150 = vrot.lane.b32.xlu0 %v4139, 127
  %v4151 = vpop.permute.xlu0 %4150
  %4152 = vrot.lane.b32.xlu0 %v4140, 127
  %v4153 = vpop.permute.xlu0 %4152
  %4154 = vrot.lane.b32.xlu0 %v4141, 127
  %v4155 = vpop.permute.xlu0 %4154
  %4156 = vrot.lane.b32.xlu0 %v4142, 127
  %v4157 = vpop.permute.xlu0 %4156
  %v4158 = vsel %vm400, %v4149, %v4151
  %v4159 = vsel %vm400, %v4151, %v4153
  %v4160 = vsel %vm400, %v4153, %v4155
  %v4161 = vsel %vm400, %v4155, %v4157
  %v4167 = vadd.f32 %v4084, %v4158
  %v4168 = vadd.f32 %v4085, %v4159
  %v4169 = vadd.f32 %v4086, %v4160
  %v4170 = vadd.f32 %v4087, %v4161
  %v4171 = vadd.f32 %v4088, %v4157
  %v4172 = vld [vmem:[#allocation3 + $0x4] sm:$0x77]
  %v4173 = vld [vmem:[#allocation3 + $0xc] sm:$0x77]
  %v4174 = vld [vmem:[#allocation3 + $0x14] sm:$0x7]
  %v4175 = vmul.f32 %v4172, %v2039
  %v4176 = vmul.f32 %v4173, %v2041
  %v4177 = vmul.f32 %v4174, %v2037
  %4178 = vset.pattern.permute.xlu0 24
  %4179 = vperm.xlu0 %4178, %v2384
  %v4180 = vpop.permute.xlu0 %4179
  %v4185 = vlaneseq
  %v4186 = vshrl.u32 %v4185, 7
  %v4187 = vsub.s32 0, %v4186
  %v4188 = vrot.slane %v4175, %v4187
  %v4189 = vlaneseq
  %v4190 = vshrl.u32 %v4189, 7
  %v4191 = vsub.s32 4, %v4190
  %v4192 = vrot.slane %v4175, %v4191
  %v4193 = vlaneseq
  %v4194 = vshrl.u32 %v4193, 7
  %v4195 = vsub.s32 0, %v4194
  %v4196 = vrot.slane %v4176, %v4195
  %v4197 = vlaneseq
  %v4198 = vshrl.u32 %v4197, 7
  %v4199 = vsub.s32 4, %v4198
  %v4200 = vrot.slane %v4176, %v4199
  %v4201 = vlaneseq
  %v4202 = vshrl.u32 %v4201, 7
  %v4203 = vsub.s32 0, %v4202
  %v4204 = vrot.slane %v4177, %v4203
  %v4210 = vlaneseq
  %v4211 = vshrl.u32 %v4210, 7
  %v4212 = vsub.s32 0, %v4211
  %v4213 = vrot.slane %v4188, %v4212
  %v4214 = vlaneseq
  %v4215 = vshrl.u32 %v4214, 7
  %v4216 = vsub.s32 0, %v4215
  %v4217 = vrot.slane %v4192, %v4216
  %v4218 = vlaneseq
  %v4219 = vshrl.u32 %v4218, 7
  %v4220 = vsub.s32 0, %v4219
  %v4221 = vrot.slane %v4196, %v4220
  %v4222 = vlaneseq
  %v4223 = vshrl.u32 %v4222, 7
  %v4224 = vsub.s32 0, %v4223
  %v4225 = vrot.slane %v4200, %v4224
  %v4226 = vlaneseq
  %v4227 = vshrl.u32 %v4226, 7
  %v4228 = vsub.s32 0, %v4227
  %v4229 = vrot.slane %v4204, %v4228
  %v4230 = vmul.f32 %v4180, %v4213
  %v4231 = vmul.f32 %v4180, %v4217
  %v4232 = vmul.f32 %v4180, %v4221
  %v4233 = vmul.f32 %v4180, %v4225
  %v4234 = vmul.f32 %v4180, %v4229
  %4240 = vrot.lane.b32.xlu0 %v4230, 126
  %v4241 = vpop.permute.xlu0 %4240
  %4242 = vrot.lane.b32.xlu0 %v4231, 126
  %v4243 = vpop.permute.xlu0 %4242
  %4244 = vrot.lane.b32.xlu0 %v4232, 126
  %v4245 = vpop.permute.xlu0 %4244
  %4246 = vrot.lane.b32.xlu0 %v4233, 126
  %v4247 = vpop.permute.xlu0 %4246
  %4248 = vrot.lane.b32.xlu0 %v4234, 126
  %v4249 = vpop.permute.xlu0 %4248
  %v4250 = vsel %vm678, %v4241, %v4243
  %v4251 = vsel %vm678, %v4243, %v4245
  %v4252 = vsel %vm678, %v4245, %v4247
  %v4253 = vsel %vm678, %v4247, %v4249
  %v4259 = vadd.f32 %v4167, %v4250
  %v4260 = vadd.f32 %v4168, %v4251
  %v4261 = vadd.f32 %v4169, %v4252
  %v4262 = vadd.f32 %v4170, %v4253
  %v4263 = vadd.f32 %v4171, %v4249
  %4264 = vset.pattern.permute.xlu0 25
  %4265 = vperm.xlu0 %4264, %v2384
  %v4266 = vpop.permute.xlu0 %4265
  %v4268 = vlaneseq
  %v4269 = vshrl.u32 %v4268, 7
  %v4270 = vsub.s32 1, %v4269
  %v4271 = vrot.slane %v4175, %v4270
  %v4272 = vlaneseq
  %v4273 = vshrl.u32 %v4272, 7
  %v4274 = vsub.s32 5, %v4273
  %v4275 = vrot.slane %v4175, %v4274
  %v4276 = vlaneseq
  %v4277 = vshrl.u32 %v4276, 7
  %v4278 = vsub.s32 1, %v4277
  %v4279 = vrot.slane %v4176, %v4278
  %v4280 = vlaneseq
  %v4281 = vshrl.u32 %v4280, 7
  %v4282 = vsub.s32 5, %v4281
  %v4283 = vrot.slane %v4176, %v4282
  %v4284 = vlaneseq
  %v4285 = vshrl.u32 %v4284, 7
  %v4286 = vsub.s32 1, %v4285
  %v4287 = vrot.slane %v4177, %v4286
  %v4293 = vlaneseq
  %v4294 = vshrl.u32 %v4293, 7
  %v4295 = vsub.s32 1, %v4294
  %v4296 = vrot.slane %v4271, %v4295
  %v4297 = vlaneseq
  %v4298 = vshrl.u32 %v4297, 7
  %v4299 = vsub.s32 1, %v4298
  %v4300 = vrot.slane %v4275, %v4299
  %v4301 = vlaneseq
  %v4302 = vshrl.u32 %v4301, 7
  %v4303 = vsub.s32 1, %v4302
  %v4304 = vrot.slane %v4279, %v4303
  %v4305 = vlaneseq
  %v4306 = vshrl.u32 %v4305, 7
  %v4307 = vsub.s32 1, %v4306
  %v4308 = vrot.slane %v4283, %v4307
  %v4309 = vlaneseq
  %v4310 = vshrl.u32 %v4309, 7
  %v4311 = vsub.s32 1, %v4310
  %v4312 = vrot.slane %v4287, %v4311
  %v4313 = vmul.f32 %v4266, %v4296
  %v4314 = vmul.f32 %v4266, %v4300
  %v4315 = vmul.f32 %v4266, %v4304
  %v4316 = vmul.f32 %v4266, %v4308
  %v4317 = vmul.f32 %v4266, %v4312
  %4323 = vrot.lane.b32.xlu0 %v4313, 126
  %v4324 = vpop.permute.xlu0 %4323
  %4325 = vrot.lane.b32.xlu0 %v4314, 126
  %v4326 = vpop.permute.xlu0 %4325
  %4327 = vrot.lane.b32.xlu0 %v4315, 126
  %v4328 = vpop.permute.xlu0 %4327
  %4329 = vrot.lane.b32.xlu0 %v4316, 126
  %v4330 = vpop.permute.xlu0 %4329
  %4331 = vrot.lane.b32.xlu0 %v4317, 126
  %v4332 = vpop.permute.xlu0 %4331
  %v4333 = vsel %vm678, %v4324, %v4326
  %v4334 = vsel %vm678, %v4326, %v4328
  %v4335 = vsel %vm678, %v4328, %v4330
  %v4336 = vsel %vm678, %v4330, %v4332
  %v4342 = vadd.f32 %v4259, %v4333
  %v4343 = vadd.f32 %v4260, %v4334
  %v4344 = vadd.f32 %v4261, %v4335
  %v4345 = vadd.f32 %v4262, %v4336
  %v4346 = vadd.f32 %v4263, %v4332
  %4347 = vset.pattern.permute.xlu0 26
  %4348 = vperm.xlu0 %4347, %v2384
  %v4349 = vpop.permute.xlu0 %4348
  %v4351 = vlaneseq
  %v4352 = vshrl.u32 %v4351, 7
  %v4353 = vsub.s32 2, %v4352
  %v4354 = vrot.slane %v4175, %v4353
  %v4355 = vlaneseq
  %v4356 = vshrl.u32 %v4355, 7
  %v4357 = vsub.s32 6, %v4356
  %v4358 = vrot.slane %v4175, %v4357
  %v4359 = vlaneseq
  %v4360 = vshrl.u32 %v4359, 7
  %v4361 = vsub.s32 2, %v4360
  %v4362 = vrot.slane %v4176, %v4361
  %v4363 = vlaneseq
  %v4364 = vshrl.u32 %v4363, 7
  %v4365 = vsub.s32 6, %v4364
  %v4366 = vrot.slane %v4176, %v4365
  %v4367 = vlaneseq
  %v4368 = vshrl.u32 %v4367, 7
  %v4369 = vsub.s32 2, %v4368
  %v4370 = vrot.slane %v4177, %v4369
  %v4376 = vlaneseq
  %v4377 = vshrl.u32 %v4376, 7
  %v4378 = vsub.s32 2, %v4377
  %v4379 = vrot.slane %v4354, %v4378
  %v4380 = vlaneseq
  %v4381 = vshrl.u32 %v4380, 7
  %v4382 = vsub.s32 2, %v4381
  %v4383 = vrot.slane %v4358, %v4382
  %v4384 = vlaneseq
  %v4385 = vshrl.u32 %v4384, 7
  %v4386 = vsub.s32 2, %v4385
  %v4387 = vrot.slane %v4362, %v4386
  %v4388 = vlaneseq
  %v4389 = vshrl.u32 %v4388, 7
  %v4390 = vsub.s32 2, %v4389
  %v4391 = vrot.slane %v4366, %v4390
  %v4392 = vlaneseq
  %v4393 = vshrl.u32 %v4392, 7
  %v4394 = vsub.s32 2, %v4393
  %v4395 = vrot.slane %v4370, %v4394
  %v4396 = vmul.f32 %v4349, %v4379
  %v4397 = vmul.f32 %v4349, %v4383
  %v4398 = vmul.f32 %v4349, %v4387
  %v4399 = vmul.f32 %v4349, %v4391
  %v4400 = vmul.f32 %v4349, %v4395
  %4406 = vrot.lane.b32.xlu0 %v4396, 126
  %v4407 = vpop.permute.xlu0 %4406
  %4408 = vrot.lane.b32.xlu0 %v4397, 126
  %v4409 = vpop.permute.xlu0 %4408
  %4410 = vrot.lane.b32.xlu0 %v4398, 126
  %v4411 = vpop.permute.xlu0 %4410
  %4412 = vrot.lane.b32.xlu0 %v4399, 126
  %v4413 = vpop.permute.xlu0 %4412
  %4414 = vrot.lane.b32.xlu0 %v4400, 126
  %v4415 = vpop.permute.xlu0 %4414
  %v4416 = vsel %vm678, %v4407, %v4409
  %v4417 = vsel %vm678, %v4409, %v4411
  %v4418 = vsel %vm678, %v4411, %v4413
  %v4419 = vsel %vm678, %v4413, %v4415
  %v4425 = vadd.f32 %v4342, %v4416
  %v4426 = vadd.f32 %v4343, %v4417
  %v4427 = vadd.f32 %v4344, %v4418
  %v4428 = vadd.f32 %v4345, %v4419
  %v4429 = vadd.f32 %v4346, %v4415
  %4435 = vrot.lane.b32.xlu0 %v3728, 112
  %v4436 = vpop.permute.xlu0 %4435
  %4437 = vrot.lane.b32.xlu0 %v3729, 112
  %v4438 = vpop.permute.xlu0 %4437
  %4439 = vrot.lane.b32.xlu0 %v3730, 112
  %v4440 = vpop.permute.xlu0 %4439
  %4441 = vrot.lane.b32.xlu0 %v3731, 112
  %v4442 = vpop.permute.xlu0 %4441
  %4443 = vrot.lane.b32.xlu0 %v3732, 112
  %v4444 = vpop.permute.xlu0 %4443
  %v4445 = vsel %vm318, %v4436, %v4438
  %v4446 = vsel %vm318, %v4438, %v4440
  %v4447 = vsel %vm318, %v4440, %v4442
  %v4448 = vsel %vm318, %v4442, %v4444
  %v4454 = vadd.f32 %v3078, %v4445
  %v4455 = vadd.f32 %v3079, %v4446
  %v4456 = vadd.f32 %v3080, %v4447
  %v4457 = vadd.f32 %v3081, %v4448
  %v4458 = vadd.f32 %v3082, %v4444
  %4464 = vrot.lane.b32.xlu0 %v4425, 96
  %v4465 = vpop.permute.xlu0 %4464
  %4466 = vrot.lane.b32.xlu0 %v4426, 96
  %v4467 = vpop.permute.xlu0 %4466
  %4468 = vrot.lane.b32.xlu0 %v4427, 96
  %v4469 = vpop.permute.xlu0 %4468
  %4470 = vrot.lane.b32.xlu0 %v4428, 96
  %v4471 = vpop.permute.xlu0 %4470
  %4472 = vrot.lane.b32.xlu0 %v4429, 96
  %v4473 = vpop.permute.xlu0 %4472
  %v4474 = vsel %vm2344, %v4465, %v4467
  %v4475 = vsel %vm2344, %v4467, %v4469
  %v4476 = vsel %vm2344, %v4469, %v4471
  %v4477 = vsel %vm2344, %v4471, %v4473
  %v4483 = vadd.f32 %v4454, %v4465
  %v4484 = vadd.f32 %v4455, %v4474
  %v4485 = vadd.f32 %v4456, %v4475
  %v4486 = vadd.f32 %v4457, %v4476
  %v4487 = vadd.f32 %v4458, %v4477
  %v4493 = vcombine.low %v4483, %v4484
  %v4494 = vcombine.low %v4485, %v4486
  %4495 = vrot.lane.b32.xlu0 %v4493, 17
  %v4496 = vpop.permute.xlu0 %4495
  %4497 = vrot.lane.b32.xlu0 %v4494, 17
  %v4498 = vpop.permute.xlu0 %4497
  %4499 = vrot.lane.b32.xlu0 %v4487, 17
  %v4500 = vpop.permute.xlu0 %4499
  %v4501 = vrot.slane %v4496, 4
  %v4502 = vrot.slane %v4498, 4
  %v4503 = vrot.slane %v4500, 4
  %v4504 = vsel %vm118, %v4501, %v4502
  %v4505 = vsel %vm2038, %v4496, %v4504
  %v4506 = vsel %vm118, %v4502, %v4503
  %v4507 = vsel %vm2038, %v4498, %v4506
  %4510 = vst [vmem:[#allocation2 + $0x4] sm:$0x77] %v4505
  %4511 = vst [vmem:[#allocation2 + $0xc] sm:$0x77] %v4507
  %s4512 = scalar_lea.vmem %s0, 8
  %v4513 = vld [vmem:[%s4512] sm:$0x7]
  %v4514 = vld [vmem:[#allocation2] sm:$0x77]
  %v4515 = vld [vmem:[#allocation2 + $0x8] sm:$0x77]
  %v4516 = vld [vmem:[#allocation2 + $0x10] sm:$0x7]
  %v4517 = vmul.f32 %v4514, %v117
  %v4518 = vmul.f32 %v4515, %v120
  %v4519 = vmul.f32 %v4516, %v115
  %4521 = vset.pattern.permute.xlu0 0
  %4522 = vperm.xlu0 %4521, %v4513
  %v4523 = vpop.permute.xlu0 %4522
  %v4528 = vlaneseq
  %v4529 = vshrl.u32 %v4528, 7
  %v4530 = vsub.s32 0, %v4529
  %v4531 = vrot.slane %v4517, %v4530
  %v4532 = vlaneseq
  %v4533 = vshrl.u32 %v4532, 7
  %v4534 = vsub.s32 4, %v4533
  %v4535 = vrot.slane %v4517, %v4534
  %v4536 = vlaneseq
  %v4537 = vshrl.u32 %v4536, 7
  %v4538 = vsub.s32 0, %v4537
  %v4539 = vrot.slane %v4518, %v4538
  %v4540 = vlaneseq
  %v4541 = vshrl.u32 %v4540, 7
  %v4542 = vsub.s32 4, %v4541
  %v4543 = vrot.slane %v4518, %v4542
  %v4544 = vlaneseq
  %v4545 = vshrl.u32 %v4544, 7
  %v4546 = vsub.s32 0, %v4545
  %v4547 = vrot.slane %v4519, %v4546
  %v4553 = vlaneseq
  %v4554 = vshrl.u32 %v4553, 7
  %v4555 = vsub.s32 0, %v4554
  %v4556 = vrot.slane %v4531, %v4555
  %v4557 = vlaneseq
  %v4558 = vshrl.u32 %v4557, 7
  %v4559 = vsub.s32 0, %v4558
  %v4560 = vrot.slane %v4535, %v4559
  %v4561 = vlaneseq
  %v4562 = vshrl.u32 %v4561, 7
  %v4563 = vsub.s32 0, %v4562
  %v4564 = vrot.slane %v4539, %v4563
  %v4565 = vlaneseq
  %v4566 = vshrl.u32 %v4565, 7
  %v4567 = vsub.s32 0, %v4566
  %v4568 = vrot.slane %v4543, %v4567
  %v4569 = vlaneseq
  %v4570 = vshrl.u32 %v4569, 7
  %v4571 = vsub.s32 0, %v4570
  %v4572 = vrot.slane %v4547, %v4571
  %v4573 = vmul.f32 %v4523, %v4556
  %v4574 = vmul.f32 %v4523, %v4560
  %v4575 = vmul.f32 %v4523, %v4564
  %v4576 = vmul.f32 %v4523, %v4568
  %v4577 = vmul.f32 %v4523, %v4572
  %4578 = vset.pattern.permute.xlu0 1
  %4579 = vperm.xlu0 %4578, %v4513
  %v4580 = vpop.permute.xlu0 %4579
  %v4582 = vlaneseq
  %v4583 = vshrl.u32 %v4582, 7
  %v4584 = vsub.s32 1, %v4583
  %v4585 = vrot.slane %v4517, %v4584
  %v4586 = vlaneseq
  %v4587 = vshrl.u32 %v4586, 7
  %v4588 = vsub.s32 5, %v4587
  %v4589 = vrot.slane %v4517, %v4588
  %v4590 = vlaneseq
  %v4591 = vshrl.u32 %v4590, 7
  %v4592 = vsub.s32 1, %v4591
  %v4593 = vrot.slane %v4518, %v4592
  %v4594 = vlaneseq
  %v4595 = vshrl.u32 %v4594, 7
  %v4596 = vsub.s32 5, %v4595
  %v4597 = vrot.slane %v4518, %v4596
  %v4598 = vlaneseq
  %v4599 = vshrl.u32 %v4598, 7
  %v4600 = vsub.s32 1, %v4599
  %v4601 = vrot.slane %v4519, %v4600
  %v4607 = vlaneseq
  %v4608 = vshrl.u32 %v4607, 7
  %v4609 = vsub.s32 1, %v4608
  %v4610 = vrot.slane %v4585, %v4609
  %v4611 = vlaneseq
  %v4612 = vshrl.u32 %v4611, 7
  %v4613 = vsub.s32 1, %v4612
  %v4614 = vrot.slane %v4589, %v4613
  %v4615 = vlaneseq
  %v4616 = vshrl.u32 %v4615, 7
  %v4617 = vsub.s32 1, %v4616
  %v4618 = vrot.slane %v4593, %v4617
  %v4619 = vlaneseq
  %v4620 = vshrl.u32 %v4619, 7
  %v4621 = vsub.s32 1, %v4620
  %v4622 = vrot.slane %v4597, %v4621
  %v4623 = vlaneseq
  %v4624 = vshrl.u32 %v4623, 7
  %v4625 = vsub.s32 1, %v4624
  %v4626 = vrot.slane %v4601, %v4625
  %v4627 = vmul.f32 %v4580, %v4610
  %v4628 = vmul.f32 %v4580, %v4614
  %v4629 = vmul.f32 %v4580, %v4618
  %v4630 = vmul.f32 %v4580, %v4622
  %v4631 = vmul.f32 %v4580, %v4626
  %v4632 = vadd.f32 %v4573, %v4627
  %v4633 = vadd.f32 %v4574, %v4628
  %v4634 = vadd.f32 %v4575, %v4629
  %v4635 = vadd.f32 %v4576, %v4630
  %v4636 = vadd.f32 %v4577, %v4631
  %4637 = vset.pattern.permute.xlu0 2
  %4638 = vperm.xlu0 %4637, %v4513
  %v4639 = vpop.permute.xlu0 %4638
  %v4641 = vlaneseq
  %v4642 = vshrl.u32 %v4641, 7
  %v4643 = vsub.s32 2, %v4642
  %v4644 = vrot.slane %v4517, %v4643
  %v4645 = vlaneseq
  %v4646 = vshrl.u32 %v4645, 7
  %v4647 = vsub.s32 6, %v4646
  %v4648 = vrot.slane %v4517, %v4647
  %v4649 = vlaneseq
  %v4650 = vshrl.u32 %v4649, 7
  %v4651 = vsub.s32 2, %v4650
  %v4652 = vrot.slane %v4518, %v4651
  %v4653 = vlaneseq
  %v4654 = vshrl.u32 %v4653, 7
  %v4655 = vsub.s32 6, %v4654
  %v4656 = vrot.slane %v4518, %v4655
  %v4657 = vlaneseq
  %v4658 = vshrl.u32 %v4657, 7
  %v4659 = vsub.s32 2, %v4658
  %v4660 = vrot.slane %v4519, %v4659
  %v4666 = vlaneseq
  %v4667 = vshrl.u32 %v4666, 7
  %v4668 = vsub.s32 2, %v4667
  %v4669 = vrot.slane %v4644, %v4668
  %v4670 = vlaneseq
  %v4671 = vshrl.u32 %v4670, 7
  %v4672 = vsub.s32 2, %v4671
  %v4673 = vrot.slane %v4648, %v4672
  %v4674 = vlaneseq
  %v4675 = vshrl.u32 %v4674, 7
  %v4676 = vsub.s32 2, %v4675
  %v4677 = vrot.slane %v4652, %v4676
  %v4678 = vlaneseq
  %v4679 = vshrl.u32 %v4678, 7
  %v4680 = vsub.s32 2, %v4679
  %v4681 = vrot.slane %v4656, %v4680
  %v4682 = vlaneseq
  %v4683 = vshrl.u32 %v4682, 7
  %v4684 = vsub.s32 2, %v4683
  %v4685 = vrot.slane %v4660, %v4684
  %v4686 = vmul.f32 %v4639, %v4669
  %v4687 = vmul.f32 %v4639, %v4673
  %v4688 = vmul.f32 %v4639, %v4677
  %v4689 = vmul.f32 %v4639, %v4681
  %v4690 = vmul.f32 %v4639, %v4685
  %v4691 = vadd.f32 %v4632, %v4686
  %v4692 = vadd.f32 %v4633, %v4687
  %v4693 = vadd.f32 %v4634, %v4688
  %v4694 = vadd.f32 %v4635, %v4689
  %v4695 = vadd.f32 %v4636, %v4690
  %v4696 = vld [vmem:[#allocation2] sm:$0x77]
  %v4697 = vld [vmem:[#allocation2 + $0x8] sm:$0x77]
  %v4698 = vld [vmem:[#allocation2 + $0x10] sm:$0x7]
  %v4699 = vmul.f32 %v4696, %v319
  %v4700 = vmul.f32 %v4697, %v321
  %v4701 = vmul.f32 %v4698, %v317
  %4702 = vset.pattern.permute.xlu0 3
  %4703 = vperm.xlu0 %4702, %v4513
  %v4704 = vpop.permute.xlu0 %4703
  %v4709 = vlaneseq
  %v4710 = vshrl.u32 %v4709, 7
  %v4711 = vsub.s32 0, %v4710
  %v4712 = vrot.slane %v4699, %v4711
  %v4713 = vlaneseq
  %v4714 = vshrl.u32 %v4713, 7
  %v4715 = vsub.s32 4, %v4714
  %v4716 = vrot.slane %v4699, %v4715
  %v4717 = vlaneseq
  %v4718 = vshrl.u32 %v4717, 7
  %v4719 = vsub.s32 0, %v4718
  %v4720 = vrot.slane %v4700, %v4719
  %v4721 = vlaneseq
  %v4722 = vshrl.u32 %v4721, 7
  %v4723 = vsub.s32 4, %v4722
  %v4724 = vrot.slane %v4700, %v4723
  %v4725 = vlaneseq
  %v4726 = vshrl.u32 %v4725, 7
  %v4727 = vsub.s32 0, %v4726
  %v4728 = vrot.slane %v4701, %v4727
  %v4734 = vlaneseq
  %v4735 = vshrl.u32 %v4734, 7
  %v4736 = vsub.s32 0, %v4735
  %v4737 = vrot.slane %v4712, %v4736
  %v4738 = vlaneseq
  %v4739 = vshrl.u32 %v4738, 7
  %v4740 = vsub.s32 0, %v4739
  %v4741 = vrot.slane %v4716, %v4740
  %v4742 = vlaneseq
  %v4743 = vshrl.u32 %v4742, 7
  %v4744 = vsub.s32 0, %v4743
  %v4745 = vrot.slane %v4720, %v4744
  %v4746 = vlaneseq
  %v4747 = vshrl.u32 %v4746, 7
  %v4748 = vsub.s32 0, %v4747
  %v4749 = vrot.slane %v4724, %v4748
  %v4750 = vlaneseq
  %v4751 = vshrl.u32 %v4750, 7
  %v4752 = vsub.s32 0, %v4751
  %v4753 = vrot.slane %v4728, %v4752
  %v4754 = vmul.f32 %v4704, %v4737
  %v4755 = vmul.f32 %v4704, %v4741
  %v4756 = vmul.f32 %v4704, %v4745
  %v4757 = vmul.f32 %v4704, %v4749
  %v4758 = vmul.f32 %v4704, %v4753
  %4764 = vrot.lane.b32.xlu0 %v4754, 127
  %v4765 = vpop.permute.xlu0 %4764
  %4766 = vrot.lane.b32.xlu0 %v4755, 127
  %v4767 = vpop.permute.xlu0 %4766
  %4768 = vrot.lane.b32.xlu0 %v4756, 127
  %v4769 = vpop.permute.xlu0 %4768
  %4770 = vrot.lane.b32.xlu0 %v4757, 127
  %v4771 = vpop.permute.xlu0 %4770
  %4772 = vrot.lane.b32.xlu0 %v4758, 127
  %v4773 = vpop.permute.xlu0 %4772
  %v4774 = vsel %vm400, %v4765, %v4767
  %v4775 = vsel %vm400, %v4767, %v4769
  %v4776 = vsel %vm400, %v4769, %v4771
  %v4777 = vsel %vm400, %v4771, %v4773
  %v4783 = vadd.f32 %v4691, %v4774
  %v4784 = vadd.f32 %v4692, %v4775
  %v4785 = vadd.f32 %v4693, %v4776
  %v4786 = vadd.f32 %v4694, %v4777
  %v4787 = vadd.f32 %v4695, %v4773
  %4788 = vset.pattern.permute.xlu0 4
  %4789 = vperm.xlu0 %4788, %v4513
  %v4790 = vpop.permute.xlu0 %4789
  %v4792 = vlaneseq
  %v4793 = vshrl.u32 %v4792, 7
  %v4794 = vsub.s32 1, %v4793
  %v4795 = vrot.slane %v4699, %v4794
  %v4796 = vlaneseq
  %v4797 = vshrl.u32 %v4796, 7
  %v4798 = vsub.s32 5, %v4797
  %v4799 = vrot.slane %v4699, %v4798
  %v4800 = vlaneseq
  %v4801 = vshrl.u32 %v4800, 7
  %v4802 = vsub.s32 1, %v4801
  %v4803 = vrot.slane %v4700, %v4802
  %v4804 = vlaneseq
  %v4805 = vshrl.u32 %v4804, 7
  %v4806 = vsub.s32 5, %v4805
  %v4807 = vrot.slane %v4700, %v4806
  %v4808 = vlaneseq
  %v4809 = vshrl.u32 %v4808, 7
  %v4810 = vsub.s32 1, %v4809
  %v4811 = vrot.slane %v4701, %v4810
  %v4817 = vlaneseq
  %v4818 = vshrl.u32 %v4817, 7
  %v4819 = vsub.s32 1, %v4818
  %v4820 = vrot.slane %v4795, %v4819
  %v4821 = vlaneseq
  %v4822 = vshrl.u32 %v4821, 7
  %v4823 = vsub.s32 1, %v4822
  %v4824 = vrot.slane %v4799, %v4823
  %v4825 = vlaneseq
  %v4826 = vshrl.u32 %v4825, 7
  %v4827 = vsub.s32 1, %v4826
  %v4828 = vrot.slane %v4803, %v4827
  %v4829 = vlaneseq
  %v4830 = vshrl.u32 %v4829, 7
  %v4831 = vsub.s32 1, %v4830
  %v4832 = vrot.slane %v4807, %v4831
  %v4833 = vlaneseq
  %v4834 = vshrl.u32 %v4833, 7
  %v4835 = vsub.s32 1, %v4834
  %v4836 = vrot.slane %v4811, %v4835
  %v4837 = vmul.f32 %v4790, %v4820
  %v4838 = vmul.f32 %v4790, %v4824
  %v4839 = vmul.f32 %v4790, %v4828
  %v4840 = vmul.f32 %v4790, %v4832
  %v4841 = vmul.f32 %v4790, %v4836
  %4847 = vrot.lane.b32.xlu0 %v4837, 127
  %v4848 = vpop.permute.xlu0 %4847
  %4849 = vrot.lane.b32.xlu0 %v4838, 127
  %v4850 = vpop.permute.xlu0 %4849
  %4851 = vrot.lane.b32.xlu0 %v4839, 127
  %v4852 = vpop.permute.xlu0 %4851
  %4853 = vrot.lane.b32.xlu0 %v4840, 127
  %v4854 = vpop.permute.xlu0 %4853
  %4855 = vrot.lane.b32.xlu0 %v4841, 127
  %v4856 = vpop.permute.xlu0 %4855
  %v4857 = vsel %vm400, %v4848, %v4850
  %v4858 = vsel %vm400, %v4850, %v4852
  %v4859 = vsel %vm400, %v4852, %v4854
  %v4860 = vsel %vm400, %v4854, %v4856
  %v4866 = vadd.f32 %v4783, %v4857
  %v4867 = vadd.f32 %v4784, %v4858
  %v4868 = vadd.f32 %v4785, %v4859
  %v4869 = vadd.f32 %v4786, %v4860
  %v4870 = vadd.f32 %v4787, %v4856
  %4871 = vset.pattern.permute.xlu0 5
  %4872 = vperm.xlu0 %4871, %v4513
  %v4873 = vpop.permute.xlu0 %4872
  %v4875 = vlaneseq
  %v4876 = vshrl.u32 %v4875, 7
  %v4877 = vsub.s32 2, %v4876
  %v4878 = vrot.slane %v4699, %v4877
  %v4879 = vlaneseq
  %v4880 = vshrl.u32 %v4879, 7
  %v4881 = vsub.s32 6, %v4880
  %v4882 = vrot.slane %v4699, %v4881
  %v4883 = vlaneseq
  %v4884 = vshrl.u32 %v4883, 7
  %v4885 = vsub.s32 2, %v4884
  %v4886 = vrot.slane %v4700, %v4885
  %v4887 = vlaneseq
  %v4888 = vshrl.u32 %v4887, 7
  %v4889 = vsub.s32 6, %v4888
  %v4890 = vrot.slane %v4700, %v4889
  %v4891 = vlaneseq
  %v4892 = vshrl.u32 %v4891, 7
  %v4893 = vsub.s32 2, %v4892
  %v4894 = vrot.slane %v4701, %v4893
  %v4900 = vlaneseq
  %v4901 = vshrl.u32 %v4900, 7
  %v4902 = vsub.s32 2, %v4901
  %v4903 = vrot.slane %v4878, %v4902
  %v4904 = vlaneseq
  %v4905 = vshrl.u32 %v4904, 7
  %v4906 = vsub.s32 2, %v4905
  %v4907 = vrot.slane %v4882, %v4906
  %v4908 = vlaneseq
  %v4909 = vshrl.u32 %v4908, 7
  %v4910 = vsub.s32 2, %v4909
  %v4911 = vrot.slane %v4886, %v4910
  %v4912 = vlaneseq
  %v4913 = vshrl.u32 %v4912, 7
  %v4914 = vsub.s32 2, %v4913
  %v4915 = vrot.slane %v4890, %v4914
  %v4916 = vlaneseq
  %v4917 = vshrl.u32 %v4916, 7
  %v4918 = vsub.s32 2, %v4917
  %v4919 = vrot.slane %v4894, %v4918
  %v4920 = vmul.f32 %v4873, %v4903
  %v4921 = vmul.f32 %v4873, %v4907
  %v4922 = vmul.f32 %v4873, %v4911
  %v4923 = vmul.f32 %v4873, %v4915
  %v4924 = vmul.f32 %v4873, %v4919
  %4930 = vrot.lane.b32.xlu0 %v4920, 127
  %v4931 = vpop.permute.xlu0 %4930
  %4932 = vrot.lane.b32.xlu0 %v4921, 127
  %v4933 = vpop.permute.xlu0 %4932
  %4934 = vrot.lane.b32.xlu0 %v4922, 127
  %v4935 = vpop.permute.xlu0 %4934
  %4936 = vrot.lane.b32.xlu0 %v4923, 127
  %v4937 = vpop.permute.xlu0 %4936
  %4938 = vrot.lane.b32.xlu0 %v4924, 127
  %v4939 = vpop.permute.xlu0 %4938
  %v4940 = vsel %vm400, %v4931, %v4933
  %v4941 = vsel %vm400, %v4933, %v4935
  %v4942 = vsel %vm400, %v4935, %v4937
  %v4943 = vsel %vm400, %v4937, %v4939
  %v4949 = vadd.f32 %v4866, %v4940
  %v4950 = vadd.f32 %v4867, %v4941
  %v4951 = vadd.f32 %v4868, %v4942
  %v4952 = vadd.f32 %v4869, %v4943
  %v4953 = vadd.f32 %v4870, %v4939
  %v4954 = vld [vmem:[#allocation2] sm:$0x77]
  %v4955 = vld [vmem:[#allocation2 + $0x8] sm:$0x77]
  %v4956 = vld [vmem:[#allocation2 + $0x10] sm:$0x7]
  %v4957 = vmul.f32 %v4954, %v597
  %v4958 = vmul.f32 %v4955, %v599
  %v4959 = vmul.f32 %v4956, %v595
  %4960 = vset.pattern.permute.xlu0 6
  %4961 = vperm.xlu0 %4960, %v4513
  %v4962 = vpop.permute.xlu0 %4961
  %v4967 = vlaneseq
  %v4968 = vshrl.u32 %v4967, 7
  %v4969 = vsub.s32 0, %v4968
  %v4970 = vrot.slane %v4957, %v4969
  %v4971 = vlaneseq
  %v4972 = vshrl.u32 %v4971, 7
  %v4973 = vsub.s32 4, %v4972
  %v4974 = vrot.slane %v4957, %v4973
  %v4975 = vlaneseq
  %v4976 = vshrl.u32 %v4975, 7
  %v4977 = vsub.s32 0, %v4976
  %v4978 = vrot.slane %v4958, %v4977
  %v4979 = vlaneseq
  %v4980 = vshrl.u32 %v4979, 7
  %v4981 = vsub.s32 4, %v4980
  %v4982 = vrot.slane %v4958, %v4981
  %v4983 = vlaneseq
  %v4984 = vshrl.u32 %v4983, 7
  %v4985 = vsub.s32 0, %v4984
  %v4986 = vrot.slane %v4959, %v4985
  %v4992 = vlaneseq
  %v4993 = vshrl.u32 %v4992, 7
  %v4994 = vsub.s32 0, %v4993
  %v4995 = vrot.slane %v4970, %v4994
  %v4996 = vlaneseq
  %v4997 = vshrl.u32 %v4996, 7
  %v4998 = vsub.s32 0, %v4997
  %v4999 = vrot.slane %v4974, %v4998
  %v5000 = vlaneseq
  %v5001 = vshrl.u32 %v5000, 7
  %v5002 = vsub.s32 0, %v5001
  %v5003 = vrot.slane %v4978, %v5002
  %v5004 = vlaneseq
  %v5005 = vshrl.u32 %v5004, 7
  %v5006 = vsub.s32 0, %v5005
  %v5007 = vrot.slane %v4982, %v5006
  %v5008 = vlaneseq
  %v5009 = vshrl.u32 %v5008, 7
  %v5010 = vsub.s32 0, %v5009
  %v5011 = vrot.slane %v4986, %v5010
  %v5012 = vmul.f32 %v4962, %v4995
  %v5013 = vmul.f32 %v4962, %v4999
  %v5014 = vmul.f32 %v4962, %v5003
  %v5015 = vmul.f32 %v4962, %v5007
  %v5016 = vmul.f32 %v4962, %v5011
  %5022 = vrot.lane.b32.xlu0 %v5012, 126
  %v5023 = vpop.permute.xlu0 %5022
  %5024 = vrot.lane.b32.xlu0 %v5013, 126
  %v5025 = vpop.permute.xlu0 %5024
  %5026 = vrot.lane.b32.xlu0 %v5014, 126
  %v5027 = vpop.permute.xlu0 %5026
  %5028 = vrot.lane.b32.xlu0 %v5015, 126
  %v5029 = vpop.permute.xlu0 %5028
  %5030 = vrot.lane.b32.xlu0 %v5016, 126
  %v5031 = vpop.permute.xlu0 %5030
  %v5032 = vsel %vm678, %v5023, %v5025
  %v5033 = vsel %vm678, %v5025, %v5027
  %v5034 = vsel %vm678, %v5027, %v5029
  %v5035 = vsel %vm678, %v5029, %v5031
  %v5041 = vadd.f32 %v4949, %v5032
  %v5042 = vadd.f32 %v4950, %v5033
  %v5043 = vadd.f32 %v4951, %v5034
  %v5044 = vadd.f32 %v4952, %v5035
  %v5045 = vadd.f32 %v4953, %v5031
  %5046 = vset.pattern.permute.xlu0 7
  %5047 = vperm.xlu0 %5046, %v4513
  %v5048 = vpop.permute.xlu0 %5047
  %v5050 = vlaneseq
  %v5051 = vshrl.u32 %v5050, 7
  %v5052 = vsub.s32 1, %v5051
  %v5053 = vrot.slane %v4957, %v5052
  %v5054 = vlaneseq
  %v5055 = vshrl.u32 %v5054, 7
  %v5056 = vsub.s32 5, %v5055
  %v5057 = vrot.slane %v4957, %v5056
  %v5058 = vlaneseq
  %v5059 = vshrl.u32 %v5058, 7
  %v5060 = vsub.s32 1, %v5059
  %v5061 = vrot.slane %v4958, %v5060
  %v5062 = vlaneseq
  %v5063 = vshrl.u32 %v5062, 7
  %v5064 = vsub.s32 5, %v5063
  %v5065 = vrot.slane %v4958, %v5064
  %v5066 = vlaneseq
  %v5067 = vshrl.u32 %v5066, 7
  %v5068 = vsub.s32 1, %v5067
  %v5069 = vrot.slane %v4959, %v5068
  %v5075 = vlaneseq
  %v5076 = vshrl.u32 %v5075, 7
  %v5077 = vsub.s32 1, %v5076
  %v5078 = vrot.slane %v5053, %v5077
  %v5079 = vlaneseq
  %v5080 = vshrl.u32 %v5079, 7
  %v5081 = vsub.s32 1, %v5080
  %v5082 = vrot.slane %v5057, %v5081
  %v5083 = vlaneseq
  %v5084 = vshrl.u32 %v5083, 7
  %v5085 = vsub.s32 1, %v5084
  %v5086 = vrot.slane %v5061, %v5085
  %v5087 = vlaneseq
  %v5088 = vshrl.u32 %v5087, 7
  %v5089 = vsub.s32 1, %v5088
  %v5090 = vrot.slane %v5065, %v5089
  %v5091 = vlaneseq
  %v5092 = vshrl.u32 %v5091, 7
  %v5093 = vsub.s32 1, %v5092
  %v5094 = vrot.slane %v5069, %v5093
  %v5095 = vmul.f32 %v5048, %v5078
  %v5096 = vmul.f32 %v5048, %v5082
  %v5097 = vmul.f32 %v5048, %v5086
  %v5098 = vmul.f32 %v5048, %v5090
  %v5099 = vmul.f32 %v5048, %v5094
  %5105 = vrot.lane.b32.xlu0 %v5095, 126
  %v5106 = vpop.permute.xlu0 %5105
  %5107 = vrot.lane.b32.xlu0 %v5096, 126
  %v5108 = vpop.permute.xlu0 %5107
  %5109 = vrot.lane.b32.xlu0 %v5097, 126
  %v5110 = vpop.permute.xlu0 %5109
  %5111 = vrot.lane.b32.xlu0 %v5098, 126
  %v5112 = vpop.permute.xlu0 %5111
  %5113 = vrot.lane.b32.xlu0 %v5099, 126
  %v5114 = vpop.permute.xlu0 %5113
  %v5115 = vsel %vm678, %v5106, %v5108
  %v5116 = vsel %vm678, %v5108, %v5110
  %v5117 = vsel %vm678, %v5110, %v5112
  %v5118 = vsel %vm678, %v5112, %v5114
  %v5124 = vadd.f32 %v5041, %v5115
  %v5125 = vadd.f32 %v5042, %v5116
  %v5126 = vadd.f32 %v5043, %v5117
  %v5127 = vadd.f32 %v5044, %v5118
  %v5128 = vadd.f32 %v5045, %v5114
  %5129 = vset.pattern.permute.xlu0 8
  %5130 = vperm.xlu0 %5129, %v4513
  %v5131 = vpop.permute.xlu0 %5130
  %v5133 = vlaneseq
  %v5134 = vshrl.u32 %v5133, 7
  %v5135 = vsub.s32 2, %v5134
  %v5136 = vrot.slane %v4957, %v5135
  %v5137 = vlaneseq
  %v5138 = vshrl.u32 %v5137, 7
  %v5139 = vsub.s32 6, %v5138
  %v5140 = vrot.slane %v4957, %v5139
  %v5141 = vlaneseq
  %v5142 = vshrl.u32 %v5141, 7
  %v5143 = vsub.s32 2, %v5142
  %v5144 = vrot.slane %v4958, %v5143
  %v5145 = vlaneseq
  %v5146 = vshrl.u32 %v5145, 7
  %v5147 = vsub.s32 6, %v5146
  %v5148 = vrot.slane %v4958, %v5147
  %v5149 = vlaneseq
  %v5150 = vshrl.u32 %v5149, 7
  %v5151 = vsub.s32 2, %v5150
  %v5152 = vrot.slane %v4959, %v5151
  %v5158 = vlaneseq
  %v5159 = vshrl.u32 %v5158, 7
  %v5160 = vsub.s32 2, %v5159
  %v5161 = vrot.slane %v5136, %v5160
  %v5162 = vlaneseq
  %v5163 = vshrl.u32 %v5162, 7
  %v5164 = vsub.s32 2, %v5163
  %v5165 = vrot.slane %v5140, %v5164
  %v5166 = vlaneseq
  %v5167 = vshrl.u32 %v5166, 7
  %v5168 = vsub.s32 2, %v5167
  %v5169 = vrot.slane %v5144, %v5168
  %v5170 = vlaneseq
  %v5171 = vshrl.u32 %v5170, 7
  %v5172 = vsub.s32 2, %v5171
  %v5173 = vrot.slane %v5148, %v5172
  %v5174 = vlaneseq
  %v5175 = vshrl.u32 %v5174, 7
  %v5176 = vsub.s32 2, %v5175
  %v5177 = vrot.slane %v5152, %v5176
  %v5178 = vmul.f32 %v5131, %v5161
  %v5179 = vmul.f32 %v5131, %v5165
  %v5180 = vmul.f32 %v5131, %v5169
  %v5181 = vmul.f32 %v5131, %v5173
  %v5182 = vmul.f32 %v5131, %v5177
  %5188 = vrot.lane.b32.xlu0 %v5178, 126
  %v5189 = vpop.permute.xlu0 %5188
  %5190 = vrot.lane.b32.xlu0 %v5179, 126
  %v5191 = vpop.permute.xlu0 %5190
  %5192 = vrot.lane.b32.xlu0 %v5180, 126
  %v5193 = vpop.permute.xlu0 %5192
  %5194 = vrot.lane.b32.xlu0 %v5181, 126
  %v5195 = vpop.permute.xlu0 %5194
  %5196 = vrot.lane.b32.xlu0 %v5182, 126
  %v5197 = vpop.permute.xlu0 %5196
  %v5198 = vsel %vm678, %v5189, %v5191
  %v5199 = vsel %vm678, %v5191, %v5193
  %v5200 = vsel %vm678, %v5193, %v5195
  %v5201 = vsel %vm678, %v5195, %v5197
  %v5207 = vadd.f32 %v5124, %v5198
  %v5208 = vadd.f32 %v5125, %v5199
  %v5209 = vadd.f32 %v5126, %v5200
  %v5210 = vadd.f32 %v5127, %v5201
  %v5211 = vadd.f32 %v5128, %v5197
  %v5212 = vld [vmem:[#allocation2] sm:$0x77]
  %v5213 = vld [vmem:[#allocation2 + $0x8] sm:$0x77]
  %v5214 = vld [vmem:[#allocation2 + $0x10] sm:$0x7]
  %v5215 = vmul.f32 %v5212, %v874
  %v5216 = vmul.f32 %v5213, %v876
  %v5217 = vmul.f32 %v5214, %v873
  %5218 = vset.pattern.permute.xlu0 9
  %5219 = vperm.xlu0 %5218, %v4513
  %v5220 = vpop.permute.xlu0 %5219
  %v5225 = vlaneseq
  %v5226 = vshrl.u32 %v5225, 7
  %v5227 = vsub.s32 0, %v5226
  %v5228 = vrot.slane %v5215, %v5227
  %v5229 = vlaneseq
  %v5230 = vshrl.u32 %v5229, 7
  %v5231 = vsub.s32 4, %v5230
  %v5232 = vrot.slane %v5215, %v5231
  %v5233 = vlaneseq
  %v5234 = vshrl.u32 %v5233, 7
  %v5235 = vsub.s32 0, %v5234
  %v5236 = vrot.slane %v5216, %v5235
  %v5237 = vlaneseq
  %v5238 = vshrl.u32 %v5237, 7
  %v5239 = vsub.s32 4, %v5238
  %v5240 = vrot.slane %v5216, %v5239
  %v5241 = vlaneseq
  %v5242 = vshrl.u32 %v5241, 7
  %v5243 = vsub.s32 0, %v5242
  %v5244 = vrot.slane %v5217, %v5243
  %v5250 = vlaneseq
  %v5251 = vshrl.u32 %v5250, 7
  %v5252 = vsub.s32 0, %v5251
  %v5253 = vrot.slane %v5228, %v5252
  %v5254 = vlaneseq
  %v5255 = vshrl.u32 %v5254, 7
  %v5256 = vsub.s32 0, %v5255
  %v5257 = vrot.slane %v5232, %v5256
  %v5258 = vlaneseq
  %v5259 = vshrl.u32 %v5258, 7
  %v5260 = vsub.s32 0, %v5259
  %v5261 = vrot.slane %v5236, %v5260
  %v5262 = vlaneseq
  %v5263 = vshrl.u32 %v5262, 7
  %v5264 = vsub.s32 0, %v5263
  %v5265 = vrot.slane %v5240, %v5264
  %v5266 = vlaneseq
  %v5267 = vshrl.u32 %v5266, 7
  %v5268 = vsub.s32 0, %v5267
  %v5269 = vrot.slane %v5244, %v5268
  %v5270 = vmul.f32 %v5220, %v5253
  %v5271 = vmul.f32 %v5220, %v5257
  %v5272 = vmul.f32 %v5220, %v5261
  %v5273 = vmul.f32 %v5220, %v5265
  %v5274 = vmul.f32 %v5220, %v5269
  %5275 = vset.pattern.permute.xlu0 10
  %5276 = vperm.xlu0 %5275, %v4513
  %v5277 = vpop.permute.xlu0 %5276
  %v5279 = vlaneseq
  %v5280 = vshrl.u32 %v5279, 7
  %v5281 = vsub.s32 1, %v5280
  %v5282 = vrot.slane %v5215, %v5281
  %v5283 = vlaneseq
  %v5284 = vshrl.u32 %v5283, 7
  %v5285 = vsub.s32 5, %v5284
  %v5286 = vrot.slane %v5215, %v5285
  %v5287 = vlaneseq
  %v5288 = vshrl.u32 %v5287, 7
  %v5289 = vsub.s32 1, %v5288
  %v5290 = vrot.slane %v5216, %v5289
  %v5291 = vlaneseq
  %v5292 = vshrl.u32 %v5291, 7
  %v5293 = vsub.s32 5, %v5292
  %v5294 = vrot.slane %v5216, %v5293
  %v5295 = vlaneseq
  %v5296 = vshrl.u32 %v5295, 7
  %v5297 = vsub.s32 1, %v5296
  %v5298 = vrot.slane %v5217, %v5297
  %v5304 = vlaneseq
  %v5305 = vshrl.u32 %v5304, 7
  %v5306 = vsub.s32 1, %v5305
  %v5307 = vrot.slane %v5282, %v5306
  %v5308 = vlaneseq
  %v5309 = vshrl.u32 %v5308, 7
  %v5310 = vsub.s32 1, %v5309
  %v5311 = vrot.slane %v5286, %v5310
  %v5312 = vlaneseq
  %v5313 = vshrl.u32 %v5312, 7
  %v5314 = vsub.s32 1, %v5313
  %v5315 = vrot.slane %v5290, %v5314
  %v5316 = vlaneseq
  %v5317 = vshrl.u32 %v5316, 7
  %v5318 = vsub.s32 1, %v5317
  %v5319 = vrot.slane %v5294, %v5318
  %v5320 = vlaneseq
  %v5321 = vshrl.u32 %v5320, 7
  %v5322 = vsub.s32 1, %v5321
  %v5323 = vrot.slane %v5298, %v5322
  %v5324 = vmul.f32 %v5277, %v5307
  %v5325 = vmul.f32 %v5277, %v5311
  %v5326 = vmul.f32 %v5277, %v5315
  %v5327 = vmul.f32 %v5277, %v5319
  %v5328 = vmul.f32 %v5277, %v5323
  %v5329 = vadd.f32 %v5270, %v5324
  %v5330 = vadd.f32 %v5271, %v5325
  %v5331 = vadd.f32 %v5272, %v5326
  %v5332 = vadd.f32 %v5273, %v5327
  %v5333 = vadd.f32 %v5274, %v5328
  %5334 = vset.pattern.permute.xlu0 11
  %5335 = vperm.xlu0 %5334, %v4513
  %v5336 = vpop.permute.xlu0 %5335
  %v5338 = vlaneseq
  %v5339 = vshrl.u32 %v5338, 7
  %v5340 = vsub.s32 2, %v5339
  %v5341 = vrot.slane %v5215, %v5340
  %v5342 = vlaneseq
  %v5343 = vshrl.u32 %v5342, 7
  %v5344 = vsub.s32 6, %v5343
  %v5345 = vrot.slane %v5215, %v5344
  %v5346 = vlaneseq
  %v5347 = vshrl.u32 %v5346, 7
  %v5348 = vsub.s32 2, %v5347
  %v5349 = vrot.slane %v5216, %v5348
  %v5350 = vlaneseq
  %v5351 = vshrl.u32 %v5350, 7
  %v5352 = vsub.s32 6, %v5351
  %v5353 = vrot.slane %v5216, %v5352
  %v5354 = vlaneseq
  %v5355 = vshrl.u32 %v5354, 7
  %v5356 = vsub.s32 2, %v5355
  %v5357 = vrot.slane %v5217, %v5356
  %v5363 = vlaneseq
  %v5364 = vshrl.u32 %v5363, 7
  %v5365 = vsub.s32 2, %v5364
  %v5366 = vrot.slane %v5341, %v5365
  %v5367 = vlaneseq
  %v5368 = vshrl.u32 %v5367, 7
  %v5369 = vsub.s32 2, %v5368
  %v5370 = vrot.slane %v5345, %v5369
  %v5371 = vlaneseq
  %v5372 = vshrl.u32 %v5371, 7
  %v5373 = vsub.s32 2, %v5372
  %v5374 = vrot.slane %v5349, %v5373
  %v5375 = vlaneseq
  %v5376 = vshrl.u32 %v5375, 7
  %v5377 = vsub.s32 2, %v5376
  %v5378 = vrot.slane %v5353, %v5377
  %v5379 = vlaneseq
  %v5380 = vshrl.u32 %v5379, 7
  %v5381 = vsub.s32 2, %v5380
  %v5382 = vrot.slane %v5357, %v5381
  %v5383 = vmul.f32 %v5336, %v5366
  %v5384 = vmul.f32 %v5336, %v5370
  %v5385 = vmul.f32 %v5336, %v5374
  %v5386 = vmul.f32 %v5336, %v5378
  %v5387 = vmul.f32 %v5336, %v5382
  %v5388 = vadd.f32 %v5329, %v5383
  %v5389 = vadd.f32 %v5330, %v5384
  %v5390 = vadd.f32 %v5331, %v5385
  %v5391 = vadd.f32 %v5332, %v5386
  %v5392 = vadd.f32 %v5333, %v5387
  %v5393 = vld [vmem:[#allocation2 + $0x4] sm:$0x77]
  %v5394 = vld [vmem:[#allocation2 + $0xc] sm:$0x77]
  %5395 = vset.pattern.permute.xlu0 12
  %5396 = vperm.xlu0 %5395, %v4513
  %v5397 = vpop.permute.xlu0 %5396
  %v5401 = vlaneseq
  %v5402 = vshrl.u32 %v5401, 7
  %v5403 = vsub.s32 0, %v5402
  %v5404 = vrot.slane %v5393, %v5403
  %v5405 = vlaneseq
  %v5406 = vshrl.u32 %v5405, 7
  %v5407 = vsub.s32 4, %v5406
  %v5408 = vrot.slane %v5393, %v5407
  %v5409 = vlaneseq
  %v5410 = vshrl.u32 %v5409, 7
  %v5411 = vsub.s32 0, %v5410
  %v5412 = vrot.slane %v5394, %v5411
  %v5413 = vlaneseq
  %v5414 = vshrl.u32 %v5413, 7
  %v5415 = vsub.s32 4, %v5414
  %v5416 = vrot.slane %v5394, %v5415
  %v5421 = vlaneseq
  %v5422 = vshrl.u32 %v5421, 7
  %v5423 = vsub.s32 0, %v5422
  %v5424 = vrot.slane %v5404, %v5423
  %v5425 = vlaneseq
  %v5426 = vshrl.u32 %v5425, 7
  %v5427 = vsub.s32 0, %v5426
  %v5428 = vrot.slane %v5408, %v5427
  %v5429 = vlaneseq
  %v5430 = vshrl.u32 %v5429, 7
  %v5431 = vsub.s32 0, %v5430
  %v5432 = vrot.slane %v5412, %v5431
  %v5433 = vlaneseq
  %v5434 = vshrl.u32 %v5433, 7
  %v5435 = vsub.s32 0, %v5434
  %v5436 = vrot.slane %v5416, %v5435
  %v5437 = vmul.f32 %v5397, %v5424
  %v5438 = vmul.f32 %v5397, %v5428
  %v5439 = vmul.f32 %v5397, %v5432
  %v5440 = vmul.f32 %v5397, %v5436
  %5445 = vrot.lane.b32.xlu0 %v5437, 127
  %v5446 = vpop.permute.xlu0 %5445
  %5447 = vrot.lane.b32.xlu0 %v5438, 127
  %v5448 = vpop.permute.xlu0 %5447
  %5449 = vrot.lane.b32.xlu0 %v5439, 127
  %v5450 = vpop.permute.xlu0 %5449
  %5451 = vrot.lane.b32.xlu0 %v5440, 127
  %v5452 = vpop.permute.xlu0 %5451
  %v5453 = vsel %vm400, %v5446, %v5448
  %v5454 = vsel %vm400, %v5448, %v5450
  %v5455 = vsel %vm400, %v5450, %v5452
  %v5461 = vadd.f32 %v5388, %v5446
  %v5462 = vadd.f32 %v5389, %v5453
  %v5463 = vadd.f32 %v5390, %v5454
  %v5464 = vadd.f32 %v5391, %v5455
  %v5465 = vadd.f32 %v5392, %v5452
  %5466 = vset.pattern.permute.xlu0 13
  %5467 = vperm.xlu0 %5466, %v4513
  %v5468 = vpop.permute.xlu0 %5467
  %v5470 = vlaneseq
  %v5471 = vshrl.u32 %v5470, 7
  %v5472 = vsub.s32 1, %v5471
  %v5473 = vrot.slane %v5393, %v5472
  %v5474 = vlaneseq
  %v5475 = vshrl.u32 %v5474, 7
  %v5476 = vsub.s32 5, %v5475
  %v5477 = vrot.slane %v5393, %v5476
  %v5478 = vlaneseq
  %v5479 = vshrl.u32 %v5478, 7
  %v5480 = vsub.s32 1, %v5479
  %v5481 = vrot.slane %v5394, %v5480
  %v5482 = vlaneseq
  %v5483 = vshrl.u32 %v5482, 7
  %v5484 = vsub.s32 5, %v5483
  %v5485 = vrot.slane %v5394, %v5484
  %v5490 = vlaneseq
  %v5491 = vshrl.u32 %v5490, 7
  %v5492 = vsub.s32 1, %v5491
  %v5493 = vrot.slane %v5473, %v5492
  %v5494 = vlaneseq
  %v5495 = vshrl.u32 %v5494, 7
  %v5496 = vsub.s32 1, %v5495
  %v5497 = vrot.slane %v5477, %v5496
  %v5498 = vlaneseq
  %v5499 = vshrl.u32 %v5498, 7
  %v5500 = vsub.s32 1, %v5499
  %v5501 = vrot.slane %v5481, %v5500
  %v5502 = vlaneseq
  %v5503 = vshrl.u32 %v5502, 7
  %v5504 = vsub.s32 1, %v5503
  %v5505 = vrot.slane %v5485, %v5504
  %v5506 = vmul.f32 %v5468, %v5493
  %v5507 = vmul.f32 %v5468, %v5497
  %v5508 = vmul.f32 %v5468, %v5501
  %v5509 = vmul.f32 %v5468, %v5505
  %5514 = vrot.lane.b32.xlu0 %v5506, 127
  %v5515 = vpop.permute.xlu0 %5514
  %5516 = vrot.lane.b32.xlu0 %v5507, 127
  %v5517 = vpop.permute.xlu0 %5516
  %5518 = vrot.lane.b32.xlu0 %v5508, 127
  %v5519 = vpop.permute.xlu0 %5518
  %5520 = vrot.lane.b32.xlu0 %v5509, 127
  %v5521 = vpop.permute.xlu0 %5520
  %v5522 = vsel %vm400, %v5515, %v5517
  %v5523 = vsel %vm400, %v5517, %v5519
  %v5524 = vsel %vm400, %v5519, %v5521
  %v5530 = vadd.f32 %v5461, %v5515
  %v5531 = vadd.f32 %v5462, %v5522
  %v5532 = vadd.f32 %v5463, %v5523
  %v5533 = vadd.f32 %v5464, %v5524
  %v5534 = vadd.f32 %v5465, %v5521
  %5535 = vset.pattern.permute.xlu0 14
  %5536 = vperm.xlu0 %5535, %v4513
  %v5537 = vpop.permute.xlu0 %5536
  %v5539 = vlaneseq
  %v5540 = vshrl.u32 %v5539, 7
  %v5541 = vsub.s32 2, %v5540
  %v5542 = vrot.slane %v5393, %v5541
  %v5543 = vlaneseq
  %v5544 = vshrl.u32 %v5543, 7
  %v5545 = vsub.s32 6, %v5544
  %v5546 = vrot.slane %v5393, %v5545
  %v5547 = vlaneseq
  %v5548 = vshrl.u32 %v5547, 7
  %v5549 = vsub.s32 2, %v5548
  %v5550 = vrot.slane %v5394, %v5549
  %v5551 = vlaneseq
  %v5552 = vshrl.u32 %v5551, 7
  %v5553 = vsub.s32 6, %v5552
  %v5554 = vrot.slane %v5394, %v5553
  %v5559 = vlaneseq
  %v5560 = vshrl.u32 %v5559, 7
  %v5561 = vsub.s32 2, %v5560
  %v5562 = vrot.slane %v5542, %v5561
  %v5563 = vlaneseq
  %v5564 = vshrl.u32 %v5563, 7
  %v5565 = vsub.s32 2, %v5564
  %v5566 = vrot.slane %v5546, %v5565
  %v5567 = vlaneseq
  %v5568 = vshrl.u32 %v5567, 7
  %v5569 = vsub.s32 2, %v5568
  %v5570 = vrot.slane %v5550, %v5569
  %v5571 = vlaneseq
  %v5572 = vshrl.u32 %v5571, 7
  %v5573 = vsub.s32 2, %v5572
  %v5574 = vrot.slane %v5554, %v5573
  %v5575 = vmul.f32 %v5537, %v5562
  %v5576 = vmul.f32 %v5537, %v5566
  %v5577 = vmul.f32 %v5537, %v5570
  %v5578 = vmul.f32 %v5537, %v5574
  %5583 = vrot.lane.b32.xlu0 %v5575, 127
  %v5584 = vpop.permute.xlu0 %5583
  %5585 = vrot.lane.b32.xlu0 %v5576, 127
  %v5586 = vpop.permute.xlu0 %5585
  %5587 = vrot.lane.b32.xlu0 %v5577, 127
  %v5588 = vpop.permute.xlu0 %5587
  %5589 = vrot.lane.b32.xlu0 %v5578, 127
  %v5590 = vpop.permute.xlu0 %5589
  %v5591 = vsel %vm400, %v5584, %v5586
  %v5592 = vsel %vm400, %v5586, %v5588
  %v5593 = vsel %vm400, %v5588, %v5590
  %v5599 = vadd.f32 %v5530, %v5584
  %v5600 = vadd.f32 %v5531, %v5591
  %v5601 = vadd.f32 %v5532, %v5592
  %v5602 = vadd.f32 %v5533, %v5593
  %v5603 = vadd.f32 %v5534, %v5590
  %v5604 = vld [vmem:[#allocation2 + $0x4] sm:$0x77]
  %v5605 = vld [vmem:[#allocation2 + $0xc] sm:$0x77]
  %v5606 = vld [vmem:[#allocation2 + $0x14] sm:$0x7]
  %v5607 = vmul.f32 %v5604, %v1285
  %v5608 = vmul.f32 %v5605, %v1287
  %v5609 = vmul.f32 %v5606, %v1283
  %5610 = vset.pattern.permute.xlu0 15
  %5611 = vperm.xlu0 %5610, %v4513
  %v5612 = vpop.permute.xlu0 %5611
  %v5617 = vlaneseq
  %v5618 = vshrl.u32 %v5617, 7
  %v5619 = vsub.s32 0, %v5618
  %v5620 = vrot.slane %v5607, %v5619
  %v5621 = vlaneseq
  %v5622 = vshrl.u32 %v5621, 7
  %v5623 = vsub.s32 4, %v5622
  %v5624 = vrot.slane %v5607, %v5623
  %v5625 = vlaneseq
  %v5626 = vshrl.u32 %v5625, 7
  %v5627 = vsub.s32 0, %v5626
  %v5628 = vrot.slane %v5608, %v5627
  %v5629 = vlaneseq
  %v5630 = vshrl.u32 %v5629, 7
  %v5631 = vsub.s32 4, %v5630
  %v5632 = vrot.slane %v5608, %v5631
  %v5633 = vlaneseq
  %v5634 = vshrl.u32 %v5633, 7
  %v5635 = vsub.s32 0, %v5634
  %v5636 = vrot.slane %v5609, %v5635
  %v5642 = vlaneseq
  %v5643 = vshrl.u32 %v5642, 7
  %v5644 = vsub.s32 0, %v5643
  %v5645 = vrot.slane %v5620, %v5644
  %v5646 = vlaneseq
  %v5647 = vshrl.u32 %v5646, 7
  %v5648 = vsub.s32 0, %v5647
  %v5649 = vrot.slane %v5624, %v5648
  %v5650 = vlaneseq
  %v5651 = vshrl.u32 %v5650, 7
  %v5652 = vsub.s32 0, %v5651
  %v5653 = vrot.slane %v5628, %v5652
  %v5654 = vlaneseq
  %v5655 = vshrl.u32 %v5654, 7
  %v5656 = vsub.s32 0, %v5655
  %v5657 = vrot.slane %v5632, %v5656
  %v5658 = vlaneseq
  %v5659 = vshrl.u32 %v5658, 7
  %v5660 = vsub.s32 0, %v5659
  %v5661 = vrot.slane %v5636, %v5660
  %v5662 = vmul.f32 %v5612, %v5645
  %v5663 = vmul.f32 %v5612, %v5649
  %v5664 = vmul.f32 %v5612, %v5653
  %v5665 = vmul.f32 %v5612, %v5657
  %v5666 = vmul.f32 %v5612, %v5661
  %5672 = vrot.lane.b32.xlu0 %v5662, 126
  %v5673 = vpop.permute.xlu0 %5672
  %5674 = vrot.lane.b32.xlu0 %v5663, 126
  %v5675 = vpop.permute.xlu0 %5674
  %5676 = vrot.lane.b32.xlu0 %v5664, 126
  %v5677 = vpop.permute.xlu0 %5676
  %5678 = vrot.lane.b32.xlu0 %v5665, 126
  %v5679 = vpop.permute.xlu0 %5678
  %5680 = vrot.lane.b32.xlu0 %v5666, 126
  %v5681 = vpop.permute.xlu0 %5680
  %v5682 = vsel %vm678, %v5673, %v5675
  %v5683 = vsel %vm678, %v5675, %v5677
  %v5684 = vsel %vm678, %v5677, %v5679
  %v5685 = vsel %vm678, %v5679, %v5681
  %v5691 = vadd.f32 %v5599, %v5673
  %v5692 = vadd.f32 %v5600, %v5682
  %v5693 = vadd.f32 %v5601, %v5683
  %v5694 = vadd.f32 %v5602, %v5684
  %v5695 = vadd.f32 %v5603, %v5685
  %5696 = vset.pattern.permute.xlu0 16
  %5697 = vperm.xlu0 %5696, %v4513
  %v5698 = vpop.permute.xlu0 %5697
  %v5700 = vlaneseq
  %v5701 = vshrl.u32 %v5700, 7
  %v5702 = vsub.s32 1, %v5701
  %v5703 = vrot.slane %v5607, %v5702
  %v5704 = vlaneseq
  %v5705 = vshrl.u32 %v5704, 7
  %v5706 = vsub.s32 5, %v5705
  %v5707 = vrot.slane %v5607, %v5706
  %v5708 = vlaneseq
  %v5709 = vshrl.u32 %v5708, 7
  %v5710 = vsub.s32 1, %v5709
  %v5711 = vrot.slane %v5608, %v5710
  %v5712 = vlaneseq
  %v5713 = vshrl.u32 %v5712, 7
  %v5714 = vsub.s32 5, %v5713
  %v5715 = vrot.slane %v5608, %v5714
  %v5716 = vlaneseq
  %v5717 = vshrl.u32 %v5716, 7
  %v5718 = vsub.s32 1, %v5717
  %v5719 = vrot.slane %v5609, %v5718
  %v5725 = vlaneseq
  %v5726 = vshrl.u32 %v5725, 7
  %v5727 = vsub.s32 1, %v5726
  %v5728 = vrot.slane %v5703, %v5727
  %v5729 = vlaneseq
  %v5730 = vshrl.u32 %v5729, 7
  %v5731 = vsub.s32 1, %v5730
  %v5732 = vrot.slane %v5707, %v5731
  %v5733 = vlaneseq
  %v5734 = vshrl.u32 %v5733, 7
  %v5735 = vsub.s32 1, %v5734
  %v5736 = vrot.slane %v5711, %v5735
  %v5737 = vlaneseq
  %v5738 = vshrl.u32 %v5737, 7
  %v5739 = vsub.s32 1, %v5738
  %v5740 = vrot.slane %v5715, %v5739
  %v5741 = vlaneseq
  %v5742 = vshrl.u32 %v5741, 7
  %v5743 = vsub.s32 1, %v5742
  %v5744 = vrot.slane %v5719, %v5743
  %v5745 = vmul.f32 %v5698, %v5728
  %v5746 = vmul.f32 %v5698, %v5732
  %v5747 = vmul.f32 %v5698, %v5736
  %v5748 = vmul.f32 %v5698, %v5740
  %v5749 = vmul.f32 %v5698, %v5744
  %5755 = vrot.lane.b32.xlu0 %v5745, 126
  %v5756 = vpop.permute.xlu0 %5755
  %5757 = vrot.lane.b32.xlu0 %v5746, 126
  %v5758 = vpop.permute.xlu0 %5757
  %5759 = vrot.lane.b32.xlu0 %v5747, 126
  %v5760 = vpop.permute.xlu0 %5759
  %5761 = vrot.lane.b32.xlu0 %v5748, 126
  %v5762 = vpop.permute.xlu0 %5761
  %5763 = vrot.lane.b32.xlu0 %v5749, 126
  %v5764 = vpop.permute.xlu0 %5763
  %v5765 = vsel %vm678, %v5756, %v5758
  %v5766 = vsel %vm678, %v5758, %v5760
  %v5767 = vsel %vm678, %v5760, %v5762
  %v5768 = vsel %vm678, %v5762, %v5764
  %v5774 = vadd.f32 %v5691, %v5756
  %v5775 = vadd.f32 %v5692, %v5765
  %v5776 = vadd.f32 %v5693, %v5766
  %v5777 = vadd.f32 %v5694, %v5767
  %v5778 = vadd.f32 %v5695, %v5768
  %5779 = vset.pattern.permute.xlu0 17
  %5780 = vperm.xlu0 %5779, %v4513
  %v5781 = vpop.permute.xlu0 %5780
  %v5783 = vlaneseq
  %v5784 = vshrl.u32 %v5783, 7
  %v5785 = vsub.s32 2, %v5784
  %v5786 = vrot.slane %v5607, %v5785
  %v5787 = vlaneseq
  %v5788 = vshrl.u32 %v5787, 7
  %v5789 = vsub.s32 6, %v5788
  %v5790 = vrot.slane %v5607, %v5789
  %v5791 = vlaneseq
  %v5792 = vshrl.u32 %v5791, 7
  %v5793 = vsub.s32 2, %v5792
  %v5794 = vrot.slane %v5608, %v5793
  %v5795 = vlaneseq
  %v5796 = vshrl.u32 %v5795, 7
  %v5797 = vsub.s32 6, %v5796
  %v5798 = vrot.slane %v5608, %v5797
  %v5799 = vlaneseq
  %v5800 = vshrl.u32 %v5799, 7
  %v5801 = vsub.s32 2, %v5800
  %v5802 = vrot.slane %v5609, %v5801
  %v5808 = vlaneseq
  %v5809 = vshrl.u32 %v5808, 7
  %v5810 = vsub.s32 2, %v5809
  %v5811 = vrot.slane %v5786, %v5810
  %v5812 = vlaneseq
  %v5813 = vshrl.u32 %v5812, 7
  %v5814 = vsub.s32 2, %v5813
  %v5815 = vrot.slane %v5790, %v5814
  %v5816 = vlaneseq
  %v5817 = vshrl.u32 %v5816, 7
  %v5818 = vsub.s32 2, %v5817
  %v5819 = vrot.slane %v5794, %v5818
  %v5820 = vlaneseq
  %v5821 = vshrl.u32 %v5820, 7
  %v5822 = vsub.s32 2, %v5821
  %v5823 = vrot.slane %v5798, %v5822
  %v5824 = vlaneseq
  %v5825 = vshrl.u32 %v5824, 7
  %v5826 = vsub.s32 2, %v5825
  %v5827 = vrot.slane %v5802, %v5826
  %v5828 = vmul.f32 %v5781, %v5811
  %v5829 = vmul.f32 %v5781, %v5815
  %v5830 = vmul.f32 %v5781, %v5819
  %v5831 = vmul.f32 %v5781, %v5823
  %v5832 = vmul.f32 %v5781, %v5827
  %5838 = vrot.lane.b32.xlu0 %v5828, 126
  %v5839 = vpop.permute.xlu0 %5838
  %5840 = vrot.lane.b32.xlu0 %v5829, 126
  %v5841 = vpop.permute.xlu0 %5840
  %5842 = vrot.lane.b32.xlu0 %v5830, 126
  %v5843 = vpop.permute.xlu0 %5842
  %5844 = vrot.lane.b32.xlu0 %v5831, 126
  %v5845 = vpop.permute.xlu0 %5844
  %5846 = vrot.lane.b32.xlu0 %v5832, 126
  %v5847 = vpop.permute.xlu0 %5846
  %v5848 = vsel %vm678, %v5839, %v5841
  %v5849 = vsel %vm678, %v5841, %v5843
  %v5850 = vsel %vm678, %v5843, %v5845
  %v5851 = vsel %vm678, %v5845, %v5847
  %v5857 = vadd.f32 %v5774, %v5839
  %v5858 = vadd.f32 %v5775, %v5848
  %v5859 = vadd.f32 %v5776, %v5849
  %v5860 = vadd.f32 %v5777, %v5850
  %v5861 = vadd.f32 %v5778, %v5851
  %v5862 = vld [vmem:[#allocation2 + $0x4] sm:$0x77]
  %v5863 = vld [vmem:[#allocation2 + $0xc] sm:$0x77]
  %v5864 = vld [vmem:[#allocation2 + $0x14] sm:$0x7]
  %v5865 = vmul.f32 %v5862, %v1562
  %v5866 = vmul.f32 %v5863, %v1564
  %v5867 = vmul.f32 %v5864, %v1560
  %5868 = vset.pattern.permute.xlu0 18
  %5869 = vperm.xlu0 %5868, %v4513
  %v5870 = vpop.permute.xlu0 %5869
  %v5875 = vlaneseq
  %v5876 = vshrl.u32 %v5875, 7
  %v5877 = vsub.s32 0, %v5876
  %v5878 = vrot.slane %v5865, %v5877
  %v5879 = vlaneseq
  %v5880 = vshrl.u32 %v5879, 7
  %v5881 = vsub.s32 4, %v5880
  %v5882 = vrot.slane %v5865, %v5881
  %v5883 = vlaneseq
  %v5884 = vshrl.u32 %v5883, 7
  %v5885 = vsub.s32 0, %v5884
  %v5886 = vrot.slane %v5866, %v5885
  %v5887 = vlaneseq
  %v5888 = vshrl.u32 %v5887, 7
  %v5889 = vsub.s32 4, %v5888
  %v5890 = vrot.slane %v5866, %v5889
  %v5891 = vlaneseq
  %v5892 = vshrl.u32 %v5891, 7
  %v5893 = vsub.s32 0, %v5892
  %v5894 = vrot.slane %v5867, %v5893
  %v5900 = vlaneseq
  %v5901 = vshrl.u32 %v5900, 7
  %v5902 = vsub.s32 0, %v5901
  %v5903 = vrot.slane %v5878, %v5902
  %v5904 = vlaneseq
  %v5905 = vshrl.u32 %v5904, 7
  %v5906 = vsub.s32 0, %v5905
  %v5907 = vrot.slane %v5882, %v5906
  %v5908 = vlaneseq
  %v5909 = vshrl.u32 %v5908, 7
  %v5910 = vsub.s32 0, %v5909
  %v5911 = vrot.slane %v5886, %v5910
  %v5912 = vlaneseq
  %v5913 = vshrl.u32 %v5912, 7
  %v5914 = vsub.s32 0, %v5913
  %v5915 = vrot.slane %v5890, %v5914
  %v5916 = vlaneseq
  %v5917 = vshrl.u32 %v5916, 7
  %v5918 = vsub.s32 0, %v5917
  %v5919 = vrot.slane %v5894, %v5918
  %v5920 = vmul.f32 %v5870, %v5903
  %v5921 = vmul.f32 %v5870, %v5907
  %v5922 = vmul.f32 %v5870, %v5911
  %v5923 = vmul.f32 %v5870, %v5915
  %v5924 = vmul.f32 %v5870, %v5919
  %5925 = vset.pattern.permute.xlu0 19
  %5926 = vperm.xlu0 %5925, %v4513
  %v5927 = vpop.permute.xlu0 %5926
  %v5929 = vlaneseq
  %v5930 = vshrl.u32 %v5929, 7
  %v5931 = vsub.s32 1, %v5930
  %v5932 = vrot.slane %v5865, %v5931
  %v5933 = vlaneseq
  %v5934 = vshrl.u32 %v5933, 7
  %v5935 = vsub.s32 5, %v5934
  %v5936 = vrot.slane %v5865, %v5935
  %v5937 = vlaneseq
  %v5938 = vshrl.u32 %v5937, 7
  %v5939 = vsub.s32 1, %v5938
  %v5940 = vrot.slane %v5866, %v5939
  %v5941 = vlaneseq
  %v5942 = vshrl.u32 %v5941, 7
  %v5943 = vsub.s32 5, %v5942
  %v5944 = vrot.slane %v5866, %v5943
  %v5945 = vlaneseq
  %v5946 = vshrl.u32 %v5945, 7
  %v5947 = vsub.s32 1, %v5946
  %v5948 = vrot.slane %v5867, %v5947
  %v5954 = vlaneseq
  %v5955 = vshrl.u32 %v5954, 7
  %v5956 = vsub.s32 1, %v5955
  %v5957 = vrot.slane %v5932, %v5956
  %v5958 = vlaneseq
  %v5959 = vshrl.u32 %v5958, 7
  %v5960 = vsub.s32 1, %v5959
  %v5961 = vrot.slane %v5936, %v5960
  %v5962 = vlaneseq
  %v5963 = vshrl.u32 %v5962, 7
  %v5964 = vsub.s32 1, %v5963
  %v5965 = vrot.slane %v5940, %v5964
  %v5966 = vlaneseq
  %v5967 = vshrl.u32 %v5966, 7
  %v5968 = vsub.s32 1, %v5967
  %v5969 = vrot.slane %v5944, %v5968
  %v5970 = vlaneseq
  %v5971 = vshrl.u32 %v5970, 7
  %v5972 = vsub.s32 1, %v5971
  %v5973 = vrot.slane %v5948, %v5972
  %v5974 = vmul.f32 %v5927, %v5957
  %v5975 = vmul.f32 %v5927, %v5961
  %v5976 = vmul.f32 %v5927, %v5965
  %v5977 = vmul.f32 %v5927, %v5969
  %v5978 = vmul.f32 %v5927, %v5973
  %v5979 = vadd.f32 %v5920, %v5974
  %v5980 = vadd.f32 %v5921, %v5975
  %v5981 = vadd.f32 %v5922, %v5976
  %v5982 = vadd.f32 %v5923, %v5977
  %v5983 = vadd.f32 %v5924, %v5978
  %5984 = vset.pattern.permute.xlu0 20
  %5985 = vperm.xlu0 %5984, %v4513
  %v5986 = vpop.permute.xlu0 %5985
  %v5988 = vlaneseq
  %v5989 = vshrl.u32 %v5988, 7
  %v5990 = vsub.s32 2, %v5989
  %v5991 = vrot.slane %v5865, %v5990
  %v5992 = vlaneseq
  %v5993 = vshrl.u32 %v5992, 7
  %v5994 = vsub.s32 6, %v5993
  %v5995 = vrot.slane %v5865, %v5994
  %v5996 = vlaneseq
  %v5997 = vshrl.u32 %v5996, 7
  %v5998 = vsub.s32 2, %v5997
  %v5999 = vrot.slane %v5866, %v5998
  %v6000 = vlaneseq
  %v6001 = vshrl.u32 %v6000, 7
  %v6002 = vsub.s32 6, %v6001
  %v6003 = vrot.slane %v5866, %v6002
  %v6004 = vlaneseq
  %v6005 = vshrl.u32 %v6004, 7
  %v6006 = vsub.s32 2, %v6005
  %v6007 = vrot.slane %v5867, %v6006
  %v6013 = vlaneseq
  %v6014 = vshrl.u32 %v6013, 7
  %v6015 = vsub.s32 2, %v6014
  %v6016 = vrot.slane %v5991, %v6015
  %v6017 = vlaneseq
  %v6018 = vshrl.u32 %v6017, 7
  %v6019 = vsub.s32 2, %v6018
  %v6020 = vrot.slane %v5995, %v6019
  %v6021 = vlaneseq
  %v6022 = vshrl.u32 %v6021, 7
  %v6023 = vsub.s32 2, %v6022
  %v6024 = vrot.slane %v5999, %v6023
  %v6025 = vlaneseq
  %v6026 = vshrl.u32 %v6025, 7
  %v6027 = vsub.s32 2, %v6026
  %v6028 = vrot.slane %v6003, %v6027
  %v6029 = vlaneseq
  %v6030 = vshrl.u32 %v6029, 7
  %v6031 = vsub.s32 2, %v6030
  %v6032 = vrot.slane %v6007, %v6031
  %v6033 = vmul.f32 %v5986, %v6016
  %v6034 = vmul.f32 %v5986, %v6020
  %v6035 = vmul.f32 %v5986, %v6024
  %v6036 = vmul.f32 %v5986, %v6028
  %v6037 = vmul.f32 %v5986, %v6032
  %v6038 = vadd.f32 %v5979, %v6033
  %v6039 = vadd.f32 %v5980, %v6034
  %v6040 = vadd.f32 %v5981, %v6035
  %v6041 = vadd.f32 %v5982, %v6036
  %v6042 = vadd.f32 %v5983, %v6037
  %v6043 = vld [vmem:[#allocation2 + $0x4] sm:$0x77]
  %v6044 = vld [vmem:[#allocation2 + $0xc] sm:$0x77]
  %v6045 = vld [vmem:[#allocation2 + $0x14] sm:$0x7]
  %v6046 = vmul.f32 %v6043, %v1762
  %v6047 = vmul.f32 %v6044, %v1764
  %v6048 = vmul.f32 %v6045, %v1760
  %6049 = vset.pattern.permute.xlu0 21
  %6050 = vperm.xlu0 %6049, %v4513
  %v6051 = vpop.permute.xlu0 %6050
  %v6056 = vlaneseq
  %v6057 = vshrl.u32 %v6056, 7
  %v6058 = vsub.s32 0, %v6057
  %v6059 = vrot.slane %v6046, %v6058
  %v6060 = vlaneseq
  %v6061 = vshrl.u32 %v6060, 7
  %v6062 = vsub.s32 4, %v6061
  %v6063 = vrot.slane %v6046, %v6062
  %v6064 = vlaneseq
  %v6065 = vshrl.u32 %v6064, 7
  %v6066 = vsub.s32 0, %v6065
  %v6067 = vrot.slane %v6047, %v6066
  %v6068 = vlaneseq
  %v6069 = vshrl.u32 %v6068, 7
  %v6070 = vsub.s32 4, %v6069
  %v6071 = vrot.slane %v6047, %v6070
  %v6072 = vlaneseq
  %v6073 = vshrl.u32 %v6072, 7
  %v6074 = vsub.s32 0, %v6073
  %v6075 = vrot.slane %v6048, %v6074
  %v6081 = vlaneseq
  %v6082 = vshrl.u32 %v6081, 7
  %v6083 = vsub.s32 0, %v6082
  %v6084 = vrot.slane %v6059, %v6083
  %v6085 = vlaneseq
  %v6086 = vshrl.u32 %v6085, 7
  %v6087 = vsub.s32 0, %v6086
  %v6088 = vrot.slane %v6063, %v6087
  %v6089 = vlaneseq
  %v6090 = vshrl.u32 %v6089, 7
  %v6091 = vsub.s32 0, %v6090
  %v6092 = vrot.slane %v6067, %v6091
  %v6093 = vlaneseq
  %v6094 = vshrl.u32 %v6093, 7
  %v6095 = vsub.s32 0, %v6094
  %v6096 = vrot.slane %v6071, %v6095
  %v6097 = vlaneseq
  %v6098 = vshrl.u32 %v6097, 7
  %v6099 = vsub.s32 0, %v6098
  %v6100 = vrot.slane %v6075, %v6099
  %v6101 = vmul.f32 %v6051, %v6084
  %v6102 = vmul.f32 %v6051, %v6088
  %v6103 = vmul.f32 %v6051, %v6092
  %v6104 = vmul.f32 %v6051, %v6096
  %v6105 = vmul.f32 %v6051, %v6100
  %6111 = vrot.lane.b32.xlu0 %v6101, 127
  %v6112 = vpop.permute.xlu0 %6111
  %6113 = vrot.lane.b32.xlu0 %v6102, 127
  %v6114 = vpop.permute.xlu0 %6113
  %6115 = vrot.lane.b32.xlu0 %v6103, 127
  %v6116 = vpop.permute.xlu0 %6115
  %6117 = vrot.lane.b32.xlu0 %v6104, 127
  %v6118 = vpop.permute.xlu0 %6117
  %6119 = vrot.lane.b32.xlu0 %v6105, 127
  %v6120 = vpop.permute.xlu0 %6119
  %v6121 = vsel %vm400, %v6112, %v6114
  %v6122 = vsel %vm400, %v6114, %v6116
  %v6123 = vsel %vm400, %v6116, %v6118
  %v6124 = vsel %vm400, %v6118, %v6120
  %v6130 = vadd.f32 %v6038, %v6121
  %v6131 = vadd.f32 %v6039, %v6122
  %v6132 = vadd.f32 %v6040, %v6123
  %v6133 = vadd.f32 %v6041, %v6124
  %v6134 = vadd.f32 %v6042, %v6120
  %6135 = vset.pattern.permute.xlu0 22
  %6136 = vperm.xlu0 %6135, %v4513
  %v6137 = vpop.permute.xlu0 %6136
  %v6139 = vlaneseq
  %v6140 = vshrl.u32 %v6139, 7
  %v6141 = vsub.s32 1, %v6140
  %v6142 = vrot.slane %v6046, %v6141
  %v6143 = vlaneseq
  %v6144 = vshrl.u32 %v6143, 7
  %v6145 = vsub.s32 5, %v6144
  %v6146 = vrot.slane %v6046, %v6145
  %v6147 = vlaneseq
  %v6148 = vshrl.u32 %v6147, 7
  %v6149 = vsub.s32 1, %v6148
  %v6150 = vrot.slane %v6047, %v6149
  %v6151 = vlaneseq
  %v6152 = vshrl.u32 %v6151, 7
  %v6153 = vsub.s32 5, %v6152
  %v6154 = vrot.slane %v6047, %v6153
  %v6155 = vlaneseq
  %v6156 = vshrl.u32 %v6155, 7
  %v6157 = vsub.s32 1, %v6156
  %v6158 = vrot.slane %v6048, %v6157
  %v6164 = vlaneseq
  %v6165 = vshrl.u32 %v6164, 7
  %v6166 = vsub.s32 1, %v6165
  %v6167 = vrot.slane %v6142, %v6166
  %v6168 = vlaneseq
  %v6169 = vshrl.u32 %v6168, 7
  %v6170 = vsub.s32 1, %v6169
  %v6171 = vrot.slane %v6146, %v6170
  %v6172 = vlaneseq
  %v6173 = vshrl.u32 %v6172, 7
  %v6174 = vsub.s32 1, %v6173
  %v6175 = vrot.slane %v6150, %v6174
  %v6176 = vlaneseq
  %v6177 = vshrl.u32 %v6176, 7
  %v6178 = vsub.s32 1, %v6177
  %v6179 = vrot.slane %v6154, %v6178
  %v6180 = vlaneseq
  %v6181 = vshrl.u32 %v6180, 7
  %v6182 = vsub.s32 1, %v6181
  %v6183 = vrot.slane %v6158, %v6182
  %v6184 = vmul.f32 %v6137, %v6167
  %v6185 = vmul.f32 %v6137, %v6171
  %v6186 = vmul.f32 %v6137, %v6175
  %v6187 = vmul.f32 %v6137, %v6179
  %v6188 = vmul.f32 %v6137, %v6183
  %6194 = vrot.lane.b32.xlu0 %v6184, 127
  %v6195 = vpop.permute.xlu0 %6194
  %6196 = vrot.lane.b32.xlu0 %v6185, 127
  %v6197 = vpop.permute.xlu0 %6196
  %6198 = vrot.lane.b32.xlu0 %v6186, 127
  %v6199 = vpop.permute.xlu0 %6198
  %6200 = vrot.lane.b32.xlu0 %v6187, 127
  %v6201 = vpop.permute.xlu0 %6200
  %6202 = vrot.lane.b32.xlu0 %v6188, 127
  %v6203 = vpop.permute.xlu0 %6202
  %v6204 = vsel %vm400, %v6195, %v6197
  %v6205 = vsel %vm400, %v6197, %v6199
  %v6206 = vsel %vm400, %v6199, %v6201
  %v6207 = vsel %vm400, %v6201, %v6203
  %v6213 = vadd.f32 %v6130, %v6204
  %v6214 = vadd.f32 %v6131, %v6205
  %v6215 = vadd.f32 %v6132, %v6206
  %v6216 = vadd.f32 %v6133, %v6207
  %v6217 = vadd.f32 %v6134, %v6203
  %6218 = vset.pattern.permute.xlu0 23
  %6219 = vperm.xlu0 %6218, %v4513
  %v6220 = vpop.permute.xlu0 %6219
  %v6222 = vlaneseq
  %v6223 = vshrl.u32 %v6222, 7
  %v6224 = vsub.s32 2, %v6223
  %v6225 = vrot.slane %v6046, %v6224
  %v6226 = vlaneseq
  %v6227 = vshrl.u32 %v6226, 7
  %v6228 = vsub.s32 6, %v6227
  %v6229 = vrot.slane %v6046, %v6228
  %v6230 = vlaneseq
  %v6231 = vshrl.u32 %v6230, 7
  %v6232 = vsub.s32 2, %v6231
  %v6233 = vrot.slane %v6047, %v6232
  %v6234 = vlaneseq
  %v6235 = vshrl.u32 %v6234, 7
  %v6236 = vsub.s32 6, %v6235
  %v6237 = vrot.slane %v6047, %v6236
  %v6238 = vlaneseq
  %v6239 = vshrl.u32 %v6238, 7
  %v6240 = vsub.s32 2, %v6239
  %v6241 = vrot.slane %v6048, %v6240
  %v6247 = vlaneseq
  %v6248 = vshrl.u32 %v6247, 7
  %v6249 = vsub.s32 2, %v6248
  %v6250 = vrot.slane %v6225, %v6249
  %v6251 = vlaneseq
  %v6252 = vshrl.u32 %v6251, 7
  %v6253 = vsub.s32 2, %v6252
  %v6254 = vrot.slane %v6229, %v6253
  %v6255 = vlaneseq
  %v6256 = vshrl.u32 %v6255, 7
  %v6257 = vsub.s32 2, %v6256
  %v6258 = vrot.slane %v6233, %v6257
  %v6259 = vlaneseq
  %v6260 = vshrl.u32 %v6259, 7
  %v6261 = vsub.s32 2, %v6260
  %v6262 = vrot.slane %v6237, %v6261
  %v6263 = vlaneseq
  %v6264 = vshrl.u32 %v6263, 7
  %v6265 = vsub.s32 2, %v6264
  %v6266 = vrot.slane %v6241, %v6265
  %v6267 = vmul.f32 %v6220, %v6250
  %v6268 = vmul.f32 %v6220, %v6254
  %v6269 = vmul.f32 %v6220, %v6258
  %v6270 = vmul.f32 %v6220, %v6262
  %v6271 = vmul.f32 %v6220, %v6266
  %6277 = vrot.lane.b32.xlu0 %v6267, 127
  %v6278 = vpop.permute.xlu0 %6277
  %6279 = vrot.lane.b32.xlu0 %v6268, 127
  %v6280 = vpop.permute.xlu0 %6279
  %6281 = vrot.lane.b32.xlu0 %v6269, 127
  %v6282 = vpop.permute.xlu0 %6281
  %6283 = vrot.lane.b32.xlu0 %v6270, 127
  %v6284 = vpop.permute.xlu0 %6283
  %6285 = vrot.lane.b32.xlu0 %v6271, 127
  %v6286 = vpop.permute.xlu0 %6285
  %v6287 = vsel %vm400, %v6278, %v6280
  %v6288 = vsel %vm400, %v6280, %v6282
  %v6289 = vsel %vm400, %v6282, %v6284
  %v6290 = vsel %vm400, %v6284, %v6286
  %v6296 = vadd.f32 %v6213, %v6287
  %v6297 = vadd.f32 %v6214, %v6288
  %v6298 = vadd.f32 %v6215, %v6289
  %v6299 = vadd.f32 %v6216, %v6290
  %v6300 = vadd.f32 %v6217, %v6286
  %v6301 = vld [vmem:[#allocation2 + $0x4] sm:$0x77]
  %v6302 = vld [vmem:[#allocation2 + $0xc] sm:$0x77]
  %v6303 = vld [vmem:[#allocation2 + $0x14] sm:$0x7]
  %v6304 = vmul.f32 %v6301, %v2039
  %v6305 = vmul.f32 %v6302, %v2041
  %v6306 = vmul.f32 %v6303, %v2037
  %6307 = vset.pattern.permute.xlu0 24
  %6308 = vperm.xlu0 %6307, %v4513
  %v6309 = vpop.permute.xlu0 %6308
  %v6314 = vlaneseq
  %v6315 = vshrl.u32 %v6314, 7
  %v6316 = vsub.s32 0, %v6315
  %v6317 = vrot.slane %v6304, %v6316
  %v6318 = vlaneseq
  %v6319 = vshrl.u32 %v6318, 7
  %v6320 = vsub.s32 4, %v6319
  %v6321 = vrot.slane %v6304, %v6320
  %v6322 = vlaneseq
  %v6323 = vshrl.u32 %v6322, 7
  %v6324 = vsub.s32 0, %v6323
  %v6325 = vrot.slane %v6305, %v6324
  %v6326 = vlaneseq
  %v6327 = vshrl.u32 %v6326, 7
  %v6328 = vsub.s32 4, %v6327
  %v6329 = vrot.slane %v6305, %v6328
  %v6330 = vlaneseq
  %v6331 = vshrl.u32 %v6330, 7
  %v6332 = vsub.s32 0, %v6331
  %v6333 = vrot.slane %v6306, %v6332
  %v6339 = vlaneseq
  %v6340 = vshrl.u32 %v6339, 7
  %v6341 = vsub.s32 0, %v6340
  %v6342 = vrot.slane %v6317, %v6341
  %v6343 = vlaneseq
  %v6344 = vshrl.u32 %v6343, 7
  %v6345 = vsub.s32 0, %v6344
  %v6346 = vrot.slane %v6321, %v6345
  %v6347 = vlaneseq
  %v6348 = vshrl.u32 %v6347, 7
  %v6349 = vsub.s32 0, %v6348
  %v6350 = vrot.slane %v6325, %v6349
  %v6351 = vlaneseq
  %v6352 = vshrl.u32 %v6351, 7
  %v6353 = vsub.s32 0, %v6352
  %v6354 = vrot.slane %v6329, %v6353
  %v6355 = vlaneseq
  %v6356 = vshrl.u32 %v6355, 7
  %v6357 = vsub.s32 0, %v6356
  %v6358 = vrot.slane %v6333, %v6357
  %v6359 = vmul.f32 %v6309, %v6342
  %v6360 = vmul.f32 %v6309, %v6346
  %v6361 = vmul.f32 %v6309, %v6350
  %v6362 = vmul.f32 %v6309, %v6354
  %v6363 = vmul.f32 %v6309, %v6358
  %6369 = vrot.lane.b32.xlu0 %v6359, 126
  %v6370 = vpop.permute.xlu0 %6369
  %6371 = vrot.lane.b32.xlu0 %v6360, 126
  %v6372 = vpop.permute.xlu0 %6371
  %6373 = vrot.lane.b32.xlu0 %v6361, 126
  %v6374 = vpop.permute.xlu0 %6373
  %6375 = vrot.lane.b32.xlu0 %v6362, 126
  %v6376 = vpop.permute.xlu0 %6375
  %6377 = vrot.lane.b32.xlu0 %v6363, 126
  %v6378 = vpop.permute.xlu0 %6377
  %v6379 = vsel %vm678, %v6370, %v6372
  %v6380 = vsel %vm678, %v6372, %v6374
  %v6381 = vsel %vm678, %v6374, %v6376
  %v6382 = vsel %vm678, %v6376, %v6378
  %v6388 = vadd.f32 %v6296, %v6379
  %v6389 = vadd.f32 %v6297, %v6380
  %v6390 = vadd.f32 %v6298, %v6381
  %v6391 = vadd.f32 %v6299, %v6382
  %v6392 = vadd.f32 %v6300, %v6378
  %6393 = vset.pattern.permute.xlu0 25
  %6394 = vperm.xlu0 %6393, %v4513
  %v6395 = vpop.permute.xlu0 %6394
  %v6397 = vlaneseq
  %v6398 = vshrl.u32 %v6397, 7
  %v6399 = vsub.s32 1, %v6398
  %v6400 = vrot.slane %v6304, %v6399
  %v6401 = vlaneseq
  %v6402 = vshrl.u32 %v6401, 7
  %v6403 = vsub.s32 5, %v6402
  %v6404 = vrot.slane %v6304, %v6403
  %v6405 = vlaneseq
  %v6406 = vshrl.u32 %v6405, 7
  %v6407 = vsub.s32 1, %v6406
  %v6408 = vrot.slane %v6305, %v6407
  %v6409 = vlaneseq
  %v6410 = vshrl.u32 %v6409, 7
  %v6411 = vsub.s32 5, %v6410
  %v6412 = vrot.slane %v6305, %v6411
  %v6413 = vlaneseq
  %v6414 = vshrl.u32 %v6413, 7
  %v6415 = vsub.s32 1, %v6414
  %v6416 = vrot.slane %v6306, %v6415
  %v6422 = vlaneseq
  %v6423 = vshrl.u32 %v6422, 7
  %v6424 = vsub.s32 1, %v6423
  %v6425 = vrot.slane %v6400, %v6424
  %v6426 = vlaneseq
  %v6427 = vshrl.u32 %v6426, 7
  %v6428 = vsub.s32 1, %v6427
  %v6429 = vrot.slane %v6404, %v6428
  %v6430 = vlaneseq
  %v6431 = vshrl.u32 %v6430, 7
  %v6432 = vsub.s32 1, %v6431
  %v6433 = vrot.slane %v6408, %v6432
  %v6434 = vlaneseq
  %v6435 = vshrl.u32 %v6434, 7
  %v6436 = vsub.s32 1, %v6435
  %v6437 = vrot.slane %v6412, %v6436
  %v6438 = vlaneseq
  %v6439 = vshrl.u32 %v6438, 7
  %v6440 = vsub.s32 1, %v6439
  %v6441 = vrot.slane %v6416, %v6440
  %v6442 = vmul.f32 %v6395, %v6425
  %v6443 = vmul.f32 %v6395, %v6429
  %v6444 = vmul.f32 %v6395, %v6433
  %v6445 = vmul.f32 %v6395, %v6437
  %v6446 = vmul.f32 %v6395, %v6441
  %6452 = vrot.lane.b32.xlu0 %v6442, 126
  %v6453 = vpop.permute.xlu0 %6452
  %6454 = vrot.lane.b32.xlu0 %v6443, 126
  %v6455 = vpop.permute.xlu0 %6454
  %6456 = vrot.lane.b32.xlu0 %v6444, 126
  %v6457 = vpop.permute.xlu0 %6456
  %6458 = vrot.lane.b32.xlu0 %v6445, 126
  %v6459 = vpop.permute.xlu0 %6458
  %6460 = vrot.lane.b32.xlu0 %v6446, 126
  %v6461 = vpop.permute.xlu0 %6460
  %v6462 = vsel %vm678, %v6453, %v6455
  %v6463 = vsel %vm678, %v6455, %v6457
  %v6464 = vsel %vm678, %v6457, %v6459
  %v6465 = vsel %vm678, %v6459, %v6461
  %v6471 = vadd.f32 %v6388, %v6462
  %v6472 = vadd.f32 %v6389, %v6463
  %v6473 = vadd.f32 %v6390, %v6464
  %v6474 = vadd.f32 %v6391, %v6465
  %v6475 = vadd.f32 %v6392, %v6461
  %6476 = vset.pattern.permute.xlu0 26
  %6477 = vperm.xlu0 %6476, %v4513
  %v6478 = vpop.permute.xlu0 %6477
  %v6480 = vlaneseq
  %v6481 = vshrl.u32 %v6480, 7
  %v6482 = vsub.s32 2, %v6481
  %v6483 = vrot.slane %v6304, %v6482
  %v6484 = vlaneseq
  %v6485 = vshrl.u32 %v6484, 7
  %v6486 = vsub.s32 6, %v6485
  %v6487 = vrot.slane %v6304, %v6486
  %v6488 = vlaneseq
  %v6489 = vshrl.u32 %v6488, 7
  %v6490 = vsub.s32 2, %v6489
  %v6491 = vrot.slane %v6305, %v6490
  %v6492 = vlaneseq
  %v6493 = vshrl.u32 %v6492, 7
  %v6494 = vsub.s32 6, %v6493
  %v6495 = vrot.slane %v6305, %v6494
  %v6496 = vlaneseq
  %v6497 = vshrl.u32 %v6496, 7
  %v6498 = vsub.s32 2, %v6497
  %v6499 = vrot.slane %v6306, %v6498
  %v6505 = vlaneseq
  %v6506 = vshrl.u32 %v6505, 7
  %v6507 = vsub.s32 2, %v6506
  %v6508 = vrot.slane %v6483, %v6507
  %v6509 = vlaneseq
  %v6510 = vshrl.u32 %v6509, 7
  %v6511 = vsub.s32 2, %v6510
  %v6512 = vrot.slane %v6487, %v6511
  %v6513 = vlaneseq
  %v6514 = vshrl.u32 %v6513, 7
  %v6515 = vsub.s32 2, %v6514
  %v6516 = vrot.slane %v6491, %v6515
  %v6517 = vlaneseq
  %v6518 = vshrl.u32 %v6517, 7
  %v6519 = vsub.s32 2, %v6518
  %v6520 = vrot.slane %v6495, %v6519
  %v6521 = vlaneseq
  %v6522 = vshrl.u32 %v6521, 7
  %v6523 = vsub.s32 2, %v6522
  %v6524 = vrot.slane %v6499, %v6523
  %v6525 = vmul.f32 %v6478, %v6508
  %v6526 = vmul.f32 %v6478, %v6512
  %v6527 = vmul.f32 %v6478, %v6516
  %v6528 = vmul.f32 %v6478, %v6520
  %v6529 = vmul.f32 %v6478, %v6524
  %6535 = vrot.lane.b32.xlu0 %v6525, 126
  %v6536 = vpop.permute.xlu0 %6535
  %6537 = vrot.lane.b32.xlu0 %v6526, 126
  %v6538 = vpop.permute.xlu0 %6537
  %6539 = vrot.lane.b32.xlu0 %v6527, 126
  %v6540 = vpop.permute.xlu0 %6539
  %6541 = vrot.lane.b32.xlu0 %v6528, 126
  %v6542 = vpop.permute.xlu0 %6541
  %6543 = vrot.lane.b32.xlu0 %v6529, 126
  %v6544 = vpop.permute.xlu0 %6543
  %v6545 = vsel %vm678, %v6536, %v6538
  %v6546 = vsel %vm678, %v6538, %v6540
  %v6547 = vsel %vm678, %v6540, %v6542
  %v6548 = vsel %vm678, %v6542, %v6544
  %v6554 = vadd.f32 %v6471, %v6545
  %v6555 = vadd.f32 %v6472, %v6546
  %v6556 = vadd.f32 %v6473, %v6547
  %v6557 = vadd.f32 %v6474, %v6548
  %v6558 = vadd.f32 %v6475, %v6544
  %6564 = vrot.lane.b32.xlu0 %v5857, 112
  %v6565 = vpop.permute.xlu0 %6564
  %6566 = vrot.lane.b32.xlu0 %v5858, 112
  %v6567 = vpop.permute.xlu0 %6566
  %6568 = vrot.lane.b32.xlu0 %v5859, 112
  %v6569 = vpop.permute.xlu0 %6568
  %6570 = vrot.lane.b32.xlu0 %v5860, 112
  %v6571 = vpop.permute.xlu0 %6570
  %6572 = vrot.lane.b32.xlu0 %v5861, 112
  %v6573 = vpop.permute.xlu0 %6572
  %v6574 = vsel %vm318, %v6565, %v6567
  %v6575 = vsel %vm318, %v6567, %v6569
  %v6576 = vsel %vm318, %v6569, %v6571
  %v6577 = vsel %vm318, %v6571, %v6573
  %v6583 = vadd.f32 %v5207, %v6574
  %v6584 = vadd.f32 %v5208, %v6575
  %v6585 = vadd.f32 %v5209, %v6576
  %v6586 = vadd.f32 %v5210, %v6577
  %v6587 = vadd.f32 %v5211, %v6573
  %6593 = vrot.lane.b32.xlu0 %v6554, 96
  %v6594 = vpop.permute.xlu0 %6593
  %6595 = vrot.lane.b32.xlu0 %v6555, 96
  %v6596 = vpop.permute.xlu0 %6595
  %6597 = vrot.lane.b32.xlu0 %v6556, 96
  %v6598 = vpop.permute.xlu0 %6597
  %6599 = vrot.lane.b32.xlu0 %v6557, 96
  %v6600 = vpop.permute.xlu0 %6599
  %6601 = vrot.lane.b32.xlu0 %v6558, 96
  %v6602 = vpop.permute.xlu0 %6601
  %v6603 = vsel %vm2344, %v6594, %v6596
  %v6604 = vsel %vm2344, %v6596, %v6598
  %v6605 = vsel %vm2344, %v6598, %v6600
  %v6606 = vsel %vm2344, %v6600, %v6602
  %v6612 = vadd.f32 %v6583, %v6594
  %v6613 = vadd.f32 %v6584, %v6603
  %v6614 = vadd.f32 %v6585, %v6604
  %v6615 = vadd.f32 %v6586, %v6605
  %v6616 = vadd.f32 %v6587, %v6606
  %v6622 = vcombine.low %v6612, %v6613
  %v6623 = vcombine.low %v6614, %v6615
  %6624 = vrot.lane.b32.xlu0 %v6622, 17
  %v6625 = vpop.permute.xlu0 %6624
  %6626 = vrot.lane.b32.xlu0 %v6623, 17
  %v6627 = vpop.permute.xlu0 %6626
  %6628 = vrot.lane.b32.xlu0 %v6616, 17
  %v6629 = vpop.permute.xlu0 %6628
  %v6630 = vrot.slane %v6625, 4
  %v6631 = vrot.slane %v6627, 4
  %v6632 = vrot.slane %v6629, 4
  %v6633 = vsel %vm118, %v6630, %v6631
  %v6634 = vsel %vm2038, %v6625, %v6633
  %v6635 = vsel %vm118, %v6631, %v6632
  %v6636 = vsel %vm2038, %v6627, %v6635
  %6639 = vst [vmem:[%s2] sm:$0x77] %v6634
  %6640 = vst [vmem:[%s2 + $0x8] sm:$0x77] %v6636
  // Predicated region
  $region10: #{net_forward.1} parent=0 // pred_check
    _
  $region11: #{net_forward.1} parent=0 // pred_check_branch
    %6642 = sbr.rel (0) target = $region13
  $region12: #{net_forward.1} parent=0 // pred_region
    _
  $region13: #{net_forward.1} parent=0 // pred_fallthru
    _
  // Predicated region
  $region14: #{net_forward.1} parent=0 // pred_check
    _
  $region15: #{net_forward.1} parent=0 // pred_check_branch
    %6644 = sbr.rel (0) target = $region17
  $region16: #{net_forward.1} parent=0 // pred_region
    _
  $region17: #{net_forward.1} parent=0 // pred_fallthru
    _

</llo_original>
